<compile_context>
chip_gen: v6e
topology: v6e:2x2x1
jax: 0.10.0
libtpu: 0.0.40
codegen_flags: <defaults>
</compile_context>

<pallas_src>
import jax
import jax.numpy as jnp
from jax.experimental import pallas as pl
from jax.experimental.pallas import tpu as pltpu

IN_FEATURES = 100
IN_PADDED = 128            # lane/MXU-aligned K for fc1 (zero-padded 100 -> 128)
TILE_B_MAX = 1024          # max batch tile (lane dim of every activation)
DIMS = [(IN_FEATURES, 1024), (1024, 512), (512, 256), (256, 1)]


def _round_up(n, m):
    return pl.cdiv(n, m) * m


def _choose_tile(batch):
    """Batch tile: 128-aligned, adapted to the batch, >=2 grid steps when possible."""
    b128 = _round_up(max(batch, 1), 128)
    if b128 <= 128:
        return 128                                    # tiny batch: single small tile
    steps = max(2, pl.cdiv(b128, TILE_B_MAX))         # >=2 steps for v7x megacore
    return min(TILE_B_MAX, _round_up(pl.cdiv(b128, steps), 128))


def discriminator_kernel(xt_ref, w1_ref, b1_ref, w2_ref, b2_ref,
                         w3_ref, b3_ref, w4_ref, b4_ref, o_ref):
    # Feature-major layout: activations are [features, TILE_B] with the batch on lanes.
    # fc1 + ReLU : [1024,128] @ [128,TILE_B]  (bf16 MXU, f32 accumulate)
    h = jnp.dot(w1_ref[...], xt_ref[...], preferred_element_type=jnp.float32)
    h = jnp.maximum(h + b1_ref[...], 0.0).astype(jnp.bfloat16)   # bf16 fused into ReLU
    # fc2 + ReLU : [512,1024] @ [1024,TILE_B]
    h = jnp.dot(w2_ref[...], h, preferred_element_type=jnp.float32)
    h = jnp.maximum(h + b2_ref[...], 0.0).astype(jnp.bfloat16)
    # fc3 + ReLU : [256,512] @ [512,TILE_B]
    h = jnp.dot(w3_ref[...], h, preferred_element_type=jnp.float32)
    h = jnp.maximum(h + b3_ref[...], 0.0)                        # f32 for the VPU fc4
    # fc4 (N=1): VPU multiply + sublane reduce -> lane-dense (1, TILE_B) row.
    logits = jnp.sum(h * w4_ref[...], axis=0, keepdims=True)     # [1, TILE_B]
    o_ref[...] = jnp.tanh(logits + b4_ref[...])


def discriminator_forward(x, kparams):
    """x: [B, 100] float32 -> [B, 1] float32.  kparams from prepare_params()."""
    w1, b1, w2, b2, w3, b3, w4, b4 = kparams
    B = x.shape[0]
    tile = _choose_tile(B)
    Bp = _round_up(B, tile)

    # Pad batch B -> Bp and features 100 -> 128 (zeros), cast the activation
    # stream to bf16 and transpose to feature-major [128, Bp].
    xt = jnp.pad(x, ((0, Bp - B), (0, IN_PADDED - IN_FEATURES)))
    xt = xt.astype(jnp.bfloat16).T                               # [IN_PADDED, Bp]

    grid = (Bp // tile,)

    def resident(a):
        # Whole array in VMEM, same block every grid step -> DMA'd once.
        return pl.BlockSpec(a.shape, lambda i, n=a.ndim: (0,) * n)

    in_specs = [
        pl.BlockSpec((IN_PADDED, tile), lambda i: (0, i)),       # x tile (batch on lanes)
        resident(w1), resident(b1),
        resident(w2), resident(b2),
        resident(w3), resident(b3),
        resident(w4), resident(b4),
    ]
    out_spec = pl.BlockSpec((1, tile), lambda i: (0, i))          # lane-dense output row

    weight_bytes = sum(int(p.size) * p.dtype.itemsize
                       for p in (w1, b1, w2, b2, w3, b3, w4, b4))
    cost = pl.CostEstimate(
        flops=2 * Bp * (IN_PADDED * 1024 + 1024 * 512 + 512 * 256 + 256),
        transcendentals=Bp,
        bytes_accessed=weight_bytes + int(xt.size) * 2 + Bp * 4,
    )

    out = pl.pallas_call(
        discriminator_kernel,
        out_shape=jax.ShapeDtypeStruct((1, Bp), jnp.float32),
        grid=grid,
        in_specs=in_specs,
        out_specs=out_spec,
        compiler_params=pltpu.CompilerParams(
            dimension_semantics=("parallel",),
            vmem_limit_bytes=32 * 1024 * 1024),
        cost_estimate=cost,
    )(xt, w1, b1, w2, b2, w3, b3, w4, b4)

    # (1, Bp) lane-dense slab -> (B, 1) column, dropping batch padding.
    return out[0, :B].reshape(B, 1)


def init_params(key):
    """PyTorch nn.Linear-style init: w [out, in] ~ U(+-1/sqrt(in)), b [out]."""
    params = []
    for (fan_in, fan_out) in DIMS:
        key, kw, kb = jax.random.split(key, 3)
        bound = 1.0 / jnp.sqrt(jnp.float32(fan_in))
        w = jax.random.uniform(kw, (fan_out, fan_in), jnp.float32, -bound, bound)
        b = jax.random.uniform(kb, (fan_out,), jnp.float32, -bound, bound)
        params.append((w, b))
    return params


def prepare_params(params):
    """Kernel-ready params (feature-major): w1 K-padded to 128, w1..w3 bf16,
    biases as f32 [out, 1] columns, fc4 as an f32 [256, 1] column + [1,1] bias."""
    (w1, b1), (w2, b2), (w3, b3), (w4, b4) = params
    w1k = jnp.pad(w1, ((0, 0), (0, IN_PADDED - IN_FEATURES))).astype(jnp.bfloat16)
    return (w1k,                         b1.reshape(-1, 1).astype(jnp.float32),
            w2.astype(jnp.bfloat16),     b2.reshape(-1, 1).astype(jnp.float32),
            w3.astype(jnp.bfloat16),     b3.reshape(-1, 1).astype(jnp.float32),
            w4.reshape(-1, 1).astype(jnp.float32),        # [256, 1] VPU column
            b4.reshape(1, 1).astype(jnp.float32))


def reference_forward(x, params):
    """Pure-JAX reference mirroring the kernel's bf16-matmul / f32-accumulate.
    (Deviates from a true fp32 torch Discriminator at the ~1e-2 level.)"""
    (w1, b1), (w2, b2), (w3, b3), (w4, b4) = params
    bf, f32 = jnp.bfloat16, jnp.float32
    h = jnp.dot(x.astype(bf), w1.T.astype(bf), preferred_element_type=f32) + b1
    h = jnp.maximum(h, 0.0)
    h = jnp.dot(h.astype(bf), w2.T.astype(bf), preferred_element_type=f32) + b2
    h = jnp.maximum(h, 0.0)
    h = jnp.dot(h.astype(bf), w3.T.astype(bf), preferred_element_type=f32) + b3
    h = jnp.maximum(h, 0.0)
    return jnp.tanh(jnp.dot(h, w4.T) + b4)           # f32 fc4, matches VPU path


if __name__ == "__main__":
    key = jax.random.PRNGKey(0)
    key, kx = jax.random.split(key)
    params = init_params(key)
    kparams = prepare_params(params)

    # batch=8  -> single 128-row tile (small-batch path)
    # batch=200 -> padded to 256, two 128-row tiles (multi-step / megacore path)
    for batch in (8, 200):
        xb = jax.random.normal(jax.random.fold_in(kx, batch),
                               (batch, IN_FEATURES), jnp.float32)
        out = jax.block_until_ready(discriminator_forward(xb, kparams))
        ref = reference_forward(xb, params)
        assert out.shape == (batch, 1), out.shape
        assert jnp.allclose(out, ref, atol=1e-2, rtol=1e-2), \
            f"mismatch vs reference at batch={batch}"
    print("KERNEL_OK")
</pallas_src>

<mosaic_0001>
module attributes {stable_mosaic.version = 11 : i64} {
  func.func @discriminator_kernel(%arg0: i32, %arg1: memref<128x128xbf16, #tpu.memory_space<vmem>>, %arg2: memref<1024x128xbf16, #tpu.memory_space<vmem>>, %arg3: memref<1024x1xf32, #tpu.memory_space<vmem>>, %arg4: memref<512x1024xbf16, #tpu.memory_space<vmem>>, %arg5: memref<512x1xf32, #tpu.memory_space<vmem>>, %arg6: memref<256x512xbf16, #tpu.memory_space<vmem>>, %arg7: memref<256x1xf32, #tpu.memory_space<vmem>>, %arg8: memref<256x1xf32, #tpu.memory_space<vmem>>, %arg9: memref<1x1xf32, #tpu.memory_space<vmem>>, %arg10: memref<1x128xf32, #tpu.memory_space<vmem>>) attributes {dimension_semantics = [#tpu.dimension_semantics<parallel>], iteration_bounds = array<i64: 1>, scalar_prefetch = 0 : i64, scratch_operands = 0 : i64, tpu.core_type = #tpu.core_type<tc>, window_params = [{transform_indices = @transform_0, window_bounds = array<i64: 128, 128>}, {pipeline_mode = #tpu.pipeline_mode<synchronous>, transform_indices = @transform_1, window_bounds = array<i64: 1024, 128>}, {pipeline_mode = #tpu.pipeline_mode<synchronous>, transform_indices = @transform_2, window_bounds = array<i64: 1024, 1>}, {pipeline_mode = #tpu.pipeline_mode<synchronous>, transform_indices = @transform_3, window_bounds = array<i64: 512, 1024>}, {pipeline_mode = #tpu.pipeline_mode<synchronous>, transform_indices = @transform_4, window_bounds = array<i64: 512, 1>}, {pipeline_mode = #tpu.pipeline_mode<synchronous>, transform_indices = @transform_5, window_bounds = array<i64: 256, 512>}, {pipeline_mode = #tpu.pipeline_mode<synchronous>, transform_indices = @transform_6, window_bounds = array<i64: 256, 1>}, {pipeline_mode = #tpu.pipeline_mode<synchronous>, transform_indices = @transform_7, window_bounds = array<i64: 256, 1>}, {pipeline_mode = #tpu.pipeline_mode<synchronous>, transform_indices = @transform_8, window_bounds = array<i64: 1, 1>}, {transform_indices = @transform_9, window_bounds = array<i64: 1, 128>}]} {
    %c0 = arith.constant 0 : index
    %c0_0 = arith.constant 0 : index
    %0 = vector.load %arg2[%c0, %c0_0] : memref<1024x128xbf16, #tpu.memory_space<vmem>>, vector<1024x128xbf16>
    %c0_1 = arith.constant 0 : index
    %c0_2 = arith.constant 0 : index
    %1 = vector.load %arg1[%c0_1, %c0_2] : memref<128x128xbf16, #tpu.memory_space<vmem>>, vector<128x128xbf16>
    %cst = arith.constant dense<0.000000e+00> : vector<1024x128xf32>
    %2 = tpu.matmul %0, %1, %cst {dimension_numbers = #tpu.dot_dimension_numbers<[1], [0], [0], [1], [0, 0, 1, 1], [], []>} : vector<1024x128xbf16>, vector<128x128xbf16>, vector<1024x128xf32> -> vector<1024x128xf32>
    %c0_3 = arith.constant 0 : index
    %c0_4 = arith.constant 0 : index
    %3 = vector.load %arg3[%c0_3, %c0_4] : memref<1024x1xf32, #tpu.memory_space<vmem>>, vector<1024x1xf32>
    %4 = vector.broadcast %3 : vector<1024x1xf32> to vector<1024x128xf32>
    %5 = arith.addf %2, %4 : vector<1024x128xf32>
    %cst_5 = arith.constant 0.000000e+00 : f32
    %6 = vector.broadcast %cst_5 : f32 to vector<1024x128xf32>
    %7 = arith.maximumf %5, %6 : vector<1024x128xf32>
    %8 = arith.truncf %7 : vector<1024x128xf32> to vector<1024x128xbf16>
    %c0_6 = arith.constant 0 : index
    %c0_7 = arith.constant 0 : index
    %9 = vector.load %arg4[%c0_6, %c0_7] : memref<512x1024xbf16, #tpu.memory_space<vmem>>, vector<512x1024xbf16>
    %cst_8 = arith.constant dense<0.000000e+00> : vector<512x128xf32>
    %10 = tpu.matmul %9, %8, %cst_8 {dimension_numbers = #tpu.dot_dimension_numbers<[1], [0], [0], [1], [0, 0, 1, 1], [], []>} : vector<512x1024xbf16>, vector<1024x128xbf16>, vector<512x128xf32> -> vector<512x128xf32>
    %c0_9 = arith.constant 0 : index
    %c0_10 = arith.constant 0 : index
    %11 = vector.load %arg5[%c0_9, %c0_10] : memref<512x1xf32, #tpu.memory_space<vmem>>, vector<512x1xf32>
    %12 = vector.broadcast %11 : vector<512x1xf32> to vector<512x128xf32>
    %13 = arith.addf %10, %12 : vector<512x128xf32>
    %cst_11 = arith.constant 0.000000e+00 : f32
    %14 = vector.broadcast %cst_11 : f32 to vector<512x128xf32>
    %15 = arith.maximumf %13, %14 : vector<512x128xf32>
    %16 = arith.truncf %15 : vector<512x128xf32> to vector<512x128xbf16>
    %c0_12 = arith.constant 0 : index
    %c0_13 = arith.constant 0 : index
    %17 = vector.load %arg6[%c0_12, %c0_13] : memref<256x512xbf16, #tpu.memory_space<vmem>>, vector<256x512xbf16>
    %cst_14 = arith.constant dense<0.000000e+00> : vector<256x128xf32>
    %18 = tpu.matmul %17, %16, %cst_14 {dimension_numbers = #tpu.dot_dimension_numbers<[1], [0], [0], [1], [0, 0, 1, 1], [], []>} : vector<256x512xbf16>, vector<512x128xbf16>, vector<256x128xf32> -> vector<256x128xf32>
    %c0_15 = arith.constant 0 : index
    %c0_16 = arith.constant 0 : index
    %19 = vector.load %arg7[%c0_15, %c0_16] : memref<256x1xf32, #tpu.memory_space<vmem>>, vector<256x1xf32>
    %20 = vector.broadcast %19 : vector<256x1xf32> to vector<256x128xf32>
    %21 = arith.addf %18, %20 : vector<256x128xf32>
    %cst_17 = arith.constant 0.000000e+00 : f32
    %22 = vector.broadcast %cst_17 : f32 to vector<256x128xf32>
    %23 = arith.maximumf %21, %22 : vector<256x128xf32>
    %c0_18 = arith.constant 0 : index
    %c0_19 = arith.constant 0 : index
    %24 = vector.load %arg8[%c0_18, %c0_19] : memref<256x1xf32, #tpu.memory_space<vmem>>, vector<256x1xf32>
    %25 = vector.broadcast %24 : vector<256x1xf32> to vector<256x128xf32>
    %26 = arith.mulf %23, %25 : vector<256x128xf32>
    %cst_20 = arith.constant dense<0.000000e+00> : vector<128xf32>
    %27 = vector.multi_reduction <add>, %26, %cst_20 [0] : vector<256x128xf32> to vector<128xf32>
    %28 = vector.shape_cast %27 : vector<128xf32> to vector<1x128xf32>
    %c0_21 = arith.constant 0 : index
    %c0_22 = arith.constant 0 : index
    %29 = vector.load %arg9[%c0_21, %c0_22] : memref<1x1xf32, #tpu.memory_space<vmem>>, vector<1x1xf32>
    %30 = vector.broadcast %29 : vector<1x1xf32> to vector<1x128xf32>
    %31 = arith.addf %28, %30 : vector<1x128xf32>
    %32 = math.tanh %31 : vector<1x128xf32>
    %c0_23 = arith.constant 0 : index
    %c0_24 = arith.constant 0 : index
    %33 = vector.load %arg10[%c0_23, %c0_24] : memref<1x128xf32, #tpu.memory_space<vmem>>, vector<1x128xf32>
    tpu.vector_store %arg10[%c0_23, %c0_24], %32 {strides = array<i32>} : memref<1x128xf32, #tpu.memory_space<vmem>>, vector<1x128xf32>,
    return
  }
  func.func @transform_0(%arg0: i32) -> (i32, i32) {
    %c0_i32 = arith.constant 0 : i32
    %c0_i32_0 = arith.constant 0 : i32
    return %c0_i32, %arg0 : i32, i32
  }
  func.func @transform_1(%arg0: i32) -> (i32, i32) {
    %c0_i32 = arith.constant 0 : i32
    %c0_i32_0 = arith.constant 0 : i32
    %c0_i32_1 = arith.constant 0 : i32
    return %c0_i32, %c0_i32_0 : i32, i32
  }
  func.func @transform_2(%arg0: i32) -> (i32, i32) {
    %c0_i32 = arith.constant 0 : i32
    %c0_i32_0 = arith.constant 0 : i32
    %c0_i32_1 = arith.constant 0 : i32
    return %c0_i32, %c0_i32_0 : i32, i32
  }
  func.func @transform_3(%arg0: i32) -> (i32, i32) {
    %c0_i32 = arith.constant 0 : i32
    %c0_i32_0 = arith.constant 0 : i32
    %c0_i32_1 = arith.constant 0 : i32
    return %c0_i32, %c0_i32_0 : i32, i32
  }
  func.func @transform_4(%arg0: i32) -> (i32, i32) {
    %c0_i32 = arith.constant 0 : i32
    %c0_i32_0 = arith.constant 0 : i32
    %c0_i32_1 = arith.constant 0 : i32
    return %c0_i32, %c0_i32_0 : i32, i32
  }
  func.func @transform_5(%arg0: i32) -> (i32, i32) {
    %c0_i32 = arith.constant 0 : i32
    %c0_i32_0 = arith.constant 0 : i32
    %c0_i32_1 = arith.constant 0 : i32
    return %c0_i32, %c0_i32_0 : i32, i32
  }
  func.func @transform_6(%arg0: i32) -> (i32, i32) {
    %c0_i32 = arith.constant 0 : i32
    %c0_i32_0 = arith.constant 0 : i32
    %c0_i32_1 = arith.constant 0 : i32
    return %c0_i32, %c0_i32_0 : i32, i32
  }
  func.func @transform_7(%arg0: i32) -> (i32, i32) {
    %c0_i32 = arith.constant 0 : i32
    %c0_i32_0 = arith.constant 0 : i32
    %c0_i32_1 = arith.constant 0 : i32
    return %c0_i32, %c0_i32_0 : i32, i32
  }
  func.func @transform_8(%arg0: i32) -> (i32, i32) {
    %c0_i32 = arith.constant 0 : i32
    %c0_i32_0 = arith.constant 0 : i32
    %c0_i32_1 = arith.constant 0 : i32
    return %c0_i32, %c0_i32_0 : i32, i32
  }
  func.func @transform_9(%arg0: i32) -> (i32, i32) {
    %c0_i32 = arith.constant 0 : i32
    %c0_i32_0 = arith.constant 0 : i32
    return %c0_i32, %arg0 : i32, i32
  }
}

</mosaic_0001>

<llo_original>
// kernel: tpu_custom_call.1
$region0: #{tpu_custom_call.1}
  #allocation0 [shape = 'u32[]', space=smem, size = 0x4, offset = 0x4, fixed_abs, tag = 'smem constant byte address 0x4 - core index']
  #allocation1 [shape = 'u32[144,128]{1,0:T(1,128)}', space=vmem, size = 0x12000, scoped, tag = 'internal scratch']
  #allocation2 [shape = 'f32[1,1]{1,0:T(1,128)S(1)}', space=vmem, size = 0x200, scoped, tag = 'scoped memory for tpu_custom_call.1']
  %s0 = inlined_call_operand.hbm [shape: bf16[128,128], index: 0, kind: input, shape index: {}]
  %s1 = inlined_call_operand.hbm [shape: bf16[1024,128], index: 1, kind: input, shape index: {}]
  %s2 = inlined_call_operand.vmem [shape: f32[1024,1], index: 2, kind: input, shape index: {}]
  %s3 = inlined_call_operand.vmem [shape: bf16[512,1024], index: 3, kind: input, shape index: {}]
  %s4 = inlined_call_operand.vmem [shape: f32[512,1], index: 4, kind: input, shape index: {}]
  %s5 = inlined_call_operand.hbm [shape: bf16[256,512], index: 5, kind: input, shape index: {}]
  %s6 = inlined_call_operand.vmem [shape: f32[256,1], index: 6, kind: input, shape index: {}]
  %s7 = inlined_call_operand.vmem [shape: f32[256,1], index: 7, kind: input, shape index: {}]
  %s8 = inlined_call_operand.<no memory space> [shape: f32[1,1], index: 8, kind: input, shape index: {}]
  %s9 = inlined_call_operand.hbm [shape: f32[1,128], index: 9, kind: output, shape index: {}]
  %s10 = sld [smem:[#allocation0]]
  $region58: #{tpu_custom_call.1} parent=0
    _
  %s12 = ssub.s32 1, %s10
  %s13 = scalar_select 0, %s12, %s10
  %v14 = vstv %s8
  %15 = vst [vmem:[#allocation2] sm:$0x1] %v14
  $region1: #{tpu_custom_call.1} parent=0
    #allocation3 [shape = 'u8[32768]{0}', space=vmem, size = 0x8000, scoped, tag = 'input window, operand 0, single buffered']
    #allocation4 [shape = 's32[1]{0}', space=sflag, size = 0x4, scoped, tag = 'scoped memory for tpu_custom_call.1']
    #allocation5 [shape = 's32[1]{0}', space=sflag, size = 0x4, scoped, tag = 'scoped memory for tpu_custom_call.1']
    #allocation6 [shape = 'u8[262144]{0}', space=vmem, size = 0x40000, scoped, tag = 'input window, operand 1, single buffered']
    #allocation7 [shape = 's32[1]{0}', space=sflag, size = 0x4, scoped, tag = 'scoped memory for tpu_custom_call.1']
    #allocation8 [shape = 'u8[262144]{0}', space=vmem, size = 0x40000, scoped, tag = 'input window, operand 5, single buffered']
    #allocation9 [shape = 'u8[512]{0}', space=vmem, size = 0x400, scoped, tag = 'output window, operand 0, single buffered']
    %16 = vsyncpa [#allocation4], 0
    %17 = vsyncpa [#allocation7], 0
    %18 = vsyncpa [#allocation5], 0
    // Predicated region
    $region2: #{tpu_custom_call.1} parent=1 // pred_check
      _
    $region3: #{tpu_custom_call.1} parent=1 // pred_check_branch
      %20 = sbr.rel (0) target = $region5
    $region4: #{tpu_custom_call.1} parent=1 // pred_region
      %s22 = ssub.s32 1024, 1024
      %23 = vsyncadd [#allocation4], %s22
      %s24 = sshll.u32 [#allocation3], 4
      %s25 = int_to_ptr.vmem [resolvable:$true] %s24
      %30 = dma.hbm_to_vmem [thread:$0]  %s0, 1024, %s25, [#allocation4], 64, 64, 4
    $region5: #{tpu_custom_call.1} parent=1 // pred_fallthru
      _
    // Predicated region
    $region6: #{tpu_custom_call.1} parent=1 // pred_check
      _
    $region7: #{tpu_custom_call.1} parent=1 // pred_check_branch
      %32 = sbr.rel (0) target = $region9
    $region8: #{tpu_custom_call.1} parent=1 // pred_region
      %s34 = ssub.s32 8192, 8192
      %35 = vsyncadd [#allocation7], %s34
      %s36 = sshll.u32 [#allocation6], 4
      %s37 = int_to_ptr.vmem [resolvable:$true] %s36
      %42 = dma.hbm_to_vmem [thread:$0]  %s1, 8192, %s37, [#allocation7], 64, 64, 4
    $region9: #{tpu_custom_call.1} parent=1 // pred_fallthru
      _
    // Predicated region
    $region10: #{tpu_custom_call.1} parent=1 // pred_check
      _
    $region11: #{tpu_custom_call.1} parent=1 // pred_check_branch
      %44 = sbr.rel (0) target = $region13
    $region12: #{tpu_custom_call.1} parent=1 // pred_region
      _
    $region13: #{tpu_custom_call.1} parent=1 // pred_fallthru
      _
    // Predicated region
    $region14: #{tpu_custom_call.1} parent=1 // pred_check
      _
    $region15: #{tpu_custom_call.1} parent=1 // pred_check_branch
      %46 = sbr.rel (0) target = $region17
    $region16: #{tpu_custom_call.1} parent=1 // pred_region
      _
    $region17: #{tpu_custom_call.1} parent=1 // pred_fallthru
      _
    // Predicated region
    $region18: #{tpu_custom_call.1} parent=1 // pred_check
      _
    $region19: #{tpu_custom_call.1} parent=1 // pred_check_branch
      %48 = sbr.rel (0) target = $region21
    $region20: #{tpu_custom_call.1} parent=1 // pred_region
      _
    $region21: #{tpu_custom_call.1} parent=1 // pred_fallthru
      _
    // Predicated region
    $region22: #{tpu_custom_call.1} parent=1 // pred_check
      _
    $region23: #{tpu_custom_call.1} parent=1 // pred_check_branch
      %50 = sbr.rel (0) target = $region25
    $region24: #{tpu_custom_call.1} parent=1 // pred_region
      %s52 = ssub.s32 8192, 8192
      %53 = vsyncadd [#allocation7], %s52
      %s54 = sshll.u32 [#allocation8], 4
      %s55 = int_to_ptr.vmem [resolvable:$true] %s54
      %60 = dma.hbm_to_vmem [thread:$0]  %s5, 8192, %s55, [#allocation7], 256, 256, 16
    $region25: #{tpu_custom_call.1} parent=1 // pred_fallthru
      _
    // Predicated region
    $region26: #{tpu_custom_call.1} parent=1 // pred_check
      _
    $region27: #{tpu_custom_call.1} parent=1 // pred_check_branch
      %62 = sbr.rel (0) target = $region29
    $region28: #{tpu_custom_call.1} parent=1 // pred_region
      _
    $region29: #{tpu_custom_call.1} parent=1 // pred_fallthru
      _
    // Predicated region
    $region30: #{tpu_custom_call.1} parent=1 // pred_check
      _
    $region31: #{tpu_custom_call.1} parent=1 // pred_check_branch
      %64 = sbr.rel (0) target = $region33
    $region32: #{tpu_custom_call.1} parent=1 // pred_region
      _
    $region33: #{tpu_custom_call.1} parent=1 // pred_fallthru
      _
    // Predicated region
    $region34: #{tpu_custom_call.1} parent=1 // pred_check
      _
    $region35: #{tpu_custom_call.1} parent=1 // pred_check_branch
      %66 = sbr.rel (0) target = $region37
    $region36: #{tpu_custom_call.1} parent=1 // pred_region
      _
    $region37: #{tpu_custom_call.1} parent=1 // pred_fallthru
      _
    // Predicated region
    $region38: #{tpu_custom_call.1} parent=1 // pred_check
      _
    $region39: #{tpu_custom_call.1} parent=1 // pred_check_branch
      %68 = sbr.rel (0) target = $region41
    $region40: #{tpu_custom_call.1} parent=1 // pred_region
      %69 = dma.done [#allocation4], 1024
    $region41: #{tpu_custom_call.1} parent=1 // pred_fallthru
      _
    // Predicated region
    $region42: #{tpu_custom_call.1} parent=1 // pred_check
      _
    $region43: #{tpu_custom_call.1} parent=1 // pred_check_branch
      %71 = sbr.rel (0) target = $region45
    $region44: #{tpu_custom_call.1} parent=1 // pred_region
      %72 = dma.done [#allocation7], 8192
    $region45: #{tpu_custom_call.1} parent=1 // pred_fallthru
      _
    // Predicated region
    $region46: #{tpu_custom_call.1} parent=1 // pred_check
      _
    $region47: #{tpu_custom_call.1} parent=1 // pred_check_branch
      %74 = sbr.rel (0) target = $region49
    $region48: #{tpu_custom_call.1} parent=1 // pred_region
      %75 = dma.done [#allocation7], 8192
    $region49: #{tpu_custom_call.1} parent=1 // pred_fallthru
      _
    %v77 = vld [vmem:[#allocation6] sm:$0xf]
    %v78 = vld [vmem:[#allocation6 + $0x4] sm:$0xf]
    %v79 = vld [vmem:[#allocation6 + $0x8] sm:$0xf]
    %v80 = vld [vmem:[#allocation6 + $0xc] sm:$0xf]
    %v81 = vld [vmem:[#allocation6 + $0x10] sm:$0xf]
    %v82 = vld [vmem:[#allocation6 + $0x14] sm:$0xf]
    %v83 = vld [vmem:[#allocation6 + $0x18] sm:$0xf]
    %v84 = vld [vmem:[#allocation6 + $0x1c] sm:$0xf]
    %v85 = vld [vmem:[#allocation6 + $0x20] sm:$0xf]
    %v86 = vld [vmem:[#allocation6 + $0x24] sm:$0xf]
    %v87 = vld [vmem:[#allocation6 + $0x28] sm:$0xf]
    %v88 = vld [vmem:[#allocation6 + $0x2c] sm:$0xf]
    %v89 = vld [vmem:[#allocation6 + $0x30] sm:$0xf]
    %v90 = vld [vmem:[#allocation6 + $0x34] sm:$0xf]
    %v91 = vld [vmem:[#allocation6 + $0x38] sm:$0xf]
    %v92 = vld [vmem:[#allocation6 + $0x3c] sm:$0xf]
    %v93 = vld [vmem:[#allocation6 + $0x40] sm:$0xf]
    %v94 = vld [vmem:[#allocation6 + $0x44] sm:$0xf]
    %v95 = vld [vmem:[#allocation6 + $0x48] sm:$0xf]
    %v96 = vld [vmem:[#allocation6 + $0x4c] sm:$0xf]
    %v97 = vld [vmem:[#allocation6 + $0x50] sm:$0xf]
    %v98 = vld [vmem:[#allocation6 + $0x54] sm:$0xf]
    %v99 = vld [vmem:[#allocation6 + $0x58] sm:$0xf]
    %v100 = vld [vmem:[#allocation6 + $0x5c] sm:$0xf]
    %v101 = vld [vmem:[#allocation6 + $0x60] sm:$0xf]
    %v102 = vld [vmem:[#allocation6 + $0x64] sm:$0xf]
    %v103 = vld [vmem:[#allocation6 + $0x68] sm:$0xf]
    %v104 = vld [vmem:[#allocation6 + $0x6c] sm:$0xf]
    %v105 = vld [vmem:[#allocation6 + $0x70] sm:$0xf]
    %v106 = vld [vmem:[#allocation6 + $0x74] sm:$0xf]
    %v107 = vld [vmem:[#allocation6 + $0x78] sm:$0xf]
    %v108 = vld [vmem:[#allocation6 + $0x7c] sm:$0xf]
    %v109 = vld [vmem:[#allocation6 + $0x80] sm:$0xf]
    %v110 = vld [vmem:[#allocation6 + $0x84] sm:$0xf]
    %v111 = vld [vmem:[#allocation6 + $0x88] sm:$0xf]
    %v112 = vld [vmem:[#allocation6 + $0x8c] sm:$0xf]
    %v113 = vld [vmem:[#allocation6 + $0x90] sm:$0xf]
    %v114 = vld [vmem:[#allocation6 + $0x94] sm:$0xf]
    %v115 = vld [vmem:[#allocation6 + $0x98] sm:$0xf]
    %v116 = vld [vmem:[#allocation6 + $0x9c] sm:$0xf]
    %v117 = vld [vmem:[#allocation6 + $0xa0] sm:$0xf]
    %v118 = vld [vmem:[#allocation6 + $0xa4] sm:$0xf]
    %v119 = vld [vmem:[#allocation6 + $0xa8] sm:$0xf]
    %v120 = vld [vmem:[#allocation6 + $0xac] sm:$0xf]
    %v121 = vld [vmem:[#allocation6 + $0xb0] sm:$0xf]
    %v122 = vld [vmem:[#allocation6 + $0xb4] sm:$0xf]
    %v123 = vld [vmem:[#allocation6 + $0xb8] sm:$0xf]
    %v124 = vld [vmem:[#allocation6 + $0xbc] sm:$0xf]
    %v125 = vld [vmem:[#allocation6 + $0xc0] sm:$0xf]
    %v126 = vld [vmem:[#allocation6 + $0xc4] sm:$0xf]
    %v127 = vld [vmem:[#allocation6 + $0xc8] sm:$0xf]
    %v128 = vld [vmem:[#allocation6 + $0xcc] sm:$0xf]
    %v129 = vld [vmem:[#allocation6 + $0xd0] sm:$0xf]
    %v130 = vld [vmem:[#allocation6 + $0xd4] sm:$0xf]
    %v131 = vld [vmem:[#allocation6 + $0xd8] sm:$0xf]
    %v132 = vld [vmem:[#allocation6 + $0xdc] sm:$0xf]
    %v133 = vld [vmem:[#allocation6 + $0xe0] sm:$0xf]
    %v134 = vld [vmem:[#allocation6 + $0xe4] sm:$0xf]
    %v135 = vld [vmem:[#allocation6 + $0xe8] sm:$0xf]
    %v136 = vld [vmem:[#allocation6 + $0xec] sm:$0xf]
    %v137 = vld [vmem:[#allocation6 + $0xf0] sm:$0xf]
    %v138 = vld [vmem:[#allocation6 + $0xf4] sm:$0xf]
    %v139 = vld [vmem:[#allocation6 + $0xf8] sm:$0xf]
    %v140 = vld [vmem:[#allocation6 + $0xfc] sm:$0xf]
    %v141 = vld [vmem:[#allocation6 + $0x100] sm:$0xf]
    %v142 = vld [vmem:[#allocation6 + $0x104] sm:$0xf]
    %v143 = vld [vmem:[#allocation6 + $0x108] sm:$0xf]
    %v144 = vld [vmem:[#allocation6 + $0x10c] sm:$0xf]
    %v145 = vld [vmem:[#allocation6 + $0x110] sm:$0xf]
    %v146 = vld [vmem:[#allocation6 + $0x114] sm:$0xf]
    %v147 = vld [vmem:[#allocation6 + $0x118] sm:$0xf]
    %v148 = vld [vmem:[#allocation6 + $0x11c] sm:$0xf]
    %v149 = vld [vmem:[#allocation6 + $0x120] sm:$0xf]
    %v150 = vld [vmem:[#allocation6 + $0x124] sm:$0xf]
    %v151 = vld [vmem:[#allocation6 + $0x128] sm:$0xf]
    %v152 = vld [vmem:[#allocation6 + $0x12c] sm:$0xf]
    %v153 = vld [vmem:[#allocation6 + $0x130] sm:$0xf]
    %v154 = vld [vmem:[#allocation6 + $0x134] sm:$0xf]
    %v155 = vld [vmem:[#allocation6 + $0x138] sm:$0xf]
    %v156 = vld [vmem:[#allocation6 + $0x13c] sm:$0xf]
    %v157 = vld [vmem:[#allocation6 + $0x140] sm:$0xf]
    %v158 = vld [vmem:[#allocation6 + $0x144] sm:$0xf]
    %v159 = vld [vmem:[#allocation6 + $0x148] sm:$0xf]
    %v160 = vld [vmem:[#allocation6 + $0x14c] sm:$0xf]
    %v161 = vld [vmem:[#allocation6 + $0x150] sm:$0xf]
    %v162 = vld [vmem:[#allocation6 + $0x154] sm:$0xf]
    %v163 = vld [vmem:[#allocation6 + $0x158] sm:$0xf]
    %v164 = vld [vmem:[#allocation6 + $0x15c] sm:$0xf]
    %v165 = vld [vmem:[#allocation6 + $0x160] sm:$0xf]
    %v166 = vld [vmem:[#allocation6 + $0x164] sm:$0xf]
    %v167 = vld [vmem:[#allocation6 + $0x168] sm:$0xf]
    %v168 = vld [vmem:[#allocation6 + $0x16c] sm:$0xf]
    %v169 = vld [vmem:[#allocation6 + $0x170] sm:$0xf]
    %v170 = vld [vmem:[#allocation6 + $0x174] sm:$0xf]
    %v171 = vld [vmem:[#allocation6 + $0x178] sm:$0xf]
    %v172 = vld [vmem:[#allocation6 + $0x17c] sm:$0xf]
    %v173 = vld [vmem:[#allocation6 + $0x180] sm:$0xf]
    %v174 = vld [vmem:[#allocation6 + $0x184] sm:$0xf]
    %v175 = vld [vmem:[#allocation6 + $0x188] sm:$0xf]
    %v176 = vld [vmem:[#allocation6 + $0x18c] sm:$0xf]
    %v177 = vld [vmem:[#allocation6 + $0x190] sm:$0xf]
    %v178 = vld [vmem:[#allocation6 + $0x194] sm:$0xf]
    %v179 = vld [vmem:[#allocation6 + $0x198] sm:$0xf]
    %v180 = vld [vmem:[#allocation6 + $0x19c] sm:$0xf]
    %v181 = vld [vmem:[#allocation6 + $0x1a0] sm:$0xf]
    %v182 = vld [vmem:[#allocation6 + $0x1a4] sm:$0xf]
    %v183 = vld [vmem:[#allocation6 + $0x1a8] sm:$0xf]
    %v184 = vld [vmem:[#allocation6 + $0x1ac] sm:$0xf]
    %v185 = vld [vmem:[#allocation6 + $0x1b0] sm:$0xf]
    %v186 = vld [vmem:[#allocation6 + $0x1b4] sm:$0xf]
    %v187 = vld [vmem:[#allocation6 + $0x1b8] sm:$0xf]
    %v188 = vld [vmem:[#allocation6 + $0x1bc] sm:$0xf]
    %v189 = vld [vmem:[#allocation6 + $0x1c0] sm:$0xf]
    %v190 = vld [vmem:[#allocation6 + $0x1c4] sm:$0xf]
    %v191 = vld [vmem:[#allocation6 + $0x1c8] sm:$0xf]
    %v192 = vld [vmem:[#allocation6 + $0x1cc] sm:$0xf]
    %v193 = vld [vmem:[#allocation6 + $0x1d0] sm:$0xf]
    %v194 = vld [vmem:[#allocation6 + $0x1d4] sm:$0xf]
    %v195 = vld [vmem:[#allocation6 + $0x1d8] sm:$0xf]
    %v196 = vld [vmem:[#allocation6 + $0x1dc] sm:$0xf]
    %v197 = vld [vmem:[#allocation6 + $0x1e0] sm:$0xf]
    %v198 = vld [vmem:[#allocation6 + $0x1e4] sm:$0xf]
    %v199 = vld [vmem:[#allocation6 + $0x1e8] sm:$0xf]
    %v200 = vld [vmem:[#allocation6 + $0x1ec] sm:$0xf]
    %v201 = vld [vmem:[#allocation6 + $0x1f0] sm:$0xf]
    %v202 = vld [vmem:[#allocation6 + $0x1f4] sm:$0xf]
    %v203 = vld [vmem:[#allocation6 + $0x1f8] sm:$0xf]
    %v204 = vld [vmem:[#allocation6 + $0x1fc] sm:$0xf]
    %v205 = vld [vmem:[#allocation3] sm:$0xf]
    %v206 = vld [vmem:[#allocation3 + $0x4] sm:$0xf]
    %v207 = vld [vmem:[#allocation3 + $0x8] sm:$0xf]
    %v208 = vld [vmem:[#allocation3 + $0xc] sm:$0xf]
    %v209 = vld [vmem:[#allocation3 + $0x10] sm:$0xf]
    %v210 = vld [vmem:[#allocation3 + $0x14] sm:$0xf]
    %v211 = vld [vmem:[#allocation3 + $0x18] sm:$0xf]
    %v212 = vld [vmem:[#allocation3 + $0x1c] sm:$0xf]
    %v213 = vld [vmem:[#allocation3 + $0x20] sm:$0xf]
    %v214 = vld [vmem:[#allocation3 + $0x24] sm:$0xf]
    %v215 = vld [vmem:[#allocation3 + $0x28] sm:$0xf]
    %v216 = vld [vmem:[#allocation3 + $0x2c] sm:$0xf]
    %v217 = vld [vmem:[#allocation3 + $0x30] sm:$0xf]
    %v218 = vld [vmem:[#allocation3 + $0x34] sm:$0xf]
    %v219 = vld [vmem:[#allocation3 + $0x38] sm:$0xf]
    %v220 = vld [vmem:[#allocation3 + $0x3c] sm:$0xf]
    %v221 = vld [vmem:[%s2] sm:$0xff]
    %v222 = vld [vmem:[%s2 + $0x8] sm:$0xff]
    %v223 = vld [vmem:[%s2 + $0x10] sm:$0xff]
    %v224 = vld [vmem:[%s2 + $0x18] sm:$0xff]
    %v225 = vld [vmem:[%s2 + $0x20] sm:$0xff]
    %v226 = vld [vmem:[%s2 + $0x28] sm:$0xff]
    %v227 = vld [vmem:[%s2 + $0x30] sm:$0xff]
    %v228 = vld [vmem:[%s2 + $0x38] sm:$0xff]
    %v229 = vld [vmem:[%s2 + $0x40] sm:$0xff]
    %v230 = vld [vmem:[%s2 + $0x48] sm:$0xff]
    %v231 = vld [vmem:[%s2 + $0x50] sm:$0xff]
    %v232 = vld [vmem:[%s2 + $0x58] sm:$0xff]
    %v233 = vld [vmem:[%s2 + $0x60] sm:$0xff]
    %v234 = vld [vmem:[%s2 + $0x68] sm:$0xff]
    %v235 = vld [vmem:[%s2 + $0x70] sm:$0xff]
    %v236 = vld [vmem:[%s2 + $0x78] sm:$0xff]
    %v237 = vld [vmem:[%s2 + $0x80] sm:$0xff]
    %v238 = vld [vmem:[%s2 + $0x88] sm:$0xff]
    %v239 = vld [vmem:[%s2 + $0x90] sm:$0xff]
    %v240 = vld [vmem:[%s2 + $0x98] sm:$0xff]
    %v241 = vld [vmem:[%s2 + $0xa0] sm:$0xff]
    %v242 = vld [vmem:[%s2 + $0xa8] sm:$0xff]
    %v243 = vld [vmem:[%s2 + $0xb0] sm:$0xff]
    %v244 = vld [vmem:[%s2 + $0xb8] sm:$0xff]
    %v245 = vld [vmem:[%s2 + $0xc0] sm:$0xff]
    %v246 = vld [vmem:[%s2 + $0xc8] sm:$0xff]
    %v247 = vld [vmem:[%s2 + $0xd0] sm:$0xff]
    %v248 = vld [vmem:[%s2 + $0xd8] sm:$0xff]
    %v249 = vld [vmem:[%s2 + $0xe0] sm:$0xff]
    %v250 = vld [vmem:[%s2 + $0xe8] sm:$0xff]
    %v251 = vld [vmem:[%s2 + $0xf0] sm:$0xff]
    %v252 = vld [vmem:[%s2 + $0xf8] sm:$0xff]
    %v253 = vld [vmem:[%s2 + $0x100] sm:$0xff]
    %v254 = vld [vmem:[%s2 + $0x108] sm:$0xff]
    %v255 = vld [vmem:[%s2 + $0x110] sm:$0xff]
    %v256 = vld [vmem:[%s2 + $0x118] sm:$0xff]
    %v257 = vld [vmem:[%s2 + $0x120] sm:$0xff]
    %v258 = vld [vmem:[%s2 + $0x128] sm:$0xff]
    %v259 = vld [vmem:[%s2 + $0x130] sm:$0xff]
    %v260 = vld [vmem:[%s2 + $0x138] sm:$0xff]
    %v261 = vld [vmem:[%s2 + $0x140] sm:$0xff]
    %v262 = vld [vmem:[%s2 + $0x148] sm:$0xff]
    %v263 = vld [vmem:[%s2 + $0x150] sm:$0xff]
    %v264 = vld [vmem:[%s2 + $0x158] sm:$0xff]
    %v265 = vld [vmem:[%s2 + $0x160] sm:$0xff]
    %v266 = vld [vmem:[%s2 + $0x168] sm:$0xff]
    %v267 = vld [vmem:[%s2 + $0x170] sm:$0xff]
    %v268 = vld [vmem:[%s2 + $0x178] sm:$0xff]
    %v269 = vld [vmem:[%s2 + $0x180] sm:$0xff]
    %v270 = vld [vmem:[%s2 + $0x188] sm:$0xff]
    %v271 = vld [vmem:[%s2 + $0x190] sm:$0xff]
    %v272 = vld [vmem:[%s2 + $0x198] sm:$0xff]
    %v273 = vld [vmem:[%s2 + $0x1a0] sm:$0xff]
    %v274 = vld [vmem:[%s2 + $0x1a8] sm:$0xff]
    %v275 = vld [vmem:[%s2 + $0x1b0] sm:$0xff]
    %v276 = vld [vmem:[%s2 + $0x1b8] sm:$0xff]
    %v277 = vld [vmem:[%s2 + $0x1c0] sm:$0xff]
    %v278 = vld [vmem:[%s2 + $0x1c8] sm:$0xff]
    %v279 = vld [vmem:[%s2 + $0x1d0] sm:$0xff]
    %v280 = vld [vmem:[%s2 + $0x1d8] sm:$0xff]
    %v281 = vld [vmem:[%s2 + $0x1e0] sm:$0xff]
    %v282 = vld [vmem:[%s2 + $0x1e8] sm:$0xff]
    %v283 = vld [vmem:[%s2 + $0x1f0] sm:$0xff]
    %v284 = vld [vmem:[%s2 + $0x1f8] sm:$0xff]
    %v285 = vld [vmem:[%s2 + $0x200] sm:$0xff]
    %v286 = vld [vmem:[%s2 + $0x208] sm:$0xff]
    %v287 = vld [vmem:[%s2 + $0x210] sm:$0xff]
    %v288 = vld [vmem:[%s2 + $0x218] sm:$0xff]
    %v289 = vld [vmem:[%s2 + $0x220] sm:$0xff]
    %v290 = vld [vmem:[%s2 + $0x228] sm:$0xff]
    %v291 = vld [vmem:[%s2 + $0x230] sm:$0xff]
    %v292 = vld [vmem:[%s2 + $0x238] sm:$0xff]
    %v293 = vld [vmem:[%s2 + $0x240] sm:$0xff]
    %v294 = vld [vmem:[%s2 + $0x248] sm:$0xff]
    %v295 = vld [vmem:[%s2 + $0x250] sm:$0xff]
    %v296 = vld [vmem:[%s2 + $0x258] sm:$0xff]
    %v297 = vld [vmem:[%s2 + $0x260] sm:$0xff]
    %v298 = vld [vmem:[%s2 + $0x268] sm:$0xff]
    %v299 = vld [vmem:[%s2 + $0x270] sm:$0xff]
    %v300 = vld [vmem:[%s2 + $0x278] sm:$0xff]
    %v301 = vld [vmem:[%s2 + $0x280] sm:$0xff]
    %v302 = vld [vmem:[%s2 + $0x288] sm:$0xff]
    %v303 = vld [vmem:[%s2 + $0x290] sm:$0xff]
    %v304 = vld [vmem:[%s2 + $0x298] sm:$0xff]
    %v305 = vld [vmem:[%s2 + $0x2a0] sm:$0xff]
    %v306 = vld [vmem:[%s2 + $0x2a8] sm:$0xff]
    %v307 = vld [vmem:[%s2 + $0x2b0] sm:$0xff]
    %v308 = vld [vmem:[%s2 + $0x2b8] sm:$0xff]
    %v309 = vld [vmem:[%s2 + $0x2c0] sm:$0xff]
    %v310 = vld [vmem:[%s2 + $0x2c8] sm:$0xff]
    %v311 = vld [vmem:[%s2 + $0x2d0] sm:$0xff]
    %v312 = vld [vmem:[%s2 + $0x2d8] sm:$0xff]
    %v313 = vld [vmem:[%s2 + $0x2e0] sm:$0xff]
    %v314 = vld [vmem:[%s2 + $0x2e8] sm:$0xff]
    %v315 = vld [vmem:[%s2 + $0x2f0] sm:$0xff]
    %v316 = vld [vmem:[%s2 + $0x2f8] sm:$0xff]
    %v317 = vld [vmem:[%s2 + $0x300] sm:$0xff]
    %v318 = vld [vmem:[%s2 + $0x308] sm:$0xff]
    %v319 = vld [vmem:[%s2 + $0x310] sm:$0xff]
    %v320 = vld [vmem:[%s2 + $0x318] sm:$0xff]
    %v321 = vld [vmem:[%s2 + $0x320] sm:$0xff]
    %v322 = vld [vmem:[%s2 + $0x328] sm:$0xff]
    %v323 = vld [vmem:[%s2 + $0x330] sm:$0xff]
    %v324 = vld [vmem:[%s2 + $0x338] sm:$0xff]
    %v325 = vld [vmem:[%s2 + $0x340] sm:$0xff]
    %v326 = vld [vmem:[%s2 + $0x348] sm:$0xff]
    %v327 = vld [vmem:[%s2 + $0x350] sm:$0xff]
    %v328 = vld [vmem:[%s2 + $0x358] sm:$0xff]
    %v329 = vld [vmem:[%s2 + $0x360] sm:$0xff]
    %v330 = vld [vmem:[%s2 + $0x368] sm:$0xff]
    %v331 = vld [vmem:[%s2 + $0x370] sm:$0xff]
    %v332 = vld [vmem:[%s2 + $0x378] sm:$0xff]
    %v333 = vld [vmem:[%s2 + $0x380] sm:$0xff]
    %v334 = vld [vmem:[%s2 + $0x388] sm:$0xff]
    %v335 = vld [vmem:[%s2 + $0x390] sm:$0xff]
    %v336 = vld [vmem:[%s2 + $0x398] sm:$0xff]
    %v337 = vld [vmem:[%s2 + $0x3a0] sm:$0xff]
    %v338 = vld [vmem:[%s2 + $0x3a8] sm:$0xff]
    %v339 = vld [vmem:[%s2 + $0x3b0] sm:$0xff]
    %v340 = vld [vmem:[%s2 + $0x3b8] sm:$0xff]
    %v341 = vld [vmem:[%s2 + $0x3c0] sm:$0xff]
    %v342 = vld [vmem:[%s2 + $0x3c8] sm:$0xff]
    %v343 = vld [vmem:[%s2 + $0x3d0] sm:$0xff]
    %v344 = vld [vmem:[%s2 + $0x3d8] sm:$0xff]
    %v345 = vld [vmem:[%s2 + $0x3e0] sm:$0xff]
    %v346 = vld [vmem:[%s2 + $0x3e8] sm:$0xff]
    %v347 = vld [vmem:[%s2 + $0x3f0] sm:$0xff]
    %v348 = vld [vmem:[%s2 + $0x3f8] sm:$0xff]
    %350 = vset.pattern.permute.xlu0 0
    %351 = vperm.xlu0 %350, %v221
    %v352 = vpop.permute.xlu0 %351
    %355 = vset.pattern.permute.xlu0 0
    %356 = vperm.xlu0 %355, %v222
    %v357 = vpop.permute.xlu0 %356
    %360 = vset.pattern.permute.xlu0 0
    %361 = vperm.xlu0 %360, %v223
    %v362 = vpop.permute.xlu0 %361
    %365 = vset.pattern.permute.xlu0 0
    %366 = vperm.xlu0 %365, %v224
    %v367 = vpop.permute.xlu0 %366
    %370 = vset.pattern.permute.xlu0 0
    %371 = vperm.xlu0 %370, %v225
    %v372 = vpop.permute.xlu0 %371
    %375 = vset.pattern.permute.xlu0 0
    %376 = vperm.xlu0 %375, %v226
    %v377 = vpop.permute.xlu0 %376
    %380 = vset.pattern.permute.xlu0 0
    %381 = vperm.xlu0 %380, %v227
    %v382 = vpop.permute.xlu0 %381
    %385 = vset.pattern.permute.xlu0 0
    %386 = vperm.xlu0 %385, %v228
    %v387 = vpop.permute.xlu0 %386
    %390 = vset.pattern.permute.xlu0 0
    %391 = vperm.xlu0 %390, %v229
    %v392 = vpop.permute.xlu0 %391
    %395 = vset.pattern.permute.xlu0 0
    %396 = vperm.xlu0 %395, %v230
    %v397 = vpop.permute.xlu0 %396
    %400 = vset.pattern.permute.xlu0 0
    %401 = vperm.xlu0 %400, %v231
    %v402 = vpop.permute.xlu0 %401
    %405 = vset.pattern.permute.xlu0 0
    %406 = vperm.xlu0 %405, %v232
    %v407 = vpop.permute.xlu0 %406
    %410 = vset.pattern.permute.xlu0 0
    %411 = vperm.xlu0 %410, %v233
    %v412 = vpop.permute.xlu0 %411
    %415 = vset.pattern.permute.xlu0 0
    %416 = vperm.xlu0 %415, %v234
    %v417 = vpop.permute.xlu0 %416
    %420 = vset.pattern.permute.xlu0 0
    %421 = vperm.xlu0 %420, %v235
    %v422 = vpop.permute.xlu0 %421
    %425 = vset.pattern.permute.xlu0 0
    %426 = vperm.xlu0 %425, %v236
    %v427 = vpop.permute.xlu0 %426
    %430 = vset.pattern.permute.xlu0 0
    %431 = vperm.xlu0 %430, %v237
    %v432 = vpop.permute.xlu0 %431
    %435 = vset.pattern.permute.xlu0 0
    %436 = vperm.xlu0 %435, %v238
    %v437 = vpop.permute.xlu0 %436
    %440 = vset.pattern.permute.xlu0 0
    %441 = vperm.xlu0 %440, %v239
    %v442 = vpop.permute.xlu0 %441
    %445 = vset.pattern.permute.xlu0 0
    %446 = vperm.xlu0 %445, %v240
    %v447 = vpop.permute.xlu0 %446
    %450 = vset.pattern.permute.xlu0 0
    %451 = vperm.xlu0 %450, %v241
    %v452 = vpop.permute.xlu0 %451
    %455 = vset.pattern.permute.xlu0 0
    %456 = vperm.xlu0 %455, %v242
    %v457 = vpop.permute.xlu0 %456
    %460 = vset.pattern.permute.xlu0 0
    %461 = vperm.xlu0 %460, %v243
    %v462 = vpop.permute.xlu0 %461
    %465 = vset.pattern.permute.xlu0 0
    %466 = vperm.xlu0 %465, %v244
    %v467 = vpop.permute.xlu0 %466
    %470 = vset.pattern.permute.xlu0 0
    %471 = vperm.xlu0 %470, %v245
    %v472 = vpop.permute.xlu0 %471
    %475 = vset.pattern.permute.xlu0 0
    %476 = vperm.xlu0 %475, %v246
    %v477 = vpop.permute.xlu0 %476
    %480 = vset.pattern.permute.xlu0 0
    %481 = vperm.xlu0 %480, %v247
    %v482 = vpop.permute.xlu0 %481
    %485 = vset.pattern.permute.xlu0 0
    %486 = vperm.xlu0 %485, %v248
    %v487 = vpop.permute.xlu0 %486
    %490 = vset.pattern.permute.xlu0 0
    %491 = vperm.xlu0 %490, %v249
    %v492 = vpop.permute.xlu0 %491
    %495 = vset.pattern.permute.xlu0 0
    %496 = vperm.xlu0 %495, %v250
    %v497 = vpop.permute.xlu0 %496
    %500 = vset.pattern.permute.xlu0 0
    %501 = vperm.xlu0 %500, %v251
    %v502 = vpop.permute.xlu0 %501
    %505 = vset.pattern.permute.xlu0 0
    %506 = vperm.xlu0 %505, %v252
    %v507 = vpop.permute.xlu0 %506
    %510 = vset.pattern.permute.xlu0 0
    %511 = vperm.xlu0 %510, %v253
    %v512 = vpop.permute.xlu0 %511
    %515 = vset.pattern.permute.xlu0 0
    %516 = vperm.xlu0 %515, %v254
    %v517 = vpop.permute.xlu0 %516
    %520 = vset.pattern.permute.xlu0 0
    %521 = vperm.xlu0 %520, %v255
    %v522 = vpop.permute.xlu0 %521
    %525 = vset.pattern.permute.xlu0 0
    %526 = vperm.xlu0 %525, %v256
    %v527 = vpop.permute.xlu0 %526
    %530 = vset.pattern.permute.xlu0 0
    %531 = vperm.xlu0 %530, %v257
    %v532 = vpop.permute.xlu0 %531
    %535 = vset.pattern.permute.xlu0 0
    %536 = vperm.xlu0 %535, %v258
    %v537 = vpop.permute.xlu0 %536
    %540 = vset.pattern.permute.xlu0 0
    %541 = vperm.xlu0 %540, %v259
    %v542 = vpop.permute.xlu0 %541
    %545 = vset.pattern.permute.xlu0 0
    %546 = vperm.xlu0 %545, %v260
    %v547 = vpop.permute.xlu0 %546
    %550 = vset.pattern.permute.xlu0 0
    %551 = vperm.xlu0 %550, %v261
    %v552 = vpop.permute.xlu0 %551
    %555 = vset.pattern.permute.xlu0 0
    %556 = vperm.xlu0 %555, %v262
    %v557 = vpop.permute.xlu0 %556
    %560 = vset.pattern.permute.xlu0 0
    %561 = vperm.xlu0 %560, %v263
    %v562 = vpop.permute.xlu0 %561
    %565 = vset.pattern.permute.xlu0 0
    %566 = vperm.xlu0 %565, %v264
    %v567 = vpop.permute.xlu0 %566
    %570 = vset.pattern.permute.xlu0 0
    %571 = vperm.xlu0 %570, %v265
    %v572 = vpop.permute.xlu0 %571
    %575 = vset.pattern.permute.xlu0 0
    %576 = vperm.xlu0 %575, %v266
    %v577 = vpop.permute.xlu0 %576
    %580 = vset.pattern.permute.xlu0 0
    %581 = vperm.xlu0 %580, %v267
    %v582 = vpop.permute.xlu0 %581
    %585 = vset.pattern.permute.xlu0 0
    %586 = vperm.xlu0 %585, %v268
    %v587 = vpop.permute.xlu0 %586
    %590 = vset.pattern.permute.xlu0 0
    %591 = vperm.xlu0 %590, %v269
    %v592 = vpop.permute.xlu0 %591
    %595 = vset.pattern.permute.xlu0 0
    %596 = vperm.xlu0 %595, %v270
    %v597 = vpop.permute.xlu0 %596
    %600 = vset.pattern.permute.xlu0 0
    %601 = vperm.xlu0 %600, %v271
    %v602 = vpop.permute.xlu0 %601
    %605 = vset.pattern.permute.xlu0 0
    %606 = vperm.xlu0 %605, %v272
    %v607 = vpop.permute.xlu0 %606
    %610 = vset.pattern.permute.xlu0 0
    %611 = vperm.xlu0 %610, %v273
    %v612 = vpop.permute.xlu0 %611
    %615 = vset.pattern.permute.xlu0 0
    %616 = vperm.xlu0 %615, %v274
    %v617 = vpop.permute.xlu0 %616
    %620 = vset.pattern.permute.xlu0 0
    %621 = vperm.xlu0 %620, %v275
    %v622 = vpop.permute.xlu0 %621
    %625 = vset.pattern.permute.xlu0 0
    %626 = vperm.xlu0 %625, %v276
    %v627 = vpop.permute.xlu0 %626
    %630 = vset.pattern.permute.xlu0 0
    %631 = vperm.xlu0 %630, %v277
    %v632 = vpop.permute.xlu0 %631
    %635 = vset.pattern.permute.xlu0 0
    %636 = vperm.xlu0 %635, %v278
    %v637 = vpop.permute.xlu0 %636
    %640 = vset.pattern.permute.xlu0 0
    %641 = vperm.xlu0 %640, %v279
    %v642 = vpop.permute.xlu0 %641
    %645 = vset.pattern.permute.xlu0 0
    %646 = vperm.xlu0 %645, %v280
    %v647 = vpop.permute.xlu0 %646
    %650 = vset.pattern.permute.xlu0 0
    %651 = vperm.xlu0 %650, %v281
    %v652 = vpop.permute.xlu0 %651
    %655 = vset.pattern.permute.xlu0 0
    %656 = vperm.xlu0 %655, %v282
    %v657 = vpop.permute.xlu0 %656
    %660 = vset.pattern.permute.xlu0 0
    %661 = vperm.xlu0 %660, %v283
    %v662 = vpop.permute.xlu0 %661
    %665 = vset.pattern.permute.xlu0 0
    %666 = vperm.xlu0 %665, %v284
    %v667 = vpop.permute.xlu0 %666
    %670 = vset.pattern.permute.xlu0 0
    %671 = vperm.xlu0 %670, %v285
    %v672 = vpop.permute.xlu0 %671
    %675 = vset.pattern.permute.xlu0 0
    %676 = vperm.xlu0 %675, %v286
    %v677 = vpop.permute.xlu0 %676
    %680 = vset.pattern.permute.xlu0 0
    %681 = vperm.xlu0 %680, %v287
    %v682 = vpop.permute.xlu0 %681
    %685 = vset.pattern.permute.xlu0 0
    %686 = vperm.xlu0 %685, %v288
    %v687 = vpop.permute.xlu0 %686
    %690 = vset.pattern.permute.xlu0 0
    %691 = vperm.xlu0 %690, %v289
    %v692 = vpop.permute.xlu0 %691
    %695 = vset.pattern.permute.xlu0 0
    %696 = vperm.xlu0 %695, %v290
    %v697 = vpop.permute.xlu0 %696
    %700 = vset.pattern.permute.xlu0 0
    %701 = vperm.xlu0 %700, %v291
    %v702 = vpop.permute.xlu0 %701
    %705 = vset.pattern.permute.xlu0 0
    %706 = vperm.xlu0 %705, %v292
    %v707 = vpop.permute.xlu0 %706
    %710 = vset.pattern.permute.xlu0 0
    %711 = vperm.xlu0 %710, %v293
    %v712 = vpop.permute.xlu0 %711
    %715 = vset.pattern.permute.xlu0 0
    %716 = vperm.xlu0 %715, %v294
    %v717 = vpop.permute.xlu0 %716
    %720 = vset.pattern.permute.xlu0 0
    %721 = vperm.xlu0 %720, %v295
    %v722 = vpop.permute.xlu0 %721
    %725 = vset.pattern.permute.xlu0 0
    %726 = vperm.xlu0 %725, %v296
    %v727 = vpop.permute.xlu0 %726
    %730 = vset.pattern.permute.xlu0 0
    %731 = vperm.xlu0 %730, %v297
    %v732 = vpop.permute.xlu0 %731
    %735 = vset.pattern.permute.xlu0 0
    %736 = vperm.xlu0 %735, %v298
    %v737 = vpop.permute.xlu0 %736
    %740 = vset.pattern.permute.xlu0 0
    %741 = vperm.xlu0 %740, %v299
    %v742 = vpop.permute.xlu0 %741
    %745 = vset.pattern.permute.xlu0 0
    %746 = vperm.xlu0 %745, %v300
    %v747 = vpop.permute.xlu0 %746
    %750 = vset.pattern.permute.xlu0 0
    %751 = vperm.xlu0 %750, %v301
    %v752 = vpop.permute.xlu0 %751
    %755 = vset.pattern.permute.xlu0 0
    %756 = vperm.xlu0 %755, %v302
    %v757 = vpop.permute.xlu0 %756
    %760 = vset.pattern.permute.xlu0 0
    %761 = vperm.xlu0 %760, %v303
    %v762 = vpop.permute.xlu0 %761
    %765 = vset.pattern.permute.xlu0 0
    %766 = vperm.xlu0 %765, %v304
    %v767 = vpop.permute.xlu0 %766
    %770 = vset.pattern.permute.xlu0 0
    %771 = vperm.xlu0 %770, %v305
    %v772 = vpop.permute.xlu0 %771
    %775 = vset.pattern.permute.xlu0 0
    %776 = vperm.xlu0 %775, %v306
    %v777 = vpop.permute.xlu0 %776
    %780 = vset.pattern.permute.xlu0 0
    %781 = vperm.xlu0 %780, %v307
    %v782 = vpop.permute.xlu0 %781
    %785 = vset.pattern.permute.xlu0 0
    %786 = vperm.xlu0 %785, %v308
    %v787 = vpop.permute.xlu0 %786
    %790 = vset.pattern.permute.xlu0 0
    %791 = vperm.xlu0 %790, %v309
    %v792 = vpop.permute.xlu0 %791
    %795 = vset.pattern.permute.xlu0 0
    %796 = vperm.xlu0 %795, %v310
    %v797 = vpop.permute.xlu0 %796
    %800 = vset.pattern.permute.xlu0 0
    %801 = vperm.xlu0 %800, %v311
    %v802 = vpop.permute.xlu0 %801
    %805 = vset.pattern.permute.xlu0 0
    %806 = vperm.xlu0 %805, %v312
    %v807 = vpop.permute.xlu0 %806
    %810 = vset.pattern.permute.xlu0 0
    %811 = vperm.xlu0 %810, %v313
    %v812 = vpop.permute.xlu0 %811
    %815 = vset.pattern.permute.xlu0 0
    %816 = vperm.xlu0 %815, %v314
    %v817 = vpop.permute.xlu0 %816
    %820 = vset.pattern.permute.xlu0 0
    %821 = vperm.xlu0 %820, %v315
    %v822 = vpop.permute.xlu0 %821
    %825 = vset.pattern.permute.xlu0 0
    %826 = vperm.xlu0 %825, %v316
    %v827 = vpop.permute.xlu0 %826
    %830 = vset.pattern.permute.xlu0 0
    %831 = vperm.xlu0 %830, %v317
    %v832 = vpop.permute.xlu0 %831
    %835 = vset.pattern.permute.xlu0 0
    %836 = vperm.xlu0 %835, %v318
    %v837 = vpop.permute.xlu0 %836
    %840 = vset.pattern.permute.xlu0 0
    %841 = vperm.xlu0 %840, %v319
    %v842 = vpop.permute.xlu0 %841
    %845 = vset.pattern.permute.xlu0 0
    %846 = vperm.xlu0 %845, %v320
    %v847 = vpop.permute.xlu0 %846
    %850 = vset.pattern.permute.xlu0 0
    %851 = vperm.xlu0 %850, %v321
    %v852 = vpop.permute.xlu0 %851
    %855 = vset.pattern.permute.xlu0 0
    %856 = vperm.xlu0 %855, %v322
    %v857 = vpop.permute.xlu0 %856
    %860 = vset.pattern.permute.xlu0 0
    %861 = vperm.xlu0 %860, %v323
    %v862 = vpop.permute.xlu0 %861
    %865 = vset.pattern.permute.xlu0 0
    %866 = vperm.xlu0 %865, %v324
    %v867 = vpop.permute.xlu0 %866
    %870 = vset.pattern.permute.xlu0 0
    %871 = vperm.xlu0 %870, %v325
    %v872 = vpop.permute.xlu0 %871
    %875 = vset.pattern.permute.xlu0 0
    %876 = vperm.xlu0 %875, %v326
    %v877 = vpop.permute.xlu0 %876
    %880 = vset.pattern.permute.xlu0 0
    %881 = vperm.xlu0 %880, %v327
    %v882 = vpop.permute.xlu0 %881
    %885 = vset.pattern.permute.xlu0 0
    %886 = vperm.xlu0 %885, %v328
    %v887 = vpop.permute.xlu0 %886
    %890 = vset.pattern.permute.xlu0 0
    %891 = vperm.xlu0 %890, %v329
    %v892 = vpop.permute.xlu0 %891
    %895 = vset.pattern.permute.xlu0 0
    %896 = vperm.xlu0 %895, %v330
    %v897 = vpop.permute.xlu0 %896
    %900 = vset.pattern.permute.xlu0 0
    %901 = vperm.xlu0 %900, %v331
    %v902 = vpop.permute.xlu0 %901
    %905 = vset.pattern.permute.xlu0 0
    %906 = vperm.xlu0 %905, %v332
    %v907 = vpop.permute.xlu0 %906
    %910 = vset.pattern.permute.xlu0 0
    %911 = vperm.xlu0 %910, %v333
    %v912 = vpop.permute.xlu0 %911
    %915 = vset.pattern.permute.xlu0 0
    %916 = vperm.xlu0 %915, %v334
    %v917 = vpop.permute.xlu0 %916
    %920 = vset.pattern.permute.xlu0 0
    %921 = vperm.xlu0 %920, %v335
    %v922 = vpop.permute.xlu0 %921
    %925 = vset.pattern.permute.xlu0 0
    %926 = vperm.xlu0 %925, %v336
    %v927 = vpop.permute.xlu0 %926
    %930 = vset.pattern.permute.xlu0 0
    %931 = vperm.xlu0 %930, %v337
    %v932 = vpop.permute.xlu0 %931
    %935 = vset.pattern.permute.xlu0 0
    %936 = vperm.xlu0 %935, %v338
    %v937 = vpop.permute.xlu0 %936
    %940 = vset.pattern.permute.xlu0 0
    %941 = vperm.xlu0 %940, %v339
    %v942 = vpop.permute.xlu0 %941
    %945 = vset.pattern.permute.xlu0 0
    %946 = vperm.xlu0 %945, %v340
    %v947 = vpop.permute.xlu0 %946
    %950 = vset.pattern.permute.xlu0 0
    %951 = vperm.xlu0 %950, %v341
    %v952 = vpop.permute.xlu0 %951
    %955 = vset.pattern.permute.xlu0 0
    %956 = vperm.xlu0 %955, %v342
    %v957 = vpop.permute.xlu0 %956
    %960 = vset.pattern.permute.xlu0 0
    %961 = vperm.xlu0 %960, %v343
    %v962 = vpop.permute.xlu0 %961
    %965 = vset.pattern.permute.xlu0 0
    %966 = vperm.xlu0 %965, %v344
    %v967 = vpop.permute.xlu0 %966
    %970 = vset.pattern.permute.xlu0 0
    %971 = vperm.xlu0 %970, %v345
    %v972 = vpop.permute.xlu0 %971
    %975 = vset.pattern.permute.xlu0 0
    %976 = vperm.xlu0 %975, %v346
    %v977 = vpop.permute.xlu0 %976
    %980 = vset.pattern.permute.xlu0 0
    %981 = vperm.xlu0 %980, %v347
    %v982 = vpop.permute.xlu0 %981
    %985 = vset.pattern.permute.xlu0 0
    %986 = vperm.xlu0 %985, %v348
    %v987 = vpop.permute.xlu0 %986
    %v1117 = vunpack.c.l.b16 %v77
    %v1118 = vunpack.c.l.b16 %v78
    %v1119 = vunpack.c.l.b16 %v79
    %v1120 = vunpack.c.l.b16 %v80
    %v1121 = vunpack.c.l.b16 %v81
    %v1122 = vunpack.c.l.b16 %v82
    %v1123 = vunpack.c.l.b16 %v83
    %v1124 = vunpack.c.l.b16 %v84
    %v1125 = vunpack.c.l.b16 %v85
    %v1126 = vunpack.c.l.b16 %v86
    %v1127 = vunpack.c.l.b16 %v87
    %v1128 = vunpack.c.l.b16 %v88
    %v1129 = vunpack.c.l.b16 %v89
    %v1130 = vunpack.c.l.b16 %v90
    %v1131 = vunpack.c.l.b16 %v91
    %v1132 = vunpack.c.l.b16 %v92
    %v1133 = vunpack.c.l.b16 %v93
    %v1134 = vunpack.c.l.b16 %v94
    %v1135 = vunpack.c.l.b16 %v95
    %v1136 = vunpack.c.l.b16 %v96
    %v1137 = vunpack.c.l.b16 %v97
    %v1138 = vunpack.c.l.b16 %v98
    %v1139 = vunpack.c.l.b16 %v99
    %v1140 = vunpack.c.l.b16 %v100
    %v1141 = vunpack.c.l.b16 %v101
    %v1142 = vunpack.c.l.b16 %v102
    %v1143 = vunpack.c.l.b16 %v103
    %v1144 = vunpack.c.l.b16 %v104
    %v1145 = vunpack.c.l.b16 %v105
    %v1146 = vunpack.c.l.b16 %v106
    %v1147 = vunpack.c.l.b16 %v107
    %v1148 = vunpack.c.l.b16 %v108
    %v1149 = vunpack.c.l.b16 %v109
    %v1150 = vunpack.c.l.b16 %v110
    %v1151 = vunpack.c.l.b16 %v111
    %v1152 = vunpack.c.l.b16 %v112
    %v1153 = vunpack.c.l.b16 %v113
    %v1154 = vunpack.c.l.b16 %v114
    %v1155 = vunpack.c.l.b16 %v115
    %v1156 = vunpack.c.l.b16 %v116
    %v1157 = vunpack.c.l.b16 %v117
    %v1158 = vunpack.c.l.b16 %v118
    %v1159 = vunpack.c.l.b16 %v119
    %v1160 = vunpack.c.l.b16 %v120
    %v1161 = vunpack.c.l.b16 %v121
    %v1162 = vunpack.c.l.b16 %v122
    %v1163 = vunpack.c.l.b16 %v123
    %v1164 = vunpack.c.l.b16 %v124
    %v1165 = vunpack.c.l.b16 %v125
    %v1166 = vunpack.c.l.b16 %v126
    %v1167 = vunpack.c.l.b16 %v127
    %v1168 = vunpack.c.l.b16 %v128
    %v1169 = vunpack.c.l.b16 %v129
    %v1170 = vunpack.c.l.b16 %v130
    %v1171 = vunpack.c.l.b16 %v131
    %v1172 = vunpack.c.l.b16 %v132
    %v1173 = vunpack.c.l.b16 %v133
    %v1174 = vunpack.c.l.b16 %v134
    %v1175 = vunpack.c.l.b16 %v135
    %v1176 = vunpack.c.l.b16 %v136
    %v1177 = vunpack.c.l.b16 %v137
    %v1178 = vunpack.c.l.b16 %v138
    %v1179 = vunpack.c.l.b16 %v139
    %v1180 = vunpack.c.l.b16 %v140
    %v1181 = vunpack.c.l.b16 %v141
    %v1182 = vunpack.c.l.b16 %v142
    %v1183 = vunpack.c.l.b16 %v143
    %v1184 = vunpack.c.l.b16 %v144
    %v1185 = vunpack.c.l.b16 %v145
    %v1186 = vunpack.c.l.b16 %v146
    %v1187 = vunpack.c.l.b16 %v147
    %v1188 = vunpack.c.l.b16 %v148
    %v1189 = vunpack.c.l.b16 %v149
    %v1190 = vunpack.c.l.b16 %v150
    %v1191 = vunpack.c.l.b16 %v151
    %v1192 = vunpack.c.l.b16 %v152
    %v1193 = vunpack.c.l.b16 %v153
    %v1194 = vunpack.c.l.b16 %v154
    %v1195 = vunpack.c.l.b16 %v155
    %v1196 = vunpack.c.l.b16 %v156
    %v1197 = vunpack.c.l.b16 %v157
    %v1198 = vunpack.c.l.b16 %v158
    %v1199 = vunpack.c.l.b16 %v159
    %v1200 = vunpack.c.l.b16 %v160
    %v1201 = vunpack.c.l.b16 %v161
    %v1202 = vunpack.c.l.b16 %v162
    %v1203 = vunpack.c.l.b16 %v163
    %v1204 = vunpack.c.l.b16 %v164
    %v1205 = vunpack.c.l.b16 %v165
    %v1206 = vunpack.c.l.b16 %v166
    %v1207 = vunpack.c.l.b16 %v167
    %v1208 = vunpack.c.l.b16 %v168
    %v1209 = vunpack.c.l.b16 %v169
    %v1210 = vunpack.c.l.b16 %v170
    %v1211 = vunpack.c.l.b16 %v171
    %v1212 = vunpack.c.l.b16 %v172
    %v1213 = vunpack.c.l.b16 %v173
    %v1214 = vunpack.c.l.b16 %v174
    %v1215 = vunpack.c.l.b16 %v175
    %v1216 = vunpack.c.l.b16 %v176
    %v1217 = vunpack.c.l.b16 %v177
    %v1218 = vunpack.c.l.b16 %v178
    %v1219 = vunpack.c.l.b16 %v179
    %v1220 = vunpack.c.l.b16 %v180
    %v1221 = vunpack.c.l.b16 %v181
    %v1222 = vunpack.c.l.b16 %v182
    %v1223 = vunpack.c.l.b16 %v183
    %v1224 = vunpack.c.l.b16 %v184
    %v1225 = vunpack.c.l.b16 %v185
    %v1226 = vunpack.c.l.b16 %v186
    %v1227 = vunpack.c.l.b16 %v187
    %v1228 = vunpack.c.l.b16 %v188
    %v1229 = vunpack.c.l.b16 %v189
    %v1230 = vunpack.c.l.b16 %v190
    %v1231 = vunpack.c.l.b16 %v191
    %v1232 = vunpack.c.l.b16 %v192
    %v1233 = vunpack.c.l.b16 %v193
    %v1234 = vunpack.c.l.b16 %v194
    %v1235 = vunpack.c.l.b16 %v195
    %v1236 = vunpack.c.l.b16 %v196
    %v1237 = vunpack.c.l.b16 %v197
    %v1238 = vunpack.c.l.b16 %v198
    %v1239 = vunpack.c.l.b16 %v199
    %v1240 = vunpack.c.l.b16 %v200
    %v1241 = vunpack.c.l.b16 %v201
    %v1242 = vunpack.c.l.b16 %v202
    %v1243 = vunpack.c.l.b16 %v203
    %v1244 = vunpack.c.l.b16 %v204
    %v1245 = vpack.c.b16 %v1118, %v1117
    %v1246 = vpack.c.b16 %v1120, %v1119
    %v1247 = vpack.c.b16 %v1122, %v1121
    %v1248 = vpack.c.b16 %v1124, %v1123
    %v1249 = vpack.c.b16 %v1126, %v1125
    %v1250 = vpack.c.b16 %v1128, %v1127
    %v1251 = vpack.c.b16 %v1130, %v1129
    %v1252 = vpack.c.b16 %v1132, %v1131
    %v1253 = vpack.c.b16 %v1134, %v1133
    %v1254 = vpack.c.b16 %v1136, %v1135
    %v1255 = vpack.c.b16 %v1138, %v1137
    %v1256 = vpack.c.b16 %v1140, %v1139
    %v1257 = vpack.c.b16 %v1142, %v1141
    %v1258 = vpack.c.b16 %v1144, %v1143
    %v1259 = vpack.c.b16 %v1146, %v1145
    %v1260 = vpack.c.b16 %v1148, %v1147
    %v1261 = vpack.c.b16 %v1150, %v1149
    %v1262 = vpack.c.b16 %v1152, %v1151
    %v1263 = vpack.c.b16 %v1154, %v1153
    %v1264 = vpack.c.b16 %v1156, %v1155
    %v1265 = vpack.c.b16 %v1158, %v1157
    %v1266 = vpack.c.b16 %v1160, %v1159
    %v1267 = vpack.c.b16 %v1162, %v1161
    %v1268 = vpack.c.b16 %v1164, %v1163
    %v1269 = vpack.c.b16 %v1166, %v1165
    %v1270 = vpack.c.b16 %v1168, %v1167
    %v1271 = vpack.c.b16 %v1170, %v1169
    %v1272 = vpack.c.b16 %v1172, %v1171
    %v1273 = vpack.c.b16 %v1174, %v1173
    %v1274 = vpack.c.b16 %v1176, %v1175
    %v1275 = vpack.c.b16 %v1178, %v1177
    %v1276 = vpack.c.b16 %v1180, %v1179
    %v1277 = vpack.c.b16 %v1182, %v1181
    %v1278 = vpack.c.b16 %v1184, %v1183
    %v1279 = vpack.c.b16 %v1186, %v1185
    %v1280 = vpack.c.b16 %v1188, %v1187
    %v1281 = vpack.c.b16 %v1190, %v1189
    %v1282 = vpack.c.b16 %v1192, %v1191
    %v1283 = vpack.c.b16 %v1194, %v1193
    %v1284 = vpack.c.b16 %v1196, %v1195
    %v1285 = vpack.c.b16 %v1198, %v1197
    %v1286 = vpack.c.b16 %v1200, %v1199
    %v1287 = vpack.c.b16 %v1202, %v1201
    %v1288 = vpack.c.b16 %v1204, %v1203
    %v1289 = vpack.c.b16 %v1206, %v1205
    %v1290 = vpack.c.b16 %v1208, %v1207
    %v1291 = vpack.c.b16 %v1210, %v1209
    %v1292 = vpack.c.b16 %v1212, %v1211
    %v1293 = vpack.c.b16 %v1214, %v1213
    %v1294 = vpack.c.b16 %v1216, %v1215
    %v1295 = vpack.c.b16 %v1218, %v1217
    %v1296 = vpack.c.b16 %v1220, %v1219
    %v1297 = vpack.c.b16 %v1222, %v1221
    %v1298 = vpack.c.b16 %v1224, %v1223
    %v1299 = vpack.c.b16 %v1226, %v1225
    %v1300 = vpack.c.b16 %v1228, %v1227
    %v1301 = vpack.c.b16 %v1230, %v1229
    %v1302 = vpack.c.b16 %v1232, %v1231
    %v1303 = vpack.c.b16 %v1234, %v1233
    %v1304 = vpack.c.b16 %v1236, %v1235
    %v1305 = vpack.c.b16 %v1238, %v1237
    %v1306 = vpack.c.b16 %v1240, %v1239
    %v1307 = vpack.c.b16 %v1242, %v1241
    %v1308 = vpack.c.b16 %v1244, %v1243
    %v1389 = vunpack.c.l.b16 %v205
    %v1390 = vunpack.c.l.b16 %v206
    %v1391 = vunpack.c.l.b16 %v207
    %v1392 = vunpack.c.l.b16 %v208
    %v1393 = vunpack.c.l.b16 %v209
    %v1394 = vunpack.c.l.b16 %v210
    %v1395 = vunpack.c.l.b16 %v211
    %v1396 = vunpack.c.l.b16 %v212
    %v1397 = vunpack.c.l.b16 %v213
    %v1398 = vunpack.c.l.b16 %v214
    %v1399 = vunpack.c.l.b16 %v215
    %v1400 = vunpack.c.l.b16 %v216
    %v1401 = vunpack.c.l.b16 %v217
    %v1402 = vunpack.c.l.b16 %v218
    %v1403 = vunpack.c.l.b16 %v219
    %v1404 = vunpack.c.l.b16 %v220
    %v1405 = vpack.c.b16 %v1390, %v1389
    %v1406 = vpack.c.b16 %v1392, %v1391
    %v1407 = vpack.c.b16 %v1394, %v1393
    %v1408 = vpack.c.b16 %v1396, %v1395
    %v1409 = vpack.c.b16 %v1398, %v1397
    %v1410 = vpack.c.b16 %v1400, %v1399
    %v1411 = vpack.c.b16 %v1402, %v1401
    %v1412 = vpack.c.b16 %v1404, %v1403
    %1421 = vmatprep.subr.bf16.mxu0 0
    %1422 = vmatpush1.bf16.msra.mxu0 %v1412
    %1423 = vmatprep.subr.bf16.mxu0 0
    %1424 = vmatpush1.bf16.msra.mxu0 %v1411
    %1425 = vmatprep.subr.bf16.mxu0 0
    %1426 = vmatpush1.bf16.msra.mxu0 %v1410
    %1427 = vmatprep.subr.bf16.mxu0 0
    %1428 = vmatpush1.bf16.msra.mxu0 %v1409
    %1429 = vmatprep.subr.bf16.mxu0 0
    %1430 = vmatpush1.bf16.msra.mxu0 %v1408
    %1431 = vmatprep.subr.bf16.mxu0 0
    %1432 = vmatpush1.bf16.msra.mxu0 %v1407
    %1433 = vmatprep.subr.bf16.mxu0 0
    %1434 = vmatpush1.bf16.msra.mxu0 %v1406
    %1435 = vmatprep.subr.bf16.mxu0 0
    %1436 = vmatpush1.bf16.msra.mxu0 %v1405
    %1437 = vmatprep.subr.bf16.mxu0 0
    %1438 = vmatpush2.bf16.msra.mxu0 0
    %1439 = vmatprep.subr.bf16.mxu0 0
    %1440 = vmatpush2.bf16.msra.mxu0 0
    %1441 = vmatprep.subr.bf16.mxu0 0
    %1442 = vmatpush2.bf16.msra.mxu0 0
    %1443 = vmatprep.subr.bf16.mxu0 0
    %1444 = vmatpush2.bf16.msra.mxu0 0
    %1445 = vmatprep.subr.bf16.mxu0 0
    %1446 = vmatpush2.bf16.msra.mxu0 0
    %1447 = vmatprep.subr.bf16.mxu0 0
    %1448 = vmatpush2.bf16.msra.mxu0 0
    %1449 = vmatprep.subr.bf16.mxu0 0
    %1450 = vmatpush2.bf16.msra.mxu0 0
    %1451 = vmatprep.subr.bf16.mxu0 0
    %1452 = vmatpush2.bf16.msra.mxu0 0
    %1453 = vmatprep.mubr.bf16.mxu0 0
    %1454 = vmatmul.mubr.bf16.gmra.mxu0 %v1245
    %v1455 = vpop.f32.mrf.mxu0
    %v1456 = vadd.f32 %v352, %v1455
    %v1457 = vpop.f32.mrf.mxu0
    %v1458 = vpop.f32.mrf.mxu0
    %v1459 = vadd.f32 %v357, %v1458
    %v1460 = vpop.f32.mrf.mxu0
    %1461 = vmatprep.mubr.bf16.mxu0 0
    %1462 = vmatmul.mubr.bf16.gmra.mxu0 %v1246
    %v1463 = vpop.f32.mrf.mxu0
    %v1464 = vadd.f32 %v362, %v1463
    %v1465 = vpop.f32.mrf.mxu0
    %v1466 = vpop.f32.mrf.mxu0
    %v1467 = vadd.f32 %v367, %v1466
    %v1468 = vpop.f32.mrf.mxu0
    %1469 = vmatprep.mubr.bf16.mxu0 0
    %1470 = vmatmul.mubr.bf16.gmra.mxu0 %v1247
    %v1471 = vpop.f32.mrf.mxu0
    %v1472 = vadd.f32 %v372, %v1471
    %v1473 = vpop.f32.mrf.mxu0
    %v1474 = vpop.f32.mrf.mxu0
    %v1475 = vadd.f32 %v377, %v1474
    %v1476 = vpop.f32.mrf.mxu0
    %1477 = vmatprep.mubr.bf16.mxu0 0
    %1478 = vmatmul.mubr.bf16.gmra.mxu0 %v1248
    %v1479 = vpop.f32.mrf.mxu0
    %v1480 = vadd.f32 %v382, %v1479
    %v1481 = vpop.f32.mrf.mxu0
    %v1482 = vpop.f32.mrf.mxu0
    %v1483 = vadd.f32 %v387, %v1482
    %v1484 = vpop.f32.mrf.mxu0
    %1485 = vmatprep.mubr.bf16.mxu0 0
    %1486 = vmatmul.mubr.bf16.gmra.mxu0 %v1249
    %v1487 = vpop.f32.mrf.mxu0
    %v1488 = vadd.f32 %v392, %v1487
    %v1489 = vpop.f32.mrf.mxu0
    %v1490 = vpop.f32.mrf.mxu0
    %v1491 = vadd.f32 %v397, %v1490
    %v1492 = vpop.f32.mrf.mxu0
    %1493 = vmatprep.mubr.bf16.mxu0 0
    %1494 = vmatmul.mubr.bf16.gmra.mxu0 %v1250
    %v1495 = vpop.f32.mrf.mxu0
    %v1496 = vadd.f32 %v402, %v1495
    %v1497 = vpop.f32.mrf.mxu0
    %v1498 = vpop.f32.mrf.mxu0
    %v1499 = vadd.f32 %v407, %v1498
    %v1500 = vpop.f32.mrf.mxu0
    %1501 = vmatprep.mubr.bf16.mxu0 0
    %1502 = vmatmul.mubr.bf16.gmra.mxu0 %v1251
    %v1503 = vpop.f32.mrf.mxu0
    %v1504 = vadd.f32 %v412, %v1503
    %v1505 = vpop.f32.mrf.mxu0
    %v1506 = vpop.f32.mrf.mxu0
    %v1507 = vadd.f32 %v417, %v1506
    %v1508 = vpop.f32.mrf.mxu0
    %1509 = vmatprep.mubr.bf16.mxu0 0
    %1510 = vmatmul.mubr.bf16.gmra.mxu0 %v1252
    %v1511 = vpop.f32.mrf.mxu0
    %v1512 = vadd.f32 %v422, %v1511
    %v1513 = vpop.f32.mrf.mxu0
    %v1514 = vpop.f32.mrf.mxu0
    %v1515 = vadd.f32 %v427, %v1514
    %v1516 = vpop.f32.mrf.mxu0
    %1517 = vmatprep.mubr.bf16.mxu0 0
    %1518 = vmatmul.mubr.bf16.gmra.mxu0 %v1253
    %v1519 = vpop.f32.mrf.mxu0
    %v1520 = vadd.f32 %v432, %v1519
    %v1521 = vpop.f32.mrf.mxu0
    %v1522 = vpop.f32.mrf.mxu0
    %v1523 = vadd.f32 %v437, %v1522
    %v1524 = vpop.f32.mrf.mxu0
    %1525 = vmatprep.mubr.bf16.mxu0 0
    %1526 = vmatmul.mubr.bf16.gmra.mxu0 %v1254
    %v1527 = vpop.f32.mrf.mxu0
    %v1528 = vadd.f32 %v442, %v1527
    %v1529 = vpop.f32.mrf.mxu0
    %v1530 = vpop.f32.mrf.mxu0
    %v1531 = vadd.f32 %v447, %v1530
    %v1532 = vpop.f32.mrf.mxu0
    %1533 = vmatprep.mubr.bf16.mxu0 0
    %1534 = vmatmul.mubr.bf16.gmra.mxu0 %v1255
    %v1535 = vpop.f32.mrf.mxu0
    %v1536 = vadd.f32 %v452, %v1535
    %v1537 = vpop.f32.mrf.mxu0
    %v1538 = vpop.f32.mrf.mxu0
    %v1539 = vadd.f32 %v457, %v1538
    %v1540 = vpop.f32.mrf.mxu0
    %1541 = vmatprep.mubr.bf16.mxu0 0
    %1542 = vmatmul.mubr.bf16.gmra.mxu0 %v1256
    %v1543 = vpop.f32.mrf.mxu0
    %v1544 = vadd.f32 %v462, %v1543
    %v1545 = vpop.f32.mrf.mxu0
    %v1546 = vpop.f32.mrf.mxu0
    %v1547 = vadd.f32 %v467, %v1546
    %v1548 = vpop.f32.mrf.mxu0
    %1549 = vmatprep.mubr.bf16.mxu0 0
    %1550 = vmatmul.mubr.bf16.gmra.mxu0 %v1257
    %v1551 = vpop.f32.mrf.mxu0
    %v1552 = vadd.f32 %v472, %v1551
    %v1553 = vpop.f32.mrf.mxu0
    %v1554 = vpop.f32.mrf.mxu0
    %v1555 = vadd.f32 %v477, %v1554
    %v1556 = vpop.f32.mrf.mxu0
    %1557 = vmatprep.mubr.bf16.mxu0 0
    %1558 = vmatmul.mubr.bf16.gmra.mxu0 %v1258
    %v1559 = vpop.f32.mrf.mxu0
    %v1560 = vadd.f32 %v482, %v1559
    %v1561 = vpop.f32.mrf.mxu0
    %v1562 = vpop.f32.mrf.mxu0
    %v1563 = vadd.f32 %v487, %v1562
    %v1564 = vpop.f32.mrf.mxu0
    %1565 = vmatprep.mubr.bf16.mxu0 0
    %1566 = vmatmul.mubr.bf16.gmra.mxu0 %v1259
    %v1567 = vpop.f32.mrf.mxu0
    %v1568 = vadd.f32 %v492, %v1567
    %v1569 = vpop.f32.mrf.mxu0
    %v1570 = vpop.f32.mrf.mxu0
    %v1571 = vadd.f32 %v497, %v1570
    %v1572 = vpop.f32.mrf.mxu0
    %1573 = vmatprep.mubr.bf16.mxu0 0
    %1574 = vmatmul.mubr.bf16.gmra.mxu0 %v1260
    %v1575 = vpop.f32.mrf.mxu0
    %v1576 = vadd.f32 %v502, %v1575
    %v1577 = vpop.f32.mrf.mxu0
    %v1578 = vpop.f32.mrf.mxu0
    %v1579 = vadd.f32 %v507, %v1578
    %v1580 = vpop.f32.mrf.mxu0
    %1581 = vmatprep.mubr.bf16.mxu0 0
    %1582 = vmatmul.mubr.bf16.gmra.mxu0 %v1261
    %v1583 = vpop.f32.mrf.mxu0
    %v1584 = vadd.f32 %v512, %v1583
    %v1585 = vpop.f32.mrf.mxu0
    %v1586 = vpop.f32.mrf.mxu0
    %v1587 = vadd.f32 %v517, %v1586
    %v1588 = vpop.f32.mrf.mxu0
    %1589 = vmatprep.mubr.bf16.mxu0 0
    %1590 = vmatmul.mubr.bf16.gmra.mxu0 %v1262
    %v1591 = vpop.f32.mrf.mxu0
    %v1592 = vadd.f32 %v522, %v1591
    %v1593 = vpop.f32.mrf.mxu0
    %v1594 = vpop.f32.mrf.mxu0
    %v1595 = vadd.f32 %v527, %v1594
    %v1596 = vpop.f32.mrf.mxu0
    %1597 = vmatprep.mubr.bf16.mxu0 0
    %1598 = vmatmul.mubr.bf16.gmra.mxu0 %v1263
    %v1599 = vpop.f32.mrf.mxu0
    %v1600 = vadd.f32 %v532, %v1599
    %v1601 = vpop.f32.mrf.mxu0
    %v1602 = vpop.f32.mrf.mxu0
    %v1603 = vadd.f32 %v537, %v1602
    %v1604 = vpop.f32.mrf.mxu0
    %1605 = vmatprep.mubr.bf16.mxu0 0
    %1606 = vmatmul.mubr.bf16.gmra.mxu0 %v1264
    %v1607 = vpop.f32.mrf.mxu0
    %v1608 = vadd.f32 %v542, %v1607
    %v1609 = vpop.f32.mrf.mxu0
    %v1610 = vpop.f32.mrf.mxu0
    %v1611 = vadd.f32 %v547, %v1610
    %v1612 = vpop.f32.mrf.mxu0
    %1613 = vmatprep.mubr.bf16.mxu0 0
    %1614 = vmatmul.mubr.bf16.gmra.mxu0 %v1265
    %v1615 = vpop.f32.mrf.mxu0
    %v1616 = vadd.f32 %v552, %v1615
    %v1617 = vpop.f32.mrf.mxu0
    %v1618 = vpop.f32.mrf.mxu0
    %v1619 = vadd.f32 %v557, %v1618
    %v1620 = vpop.f32.mrf.mxu0
    %1621 = vmatprep.mubr.bf16.mxu0 0
    %1622 = vmatmul.mubr.bf16.gmra.mxu0 %v1266
    %v1623 = vpop.f32.mrf.mxu0
    %v1624 = vadd.f32 %v562, %v1623
    %v1625 = vpop.f32.mrf.mxu0
    %v1626 = vpop.f32.mrf.mxu0
    %v1627 = vadd.f32 %v567, %v1626
    %v1628 = vpop.f32.mrf.mxu0
    %1629 = vmatprep.mubr.bf16.mxu0 0
    %1630 = vmatmul.mubr.bf16.gmra.mxu0 %v1267
    %v1631 = vpop.f32.mrf.mxu0
    %v1632 = vadd.f32 %v572, %v1631
    %v1633 = vpop.f32.mrf.mxu0
    %v1634 = vpop.f32.mrf.mxu0
    %v1635 = vadd.f32 %v577, %v1634
    %v1636 = vpop.f32.mrf.mxu0
    %1637 = vmatprep.mubr.bf16.mxu0 0
    %1638 = vmatmul.mubr.bf16.gmra.mxu0 %v1268
    %v1639 = vpop.f32.mrf.mxu0
    %v1640 = vadd.f32 %v582, %v1639
    %v1641 = vpop.f32.mrf.mxu0
    %v1642 = vpop.f32.mrf.mxu0
    %v1643 = vadd.f32 %v587, %v1642
    %v1644 = vpop.f32.mrf.mxu0
    %1645 = vmatprep.mubr.bf16.mxu0 0
    %1646 = vmatmul.mubr.bf16.gmra.mxu0 %v1269
    %v1647 = vpop.f32.mrf.mxu0
    %v1648 = vadd.f32 %v592, %v1647
    %v1649 = vpop.f32.mrf.mxu0
    %v1650 = vpop.f32.mrf.mxu0
    %v1651 = vadd.f32 %v597, %v1650
    %v1652 = vpop.f32.mrf.mxu0
    %1653 = vmatprep.mubr.bf16.mxu0 0
    %1654 = vmatmul.mubr.bf16.gmra.mxu0 %v1270
    %v1655 = vpop.f32.mrf.mxu0
    %v1656 = vadd.f32 %v602, %v1655
    %v1657 = vpop.f32.mrf.mxu0
    %v1658 = vpop.f32.mrf.mxu0
    %v1659 = vadd.f32 %v607, %v1658
    %v1660 = vpop.f32.mrf.mxu0
    %1661 = vmatprep.mubr.bf16.mxu0 0
    %1662 = vmatmul.mubr.bf16.gmra.mxu0 %v1271
    %v1663 = vpop.f32.mrf.mxu0
    %v1664 = vadd.f32 %v612, %v1663
    %v1665 = vpop.f32.mrf.mxu0
    %v1666 = vpop.f32.mrf.mxu0
    %v1667 = vadd.f32 %v617, %v1666
    %v1668 = vpop.f32.mrf.mxu0
    %1669 = vmatprep.mubr.bf16.mxu0 0
    %1670 = vmatmul.mubr.bf16.gmra.mxu0 %v1272
    %v1671 = vpop.f32.mrf.mxu0
    %v1672 = vadd.f32 %v622, %v1671
    %v1673 = vpop.f32.mrf.mxu0
    %v1674 = vpop.f32.mrf.mxu0
    %v1675 = vadd.f32 %v627, %v1674
    %v1676 = vpop.f32.mrf.mxu0
    %1677 = vmatprep.mubr.bf16.mxu0 0
    %1678 = vmatmul.mubr.bf16.gmra.mxu0 %v1273
    %v1679 = vpop.f32.mrf.mxu0
    %v1680 = vadd.f32 %v632, %v1679
    %v1681 = vpop.f32.mrf.mxu0
    %v1682 = vpop.f32.mrf.mxu0
    %v1683 = vadd.f32 %v637, %v1682
    %v1684 = vpop.f32.mrf.mxu0
    %1685 = vmatprep.mubr.bf16.mxu0 0
    %1686 = vmatmul.mubr.bf16.gmra.mxu0 %v1274
    %v1687 = vpop.f32.mrf.mxu0
    %v1688 = vadd.f32 %v642, %v1687
    %v1689 = vpop.f32.mrf.mxu0
    %v1690 = vpop.f32.mrf.mxu0
    %v1691 = vadd.f32 %v647, %v1690
    %v1692 = vpop.f32.mrf.mxu0
    %1693 = vmatprep.mubr.bf16.mxu0 0
    %1694 = vmatmul.mubr.bf16.gmra.mxu0 %v1275
    %v1695 = vpop.f32.mrf.mxu0
    %v1696 = vadd.f32 %v652, %v1695
    %v1697 = vpop.f32.mrf.mxu0
    %v1698 = vpop.f32.mrf.mxu0
    %v1699 = vadd.f32 %v657, %v1698
    %v1700 = vpop.f32.mrf.mxu0
    %1701 = vmatprep.mubr.bf16.mxu0 0
    %1702 = vmatmul.mubr.bf16.gmra.mxu0 %v1276
    %v1703 = vpop.f32.mrf.mxu0
    %v1704 = vadd.f32 %v662, %v1703
    %v1705 = vpop.f32.mrf.mxu0
    %v1706 = vpop.f32.mrf.mxu0
    %v1707 = vadd.f32 %v667, %v1706
    %v1708 = vpop.f32.mrf.mxu0
    %1709 = vmatprep.mubr.bf16.mxu0 0
    %1710 = vmatmul.mubr.bf16.gmra.mxu0 %v1277
    %v1711 = vpop.f32.mrf.mxu0
    %v1712 = vadd.f32 %v672, %v1711
    %v1713 = vpop.f32.mrf.mxu0
    %v1714 = vpop.f32.mrf.mxu0
    %v1715 = vadd.f32 %v677, %v1714
    %v1716 = vpop.f32.mrf.mxu0
    %1717 = vmatprep.mubr.bf16.mxu0 0
    %1718 = vmatmul.mubr.bf16.gmra.mxu0 %v1278
    %v1719 = vpop.f32.mrf.mxu0
    %v1720 = vadd.f32 %v682, %v1719
    %v1721 = vpop.f32.mrf.mxu0
    %v1722 = vpop.f32.mrf.mxu0
    %v1723 = vadd.f32 %v687, %v1722
    %v1724 = vpop.f32.mrf.mxu0
    %1725 = vmatprep.mubr.bf16.mxu0 0
    %1726 = vmatmul.mubr.bf16.gmra.mxu0 %v1279
    %v1727 = vpop.f32.mrf.mxu0
    %v1728 = vadd.f32 %v692, %v1727
    %v1729 = vpop.f32.mrf.mxu0
    %v1730 = vpop.f32.mrf.mxu0
    %v1731 = vadd.f32 %v697, %v1730
    %v1732 = vpop.f32.mrf.mxu0
    %1733 = vmatprep.mubr.bf16.mxu0 0
    %1734 = vmatmul.mubr.bf16.gmra.mxu0 %v1280
    %v1735 = vpop.f32.mrf.mxu0
    %v1736 = vadd.f32 %v702, %v1735
    %v1737 = vpop.f32.mrf.mxu0
    %v1738 = vpop.f32.mrf.mxu0
    %v1739 = vadd.f32 %v707, %v1738
    %v1740 = vpop.f32.mrf.mxu0
    %1741 = vmatprep.mubr.bf16.mxu0 0
    %1742 = vmatmul.mubr.bf16.gmra.mxu0 %v1281
    %v1743 = vpop.f32.mrf.mxu0
    %v1744 = vadd.f32 %v712, %v1743
    %v1745 = vpop.f32.mrf.mxu0
    %v1746 = vpop.f32.mrf.mxu0
    %v1747 = vadd.f32 %v717, %v1746
    %v1748 = vpop.f32.mrf.mxu0
    %1749 = vmatprep.mubr.bf16.mxu0 0
    %1750 = vmatmul.mubr.bf16.gmra.mxu0 %v1282
    %v1751 = vpop.f32.mrf.mxu0
    %v1752 = vadd.f32 %v722, %v1751
    %v1753 = vpop.f32.mrf.mxu0
    %v1754 = vpop.f32.mrf.mxu0
    %v1755 = vadd.f32 %v727, %v1754
    %v1756 = vpop.f32.mrf.mxu0
    %1757 = vmatprep.mubr.bf16.mxu0 0
    %1758 = vmatmul.mubr.bf16.gmra.mxu0 %v1283
    %v1759 = vpop.f32.mrf.mxu0
    %v1760 = vadd.f32 %v732, %v1759
    %v1761 = vpop.f32.mrf.mxu0
    %v1762 = vpop.f32.mrf.mxu0
    %v1763 = vadd.f32 %v737, %v1762
    %v1764 = vpop.f32.mrf.mxu0
    %1765 = vmatprep.mubr.bf16.mxu0 0
    %1766 = vmatmul.mubr.bf16.gmra.mxu0 %v1284
    %v1767 = vpop.f32.mrf.mxu0
    %v1768 = vadd.f32 %v742, %v1767
    %v1769 = vpop.f32.mrf.mxu0
    %v1770 = vpop.f32.mrf.mxu0
    %v1771 = vadd.f32 %v747, %v1770
    %v1772 = vpop.f32.mrf.mxu0
    %1773 = vmatprep.mubr.bf16.mxu0 0
    %1774 = vmatmul.mubr.bf16.gmra.mxu0 %v1285
    %v1775 = vpop.f32.mrf.mxu0
    %v1776 = vadd.f32 %v752, %v1775
    %v1777 = vpop.f32.mrf.mxu0
    %v1778 = vpop.f32.mrf.mxu0
    %v1779 = vadd.f32 %v757, %v1778
    %v1780 = vpop.f32.mrf.mxu0
    %1781 = vmatprep.mubr.bf16.mxu0 0
    %1782 = vmatmul.mubr.bf16.gmra.mxu0 %v1286
    %v1783 = vpop.f32.mrf.mxu0
    %v1784 = vadd.f32 %v762, %v1783
    %v1785 = vpop.f32.mrf.mxu0
    %v1786 = vpop.f32.mrf.mxu0
    %v1787 = vadd.f32 %v767, %v1786
    %v1788 = vpop.f32.mrf.mxu0
    %1789 = vmatprep.mubr.bf16.mxu0 0
    %1790 = vmatmul.mubr.bf16.gmra.mxu0 %v1287
    %v1791 = vpop.f32.mrf.mxu0
    %v1792 = vadd.f32 %v772, %v1791
    %v1793 = vpop.f32.mrf.mxu0
    %v1794 = vpop.f32.mrf.mxu0
    %v1795 = vadd.f32 %v777, %v1794
    %v1796 = vpop.f32.mrf.mxu0
    %1797 = vmatprep.mubr.bf16.mxu0 0
    %1798 = vmatmul.mubr.bf16.gmra.mxu0 %v1288
    %v1799 = vpop.f32.mrf.mxu0
    %v1800 = vadd.f32 %v782, %v1799
    %v1801 = vpop.f32.mrf.mxu0
    %v1802 = vpop.f32.mrf.mxu0
    %v1803 = vadd.f32 %v787, %v1802
    %v1804 = vpop.f32.mrf.mxu0
    %1805 = vmatprep.mubr.bf16.mxu0 0
    %1806 = vmatmul.mubr.bf16.gmra.mxu0 %v1289
    %v1807 = vpop.f32.mrf.mxu0
    %v1808 = vadd.f32 %v792, %v1807
    %v1809 = vpop.f32.mrf.mxu0
    %v1810 = vpop.f32.mrf.mxu0
    %v1811 = vadd.f32 %v797, %v1810
    %v1812 = vpop.f32.mrf.mxu0
    %1813 = vmatprep.mubr.bf16.mxu0 0
    %1814 = vmatmul.mubr.bf16.gmra.mxu0 %v1290
    %v1815 = vpop.f32.mrf.mxu0
    %v1816 = vadd.f32 %v802, %v1815
    %v1817 = vpop.f32.mrf.mxu0
    %v1818 = vpop.f32.mrf.mxu0
    %v1819 = vadd.f32 %v807, %v1818
    %v1820 = vpop.f32.mrf.mxu0
    %1821 = vmatprep.mubr.bf16.mxu0 0
    %1822 = vmatmul.mubr.bf16.gmra.mxu0 %v1291
    %v1823 = vpop.f32.mrf.mxu0
    %v1824 = vadd.f32 %v812, %v1823
    %v1825 = vpop.f32.mrf.mxu0
    %v1826 = vpop.f32.mrf.mxu0
    %v1827 = vadd.f32 %v817, %v1826
    %v1828 = vpop.f32.mrf.mxu0
    %1829 = vmatprep.mubr.bf16.mxu0 0
    %1830 = vmatmul.mubr.bf16.gmra.mxu0 %v1292
    %v1831 = vpop.f32.mrf.mxu0
    %v1832 = vadd.f32 %v822, %v1831
    %v1833 = vpop.f32.mrf.mxu0
    %v1834 = vpop.f32.mrf.mxu0
    %v1835 = vadd.f32 %v827, %v1834
    %v1836 = vpop.f32.mrf.mxu0
    %1837 = vmatprep.mubr.bf16.mxu0 0
    %1838 = vmatmul.mubr.bf16.gmra.mxu0 %v1293
    %v1839 = vpop.f32.mrf.mxu0
    %v1840 = vadd.f32 %v832, %v1839
    %v1841 = vpop.f32.mrf.mxu0
    %v1842 = vpop.f32.mrf.mxu0
    %v1843 = vadd.f32 %v837, %v1842
    %v1844 = vpop.f32.mrf.mxu0
    %1845 = vmatprep.mubr.bf16.mxu0 0
    %1846 = vmatmul.mubr.bf16.gmra.mxu0 %v1294
    %v1847 = vpop.f32.mrf.mxu0
    %v1848 = vadd.f32 %v842, %v1847
    %v1849 = vpop.f32.mrf.mxu0
    %v1850 = vpop.f32.mrf.mxu0
    %v1851 = vadd.f32 %v847, %v1850
    %v1852 = vpop.f32.mrf.mxu0
    %1853 = vmatprep.mubr.bf16.mxu0 0
    %1854 = vmatmul.mubr.bf16.gmra.mxu0 %v1295
    %v1855 = vpop.f32.mrf.mxu0
    %v1856 = vadd.f32 %v852, %v1855
    %v1857 = vpop.f32.mrf.mxu0
    %v1858 = vpop.f32.mrf.mxu0
    %v1859 = vadd.f32 %v857, %v1858
    %v1860 = vpop.f32.mrf.mxu0
    %1861 = vmatprep.mubr.bf16.mxu0 0
    %1862 = vmatmul.mubr.bf16.gmra.mxu0 %v1296
    %v1863 = vpop.f32.mrf.mxu0
    %v1864 = vadd.f32 %v862, %v1863
    %v1865 = vpop.f32.mrf.mxu0
    %v1866 = vpop.f32.mrf.mxu0
    %v1867 = vadd.f32 %v867, %v1866
    %v1868 = vpop.f32.mrf.mxu0
    %1869 = vmatprep.mubr.bf16.mxu0 0
    %1870 = vmatmul.mubr.bf16.gmra.mxu0 %v1297
    %v1871 = vpop.f32.mrf.mxu0
    %v1872 = vadd.f32 %v872, %v1871
    %v1873 = vpop.f32.mrf.mxu0
    %v1874 = vpop.f32.mrf.mxu0
    %v1875 = vadd.f32 %v877, %v1874
    %v1876 = vpop.f32.mrf.mxu0
    %1877 = vmatprep.mubr.bf16.mxu0 0
    %1878 = vmatmul.mubr.bf16.gmra.mxu0 %v1298
    %v1879 = vpop.f32.mrf.mxu0
    %v1880 = vadd.f32 %v882, %v1879
    %v1881 = vpop.f32.mrf.mxu0
    %v1882 = vpop.f32.mrf.mxu0
    %v1883 = vadd.f32 %v887, %v1882
    %v1884 = vpop.f32.mrf.mxu0
    %1885 = vmatprep.mubr.bf16.mxu0 0
    %1886 = vmatmul.mubr.bf16.gmra.mxu0 %v1299
    %v1887 = vpop.f32.mrf.mxu0
    %v1888 = vadd.f32 %v892, %v1887
    %v1889 = vpop.f32.mrf.mxu0
    %v1890 = vpop.f32.mrf.mxu0
    %v1891 = vadd.f32 %v897, %v1890
    %v1892 = vpop.f32.mrf.mxu0
    %1893 = vmatprep.mubr.bf16.mxu0 0
    %1894 = vmatmul.mubr.bf16.gmra.mxu0 %v1300
    %v1895 = vpop.f32.mrf.mxu0
    %v1896 = vadd.f32 %v902, %v1895
    %v1897 = vpop.f32.mrf.mxu0
    %v1898 = vpop.f32.mrf.mxu0
    %v1899 = vadd.f32 %v907, %v1898
    %v1900 = vpop.f32.mrf.mxu0
    %1901 = vmatprep.mubr.bf16.mxu0 0
    %1902 = vmatmul.mubr.bf16.gmra.mxu0 %v1301
    %v1903 = vpop.f32.mrf.mxu0
    %v1904 = vadd.f32 %v912, %v1903
    %v1905 = vpop.f32.mrf.mxu0
    %v1906 = vpop.f32.mrf.mxu0
    %v1907 = vadd.f32 %v917, %v1906
    %v1908 = vpop.f32.mrf.mxu0
    %1909 = vmatprep.mubr.bf16.mxu0 0
    %1910 = vmatmul.mubr.bf16.gmra.mxu0 %v1302
    %v1911 = vpop.f32.mrf.mxu0
    %v1912 = vadd.f32 %v922, %v1911
    %v1913 = vpop.f32.mrf.mxu0
    %v1914 = vpop.f32.mrf.mxu0
    %v1915 = vadd.f32 %v927, %v1914
    %v1916 = vpop.f32.mrf.mxu0
    %1917 = vmatprep.mubr.bf16.mxu0 0
    %1918 = vmatmul.mubr.bf16.gmra.mxu0 %v1303
    %v1919 = vpop.f32.mrf.mxu0
    %v1920 = vadd.f32 %v932, %v1919
    %v1921 = vpop.f32.mrf.mxu0
    %v1922 = vpop.f32.mrf.mxu0
    %v1923 = vadd.f32 %v937, %v1922
    %v1924 = vpop.f32.mrf.mxu0
    %1925 = vmatprep.mubr.bf16.mxu0 0
    %1926 = vmatmul.mubr.bf16.gmra.mxu0 %v1304
    %v1927 = vpop.f32.mrf.mxu0
    %v1928 = vadd.f32 %v942, %v1927
    %v1929 = vpop.f32.mrf.mxu0
    %v1930 = vpop.f32.mrf.mxu0
    %v1931 = vadd.f32 %v947, %v1930
    %v1932 = vpop.f32.mrf.mxu0
    %1933 = vmatprep.mubr.bf16.mxu0 0
    %1934 = vmatmul.mubr.bf16.gmra.mxu0 %v1305
    %v1935 = vpop.f32.mrf.mxu0
    %v1936 = vadd.f32 %v952, %v1935
    %v1937 = vpop.f32.mrf.mxu0
    %v1938 = vpop.f32.mrf.mxu0
    %v1939 = vadd.f32 %v957, %v1938
    %v1940 = vpop.f32.mrf.mxu0
    %1941 = vmatprep.mubr.bf16.mxu0 0
    %1942 = vmatmul.mubr.bf16.gmra.mxu0 %v1306
    %v1943 = vpop.f32.mrf.mxu0
    %v1944 = vadd.f32 %v962, %v1943
    %v1945 = vpop.f32.mrf.mxu0
    %v1946 = vpop.f32.mrf.mxu0
    %v1947 = vadd.f32 %v967, %v1946
    %v1948 = vpop.f32.mrf.mxu0
    %1949 = vmatprep.mubr.bf16.mxu0 0
    %1950 = vmatmul.mubr.bf16.gmra.mxu0 %v1307
    %v1951 = vpop.f32.mrf.mxu0
    %v1952 = vadd.f32 %v972, %v1951
    %v1953 = vpop.f32.mrf.mxu0
    %v1954 = vpop.f32.mrf.mxu0
    %v1955 = vadd.f32 %v977, %v1954
    %v1956 = vpop.f32.mrf.mxu0
    %1957 = vmatprep.mubr.bf16.mxu0 0
    %1958 = vmatmul.mubr.bf16.gmra.mxu0 %v1308
    %v1959 = vpop.f32.mrf.mxu0
    %v1960 = vadd.f32 %v982, %v1959
    %v1961 = vpop.f32.mrf.mxu0
    %v1962 = vpop.f32.mrf.mxu0
    %v1963 = vadd.f32 %v987, %v1962
    %v1964 = vpop.f32.mrf.mxu0
    %1965 = vdwg.mxu0
    %v1966 = vmax.f32 %v1456, 0.0
    %v1967 = vmax.f32 %v1459, 0.0
    %v1968 = vmax.f32 %v1464, 0.0
    %v1969 = vmax.f32 %v1467, 0.0
    %v1970 = vmax.f32 %v1472, 0.0
    %v1971 = vmax.f32 %v1475, 0.0
    %v1972 = vmax.f32 %v1480, 0.0
    %v1973 = vmax.f32 %v1483, 0.0
    %v1974 = vmax.f32 %v1488, 0.0
    %v1975 = vmax.f32 %v1491, 0.0
    %v1976 = vmax.f32 %v1496, 0.0
    %v1977 = vmax.f32 %v1499, 0.0
    %v1978 = vmax.f32 %v1504, 0.0
    %v1979 = vmax.f32 %v1507, 0.0
    %v1980 = vmax.f32 %v1512, 0.0
    %v1981 = vmax.f32 %v1515, 0.0
    %v1982 = vmax.f32 %v1520, 0.0
    %v1983 = vmax.f32 %v1523, 0.0
    %v1984 = vmax.f32 %v1528, 0.0
    %v1985 = vmax.f32 %v1531, 0.0
    %v1986 = vmax.f32 %v1536, 0.0
    %v1987 = vmax.f32 %v1539, 0.0
    %v1988 = vmax.f32 %v1544, 0.0
    %v1989 = vmax.f32 %v1547, 0.0
    %v1990 = vmax.f32 %v1552, 0.0
    %v1991 = vmax.f32 %v1555, 0.0
    %v1992 = vmax.f32 %v1560, 0.0
    %v1993 = vmax.f32 %v1563, 0.0
    %v1994 = vmax.f32 %v1568, 0.0
    %v1995 = vmax.f32 %v1571, 0.0
    %v1996 = vmax.f32 %v1576, 0.0
    %v1997 = vmax.f32 %v1579, 0.0
    %v1998 = vmax.f32 %v1584, 0.0
    %v1999 = vmax.f32 %v1587, 0.0
    %v2000 = vmax.f32 %v1592, 0.0
    %v2001 = vmax.f32 %v1595, 0.0
    %v2002 = vmax.f32 %v1600, 0.0
    %v2003 = vmax.f32 %v1603, 0.0
    %v2004 = vmax.f32 %v1608, 0.0
    %v2005 = vmax.f32 %v1611, 0.0
    %v2006 = vmax.f32 %v1616, 0.0
    %v2007 = vmax.f32 %v1619, 0.0
    %v2008 = vmax.f32 %v1624, 0.0
    %v2009 = vmax.f32 %v1627, 0.0
    %v2010 = vmax.f32 %v1632, 0.0
    %v2011 = vmax.f32 %v1635, 0.0
    %v2012 = vmax.f32 %v1640, 0.0
    %v2013 = vmax.f32 %v1643, 0.0
    %v2014 = vmax.f32 %v1648, 0.0
    %v2015 = vmax.f32 %v1651, 0.0
    %v2016 = vmax.f32 %v1656, 0.0
    %v2017 = vmax.f32 %v1659, 0.0
    %v2018 = vmax.f32 %v1664, 0.0
    %v2019 = vmax.f32 %v1667, 0.0
    %v2020 = vmax.f32 %v1672, 0.0
    %v2021 = vmax.f32 %v1675, 0.0
    %v2022 = vmax.f32 %v1680, 0.0
    %v2023 = vmax.f32 %v1683, 0.0
    %v2024 = vmax.f32 %v1688, 0.0
    %v2025 = vmax.f32 %v1691, 0.0
    %v2026 = vmax.f32 %v1696, 0.0
    %v2027 = vmax.f32 %v1699, 0.0
    %v2028 = vmax.f32 %v1704, 0.0
    %v2029 = vmax.f32 %v1707, 0.0
    %v2030 = vmax.f32 %v1712, 0.0
    %v2031 = vmax.f32 %v1715, 0.0
    %v2032 = vmax.f32 %v1720, 0.0
    %v2033 = vmax.f32 %v1723, 0.0
    %v2034 = vmax.f32 %v1728, 0.0
    %v2035 = vmax.f32 %v1731, 0.0
    %v2036 = vmax.f32 %v1736, 0.0
    %v2037 = vmax.f32 %v1739, 0.0
    %v2038 = vmax.f32 %v1744, 0.0
    %v2039 = vmax.f32 %v1747, 0.0
    %v2040 = vmax.f32 %v1752, 0.0
    %v2041 = vmax.f32 %v1755, 0.0
    %v2042 = vmax.f32 %v1760, 0.0
    %v2043 = vmax.f32 %v1763, 0.0
    %v2044 = vmax.f32 %v1768, 0.0
    %v2045 = vmax.f32 %v1771, 0.0
    %v2046 = vmax.f32 %v1776, 0.0
    %v2047 = vmax.f32 %v1779, 0.0
    %v2048 = vmax.f32 %v1784, 0.0
    %v2049 = vmax.f32 %v1787, 0.0
    %v2050 = vmax.f32 %v1792, 0.0
    %v2051 = vmax.f32 %v1795, 0.0
    %v2052 = vmax.f32 %v1800, 0.0
    %v2053 = vmax.f32 %v1803, 0.0
    %v2054 = vmax.f32 %v1808, 0.0
    %v2055 = vmax.f32 %v1811, 0.0
    %v2056 = vmax.f32 %v1816, 0.0
    %v2057 = vmax.f32 %v1819, 0.0
    %v2058 = vmax.f32 %v1824, 0.0
    %v2059 = vmax.f32 %v1827, 0.0
    %v2060 = vmax.f32 %v1832, 0.0
    %v2061 = vmax.f32 %v1835, 0.0
    %v2062 = vmax.f32 %v1840, 0.0
    %v2063 = vmax.f32 %v1843, 0.0
    %v2064 = vmax.f32 %v1848, 0.0
    %v2065 = vmax.f32 %v1851, 0.0
    %v2066 = vmax.f32 %v1856, 0.0
    %v2067 = vmax.f32 %v1859, 0.0
    %v2068 = vmax.f32 %v1864, 0.0
    %v2069 = vmax.f32 %v1867, 0.0
    %v2070 = vmax.f32 %v1872, 0.0
    %v2071 = vmax.f32 %v1875, 0.0
    %v2072 = vmax.f32 %v1880, 0.0
    %v2073 = vmax.f32 %v1883, 0.0
    %v2074 = vmax.f32 %v1888, 0.0
    %v2075 = vmax.f32 %v1891, 0.0
    %v2076 = vmax.f32 %v1896, 0.0
    %v2077 = vmax.f32 %v1899, 0.0
    %v2078 = vmax.f32 %v1904, 0.0
    %v2079 = vmax.f32 %v1907, 0.0
    %v2080 = vmax.f32 %v1912, 0.0
    %v2081 = vmax.f32 %v1915, 0.0
    %v2082 = vmax.f32 %v1920, 0.0
    %v2083 = vmax.f32 %v1923, 0.0
    %v2084 = vmax.f32 %v1928, 0.0
    %v2085 = vmax.f32 %v1931, 0.0
    %v2086 = vmax.f32 %v1936, 0.0
    %v2087 = vmax.f32 %v1939, 0.0
    %v2088 = vmax.f32 %v1944, 0.0
    %v2089 = vmax.f32 %v1947, 0.0
    %v2090 = vmax.f32 %v1952, 0.0
    %v2091 = vmax.f32 %v1955, 0.0
    %v2092 = vmax.f32 %v1960, 0.0
    %v2093 = vmax.f32 %v1963, 0.0
    %v2094 = vpack.c.bf16 %v1967, %v1966
    %v2095 = vpack.c.bf16 %v1969, %v1968
    %v2096 = vpack.c.bf16 %v1971, %v1970
    %v2097 = vpack.c.bf16 %v1973, %v1972
    %v2098 = vpack.c.bf16 %v1975, %v1974
    %v2099 = vpack.c.bf16 %v1977, %v1976
    %v2100 = vpack.c.bf16 %v1979, %v1978
    %v2101 = vpack.c.bf16 %v1981, %v1980
    %v2102 = vpack.c.bf16 %v1983, %v1982
    %v2103 = vpack.c.bf16 %v1985, %v1984
    %v2104 = vpack.c.bf16 %v1987, %v1986
    %v2105 = vpack.c.bf16 %v1989, %v1988
    %v2106 = vpack.c.bf16 %v1991, %v1990
    %v2107 = vpack.c.bf16 %v1993, %v1992
    %v2108 = vpack.c.bf16 %v1995, %v1994
    %v2109 = vpack.c.bf16 %v1997, %v1996
    %v2110 = vpack.c.bf16 %v1999, %v1998
    %v2111 = vpack.c.bf16 %v2001, %v2000
    %v2112 = vpack.c.bf16 %v2003, %v2002
    %v2113 = vpack.c.bf16 %v2005, %v2004
    %v2114 = vpack.c.bf16 %v2007, %v2006
    %v2115 = vpack.c.bf16 %v2009, %v2008
    %v2116 = vpack.c.bf16 %v2011, %v2010
    %v2117 = vpack.c.bf16 %v2013, %v2012
    %v2118 = vpack.c.bf16 %v2015, %v2014
    %v2119 = vpack.c.bf16 %v2017, %v2016
    %v2120 = vpack.c.bf16 %v2019, %v2018
    %v2121 = vpack.c.bf16 %v2021, %v2020
    %v2122 = vpack.c.bf16 %v2023, %v2022
    %v2123 = vpack.c.bf16 %v2025, %v2024
    %v2124 = vpack.c.bf16 %v2027, %v2026
    %v2125 = vpack.c.bf16 %v2029, %v2028
    %v2126 = vpack.c.bf16 %v2031, %v2030
    %v2127 = vpack.c.bf16 %v2033, %v2032
    %v2128 = vpack.c.bf16 %v2035, %v2034
    %v2129 = vpack.c.bf16 %v2037, %v2036
    %v2130 = vpack.c.bf16 %v2039, %v2038
    %v2131 = vpack.c.bf16 %v2041, %v2040
    %v2132 = vpack.c.bf16 %v2043, %v2042
    %v2133 = vpack.c.bf16 %v2045, %v2044
    %v2134 = vpack.c.bf16 %v2047, %v2046
    %v2135 = vpack.c.bf16 %v2049, %v2048
    %v2136 = vpack.c.bf16 %v2051, %v2050
    %v2137 = vpack.c.bf16 %v2053, %v2052
    %v2138 = vpack.c.bf16 %v2055, %v2054
    %v2139 = vpack.c.bf16 %v2057, %v2056
    %v2140 = vpack.c.bf16 %v2059, %v2058
    %v2141 = vpack.c.bf16 %v2061, %v2060
    %v2142 = vpack.c.bf16 %v2063, %v2062
    %v2143 = vpack.c.bf16 %v2065, %v2064
    %v2144 = vpack.c.bf16 %v2067, %v2066
    %v2145 = vpack.c.bf16 %v2069, %v2068
    %v2146 = vpack.c.bf16 %v2071, %v2070
    %v2147 = vpack.c.bf16 %v2073, %v2072
    %v2148 = vpack.c.bf16 %v2075, %v2074
    %v2149 = vpack.c.bf16 %v2077, %v2076
    %v2150 = vpack.c.bf16 %v2079, %v2078
    %v2151 = vpack.c.bf16 %v2081, %v2080
    %v2152 = vpack.c.bf16 %v2083, %v2082
    %v2153 = vpack.c.bf16 %v2085, %v2084
    %v2154 = vpack.c.bf16 %v2087, %v2086
    %v2155 = vpack.c.bf16 %v2089, %v2088
    %v2156 = vpack.c.bf16 %v2091, %v2090
    %v2157 = vpack.c.bf16 %v2093, %v2092
    %v2158 = vld [vmem:[%s3] sm:$0xff]
    %v2159 = vld [vmem:[%s3 + $0x8] sm:$0xff]
    %v2160 = vld [vmem:[%s3 + $0x10] sm:$0xff]
    %v2161 = vld [vmem:[%s3 + $0x18] sm:$0xff]
    %v2162 = vld [vmem:[%s3 + $0x20] sm:$0xff]
    %v2163 = vld [vmem:[%s3 + $0x28] sm:$0xff]
    %v2164 = vld [vmem:[%s3 + $0x30] sm:$0xff]
    %v2165 = vld [vmem:[%s3 + $0x38] sm:$0xff]
    %v2166 = vld [vmem:[%s3 + $0x40] sm:$0xff]
    %v2167 = vld [vmem:[%s3 + $0x48] sm:$0xff]
    %v2168 = vld [vmem:[%s3 + $0x50] sm:$0xff]
    %v2169 = vld [vmem:[%s3 + $0x58] sm:$0xff]
    %v2170 = vld [vmem:[%s3 + $0x60] sm:$0xff]
    %v2171 = vld [vmem:[%s3 + $0x68] sm:$0xff]
    %v2172 = vld [vmem:[%s3 + $0x70] sm:$0xff]
    %v2173 = vld [vmem:[%s3 + $0x78] sm:$0xff]
    %v2174 = vld [vmem:[%s3 + $0x80] sm:$0xff]
    %v2175 = vld [vmem:[%s3 + $0x88] sm:$0xff]
    %v2176 = vld [vmem:[%s3 + $0x90] sm:$0xff]
    %v2177 = vld [vmem:[%s3 + $0x98] sm:$0xff]
    %v2178 = vld [vmem:[%s3 + $0xa0] sm:$0xff]
    %v2179 = vld [vmem:[%s3 + $0xa8] sm:$0xff]
    %v2180 = vld [vmem:[%s3 + $0xb0] sm:$0xff]
    %v2181 = vld [vmem:[%s3 + $0xb8] sm:$0xff]
    %v2182 = vld [vmem:[%s3 + $0xc0] sm:$0xff]
    %v2183 = vld [vmem:[%s3 + $0xc8] sm:$0xff]
    %v2184 = vld [vmem:[%s3 + $0xd0] sm:$0xff]
    %v2185 = vld [vmem:[%s3 + $0xd8] sm:$0xff]
    %v2186 = vld [vmem:[%s3 + $0xe0] sm:$0xff]
    %v2187 = vld [vmem:[%s3 + $0xe8] sm:$0xff]
    %v2188 = vld [vmem:[%s3 + $0xf0] sm:$0xff]
    %v2189 = vld [vmem:[%s3 + $0xf8] sm:$0xff]
    %v2190 = vld [vmem:[%s3 + $0x100] sm:$0xff]
    %v2191 = vld [vmem:[%s3 + $0x108] sm:$0xff]
    %v2192 = vld [vmem:[%s3 + $0x110] sm:$0xff]
    %v2193 = vld [vmem:[%s3 + $0x118] sm:$0xff]
    %v2194 = vld [vmem:[%s3 + $0x120] sm:$0xff]
    %v2195 = vld [vmem:[%s3 + $0x128] sm:$0xff]
    %v2196 = vld [vmem:[%s3 + $0x130] sm:$0xff]
    %v2197 = vld [vmem:[%s3 + $0x138] sm:$0xff]
    %v2198 = vld [vmem:[%s3 + $0x140] sm:$0xff]
    %v2199 = vld [vmem:[%s3 + $0x148] sm:$0xff]
    %v2200 = vld [vmem:[%s3 + $0x150] sm:$0xff]
    %v2201 = vld [vmem:[%s3 + $0x158] sm:$0xff]
    %v2202 = vld [vmem:[%s3 + $0x160] sm:$0xff]
    %v2203 = vld [vmem:[%s3 + $0x168] sm:$0xff]
    %v2204 = vld [vmem:[%s3 + $0x170] sm:$0xff]
    %v2205 = vld [vmem:[%s3 + $0x178] sm:$0xff]
    %v2206 = vld [vmem:[%s3 + $0x180] sm:$0xff]
    %v2207 = vld [vmem:[%s3 + $0x188] sm:$0xff]
    %v2208 = vld [vmem:[%s3 + $0x190] sm:$0xff]
    %v2209 = vld [vmem:[%s3 + $0x198] sm:$0xff]
    %v2210 = vld [vmem:[%s3 + $0x1a0] sm:$0xff]
    %v2211 = vld [vmem:[%s3 + $0x1a8] sm:$0xff]
    %v2212 = vld [vmem:[%s3 + $0x1b0] sm:$0xff]
    %v2213 = vld [vmem:[%s3 + $0x1b8] sm:$0xff]
    %v2214 = vld [vmem:[%s3 + $0x1c0] sm:$0xff]
    %v2215 = vld [vmem:[%s3 + $0x1c8] sm:$0xff]
    %v2216 = vld [vmem:[%s3 + $0x1d0] sm:$0xff]
    %v2217 = vld [vmem:[%s3 + $0x1d8] sm:$0xff]
    %v2218 = vld [vmem:[%s3 + $0x1e0] sm:$0xff]
    %v2219 = vld [vmem:[%s3 + $0x1e8] sm:$0xff]
    %v2220 = vld [vmem:[%s3 + $0x1f0] sm:$0xff]
    %v2221 = vld [vmem:[%s3 + $0x1f8] sm:$0xff]
    %v2222 = vld [vmem:[%s3 + $0x200] sm:$0xff]
    %v2223 = vld [vmem:[%s3 + $0x208] sm:$0xff]
    %v2224 = vld [vmem:[%s3 + $0x210] sm:$0xff]
    %v2225 = vld [vmem:[%s3 + $0x218] sm:$0xff]
    %v2226 = vld [vmem:[%s3 + $0x220] sm:$0xff]
    %v2227 = vld [vmem:[%s3 + $0x228] sm:$0xff]
    %v2228 = vld [vmem:[%s3 + $0x230] sm:$0xff]
    %v2229 = vld [vmem:[%s3 + $0x238] sm:$0xff]
    %v2230 = vld [vmem:[%s3 + $0x240] sm:$0xff]
    %v2231 = vld [vmem:[%s3 + $0x248] sm:$0xff]
    %v2232 = vld [vmem:[%s3 + $0x250] sm:$0xff]
    %v2233 = vld [vmem:[%s3 + $0x258] sm:$0xff]
    %v2234 = vld [vmem:[%s3 + $0x260] sm:$0xff]
    %v2235 = vld [vmem:[%s3 + $0x268] sm:$0xff]
    %v2236 = vld [vmem:[%s3 + $0x270] sm:$0xff]
    %v2237 = vld [vmem:[%s3 + $0x278] sm:$0xff]
    %v2238 = vld [vmem:[%s3 + $0x280] sm:$0xff]
    %v2239 = vld [vmem:[%s3 + $0x288] sm:$0xff]
    %v2240 = vld [vmem:[%s3 + $0x290] sm:$0xff]
    %v2241 = vld [vmem:[%s3 + $0x298] sm:$0xff]
    %v2242 = vld [vmem:[%s3 + $0x2a0] sm:$0xff]
    %v2243 = vld [vmem:[%s3 + $0x2a8] sm:$0xff]
    %v2244 = vld [vmem:[%s3 + $0x2b0] sm:$0xff]
    %v2245 = vld [vmem:[%s3 + $0x2b8] sm:$0xff]
    %v2246 = vld [vmem:[%s3 + $0x2c0] sm:$0xff]
    %v2247 = vld [vmem:[%s3 + $0x2c8] sm:$0xff]
    %v2248 = vld [vmem:[%s3 + $0x2d0] sm:$0xff]
    %v2249 = vld [vmem:[%s3 + $0x2d8] sm:$0xff]
    %v2250 = vld [vmem:[%s3 + $0x2e0] sm:$0xff]
    %v2251 = vld [vmem:[%s3 + $0x2e8] sm:$0xff]
    %v2252 = vld [vmem:[%s3 + $0x2f0] sm:$0xff]
    %v2253 = vld [vmem:[%s3 + $0x2f8] sm:$0xff]
    %v2254 = vld [vmem:[%s3 + $0x300] sm:$0xff]
    %v2255 = vld [vmem:[%s3 + $0x308] sm:$0xff]
    %v2256 = vld [vmem:[%s3 + $0x310] sm:$0xff]
    %v2257 = vld [vmem:[%s3 + $0x318] sm:$0xff]
    %v2258 = vld [vmem:[%s3 + $0x320] sm:$0xff]
    %v2259 = vld [vmem:[%s3 + $0x328] sm:$0xff]
    %v2260 = vld [vmem:[%s3 + $0x330] sm:$0xff]
    %v2261 = vld [vmem:[%s3 + $0x338] sm:$0xff]
    %v2262 = vld [vmem:[%s3 + $0x340] sm:$0xff]
    %v2263 = vld [vmem:[%s3 + $0x348] sm:$0xff]
    %v2264 = vld [vmem:[%s3 + $0x350] sm:$0xff]
    %v2265 = vld [vmem:[%s3 + $0x358] sm:$0xff]
    %v2266 = vld [vmem:[%s3 + $0x360] sm:$0xff]
    %v2267 = vld [vmem:[%s3 + $0x368] sm:$0xff]
    %v2268 = vld [vmem:[%s3 + $0x370] sm:$0xff]
    %v2269 = vld [vmem:[%s3 + $0x378] sm:$0xff]
    %v2270 = vld [vmem:[%s3 + $0x380] sm:$0xff]
    %v2271 = vld [vmem:[%s3 + $0x388] sm:$0xff]
    %v2272 = vld [vmem:[%s3 + $0x390] sm:$0xff]
    %v2273 = vld [vmem:[%s3 + $0x398] sm:$0xff]
    %v2274 = vld [vmem:[%s3 + $0x3a0] sm:$0xff]
    %v2275 = vld [vmem:[%s3 + $0x3a8] sm:$0xff]
    %v2276 = vld [vmem:[%s3 + $0x3b0] sm:$0xff]
    %v2277 = vld [vmem:[%s3 + $0x3b8] sm:$0xff]
    %v2278 = vld [vmem:[%s3 + $0x3c0] sm:$0xff]
    %v2279 = vld [vmem:[%s3 + $0x3c8] sm:$0xff]
    %v2280 = vld [vmem:[%s3 + $0x3d0] sm:$0xff]
    %v2281 = vld [vmem:[%s3 + $0x3d8] sm:$0xff]
    %v2282 = vld [vmem:[%s3 + $0x3e0] sm:$0xff]
    %v2283 = vld [vmem:[%s3 + $0x3e8] sm:$0xff]
    %v2284 = vld [vmem:[%s3 + $0x3f0] sm:$0xff]
    %v2285 = vld [vmem:[%s3 + $0x3f8] sm:$0xff]
    %v2286 = vld [vmem:[%s3 + $0x400] sm:$0xff]
    %v2287 = vld [vmem:[%s3 + $0x408] sm:$0xff]
    %v2288 = vld [vmem:[%s3 + $0x410] sm:$0xff]
    %v2289 = vld [vmem:[%s3 + $0x418] sm:$0xff]
    %v2290 = vld [vmem:[%s3 + $0x420] sm:$0xff]
    %v2291 = vld [vmem:[%s3 + $0x428] sm:$0xff]
    %v2292 = vld [vmem:[%s3 + $0x430] sm:$0xff]
    %v2293 = vld [vmem:[%s3 + $0x438] sm:$0xff]
    %v2294 = vld [vmem:[%s3 + $0x440] sm:$0xff]
    %v2295 = vld [vmem:[%s3 + $0x448] sm:$0xff]
    %v2296 = vld [vmem:[%s3 + $0x450] sm:$0xff]
    %v2297 = vld [vmem:[%s3 + $0x458] sm:$0xff]
    %v2298 = vld [vmem:[%s3 + $0x460] sm:$0xff]
    %v2299 = vld [vmem:[%s3 + $0x468] sm:$0xff]
    %v2300 = vld [vmem:[%s3 + $0x470] sm:$0xff]
    %v2301 = vld [vmem:[%s3 + $0x478] sm:$0xff]
    %v2302 = vld [vmem:[%s3 + $0x480] sm:$0xff]
    %v2303 = vld [vmem:[%s3 + $0x488] sm:$0xff]
    %v2304 = vld [vmem:[%s3 + $0x490] sm:$0xff]
    %v2305 = vld [vmem:[%s3 + $0x498] sm:$0xff]
    %v2306 = vld [vmem:[%s3 + $0x4a0] sm:$0xff]
    %v2307 = vld [vmem:[%s3 + $0x4a8] sm:$0xff]
    %v2308 = vld [vmem:[%s3 + $0x4b0] sm:$0xff]
    %v2309 = vld [vmem:[%s3 + $0x4b8] sm:$0xff]
    %v2310 = vld [vmem:[%s3 + $0x4c0] sm:$0xff]
    %v2311 = vld [vmem:[%s3 + $0x4c8] sm:$0xff]
    %v2312 = vld [vmem:[%s3 + $0x4d0] sm:$0xff]
    %v2313 = vld [vmem:[%s3 + $0x4d8] sm:$0xff]
    %v2314 = vld [vmem:[%s3 + $0x4e0] sm:$0xff]
    %v2315 = vld [vmem:[%s3 + $0x4e8] sm:$0xff]
    %v2316 = vld [vmem:[%s3 + $0x4f0] sm:$0xff]
    %v2317 = vld [vmem:[%s3 + $0x4f8] sm:$0xff]
    %v2318 = vld [vmem:[%s3 + $0x500] sm:$0xff]
    %v2319 = vld [vmem:[%s3 + $0x508] sm:$0xff]
    %v2320 = vld [vmem:[%s3 + $0x510] sm:$0xff]
    %v2321 = vld [vmem:[%s3 + $0x518] sm:$0xff]
    %v2322 = vld [vmem:[%s3 + $0x520] sm:$0xff]
    %v2323 = vld [vmem:[%s3 + $0x528] sm:$0xff]
    %v2324 = vld [vmem:[%s3 + $0x530] sm:$0xff]
    %v2325 = vld [vmem:[%s3 + $0x538] sm:$0xff]
    %v2326 = vld [vmem:[%s3 + $0x540] sm:$0xff]
    %v2327 = vld [vmem:[%s3 + $0x548] sm:$0xff]
    %v2328 = vld [vmem:[%s3 + $0x550] sm:$0xff]
    %v2329 = vld [vmem:[%s3 + $0x558] sm:$0xff]
    %v2330 = vld [vmem:[%s3 + $0x560] sm:$0xff]
    %v2331 = vld [vmem:[%s3 + $0x568] sm:$0xff]
    %v2332 = vld [vmem:[%s3 + $0x570] sm:$0xff]
    %v2333 = vld [vmem:[%s3 + $0x578] sm:$0xff]
    %v2334 = vld [vmem:[%s3 + $0x580] sm:$0xff]
    %v2335 = vld [vmem:[%s3 + $0x588] sm:$0xff]
    %v2336 = vld [vmem:[%s3 + $0x590] sm:$0xff]
    %v2337 = vld [vmem:[%s3 + $0x598] sm:$0xff]
    %v2338 = vld [vmem:[%s3 + $0x5a0] sm:$0xff]
    %v2339 = vld [vmem:[%s3 + $0x5a8] sm:$0xff]
    %v2340 = vld [vmem:[%s3 + $0x5b0] sm:$0xff]
    %v2341 = vld [vmem:[%s3 + $0x5b8] sm:$0xff]
    %v2342 = vld [vmem:[%s3 + $0x5c0] sm:$0xff]
    %v2343 = vld [vmem:[%s3 + $0x5c8] sm:$0xff]
    %v2344 = vld [vmem:[%s3 + $0x5d0] sm:$0xff]
    %v2345 = vld [vmem:[%s3 + $0x5d8] sm:$0xff]
    %v2346 = vld [vmem:[%s3 + $0x5e0] sm:$0xff]
    %v2347 = vld [vmem:[%s3 + $0x5e8] sm:$0xff]
    %v2348 = vld [vmem:[%s3 + $0x5f0] sm:$0xff]
    %v2349 = vld [vmem:[%s3 + $0x5f8] sm:$0xff]
    %v2350 = vld [vmem:[%s3 + $0x600] sm:$0xff]
    %v2351 = vld [vmem:[%s3 + $0x608] sm:$0xff]
    %v2352 = vld [vmem:[%s3 + $0x610] sm:$0xff]
    %v2353 = vld [vmem:[%s3 + $0x618] sm:$0xff]
    %v2354 = vld [vmem:[%s3 + $0x620] sm:$0xff]
    %v2355 = vld [vmem:[%s3 + $0x628] sm:$0xff]
    %v2356 = vld [vmem:[%s3 + $0x630] sm:$0xff]
    %v2357 = vld [vmem:[%s3 + $0x638] sm:$0xff]
    %v2358 = vld [vmem:[%s3 + $0x640] sm:$0xff]
    %v2359 = vld [vmem:[%s3 + $0x648] sm:$0xff]
    %v2360 = vld [vmem:[%s3 + $0x650] sm:$0xff]
    %v2361 = vld [vmem:[%s3 + $0x658] sm:$0xff]
    %v2362 = vld [vmem:[%s3 + $0x660] sm:$0xff]
    %v2363 = vld [vmem:[%s3 + $0x668] sm:$0xff]
    %v2364 = vld [vmem:[%s3 + $0x670] sm:$0xff]
    %v2365 = vld [vmem:[%s3 + $0x678] sm:$0xff]
    %v2366 = vld [vmem:[%s3 + $0x680] sm:$0xff]
    %v2367 = vld [vmem:[%s3 + $0x688] sm:$0xff]
    %v2368 = vld [vmem:[%s3 + $0x690] sm:$0xff]
    %v2369 = vld [vmem:[%s3 + $0x698] sm:$0xff]
    %v2370 = vld [vmem:[%s3 + $0x6a0] sm:$0xff]
    %v2371 = vld [vmem:[%s3 + $0x6a8] sm:$0xff]
    %v2372 = vld [vmem:[%s3 + $0x6b0] sm:$0xff]
    %v2373 = vld [vmem:[%s3 + $0x6b8] sm:$0xff]
    %v2374 = vld [vmem:[%s3 + $0x6c0] sm:$0xff]
    %v2375 = vld [vmem:[%s3 + $0x6c8] sm:$0xff]
    %v2376 = vld [vmem:[%s3 + $0x6d0] sm:$0xff]
    %v2377 = vld [vmem:[%s3 + $0x6d8] sm:$0xff]
    %v2378 = vld [vmem:[%s3 + $0x6e0] sm:$0xff]
    %v2379 = vld [vmem:[%s3 + $0x6e8] sm:$0xff]
    %v2380 = vld [vmem:[%s3 + $0x6f0] sm:$0xff]
    %v2381 = vld [vmem:[%s3 + $0x6f8] sm:$0xff]
    %v2382 = vld [vmem:[%s3 + $0x700] sm:$0xff]
    %v2383 = vld [vmem:[%s3 + $0x708] sm:$0xff]
    %v2384 = vld [vmem:[%s3 + $0x710] sm:$0xff]
    %v2385 = vld [vmem:[%s3 + $0x718] sm:$0xff]
    %v2386 = vld [vmem:[%s3 + $0x720] sm:$0xff]
    %v2387 = vld [vmem:[%s3 + $0x728] sm:$0xff]
    %v2388 = vld [vmem:[%s3 + $0x730] sm:$0xff]
    %v2389 = vld [vmem:[%s3 + $0x738] sm:$0xff]
    %v2390 = vld [vmem:[%s3 + $0x740] sm:$0xff]
    %v2391 = vld [vmem:[%s3 + $0x748] sm:$0xff]
    %v2392 = vld [vmem:[%s3 + $0x750] sm:$0xff]
    %v2393 = vld [vmem:[%s3 + $0x758] sm:$0xff]
    %v2394 = vld [vmem:[%s3 + $0x760] sm:$0xff]
    %v2395 = vld [vmem:[%s3 + $0x768] sm:$0xff]
    %v2396 = vld [vmem:[%s3 + $0x770] sm:$0xff]
    %v2397 = vld [vmem:[%s3 + $0x778] sm:$0xff]
    %v2398 = vld [vmem:[%s3 + $0x780] sm:$0xff]
    %v2399 = vld [vmem:[%s3 + $0x788] sm:$0xff]
    %v2400 = vld [vmem:[%s3 + $0x790] sm:$0xff]
    %v2401 = vld [vmem:[%s3 + $0x798] sm:$0xff]
    %v2402 = vld [vmem:[%s3 + $0x7a0] sm:$0xff]
    %v2403 = vld [vmem:[%s3 + $0x7a8] sm:$0xff]
    %v2404 = vld [vmem:[%s3 + $0x7b0] sm:$0xff]
    %v2405 = vld [vmem:[%s3 + $0x7b8] sm:$0xff]
    %v2406 = vld [vmem:[%s3 + $0x7c0] sm:$0xff]
    %v2407 = vld [vmem:[%s3 + $0x7c8] sm:$0xff]
    %v2408 = vld [vmem:[%s3 + $0x7d0] sm:$0xff]
    %v2409 = vld [vmem:[%s3 + $0x7d8] sm:$0xff]
    %v2410 = vld [vmem:[%s3 + $0x7e0] sm:$0xff]
    %v2411 = vld [vmem:[%s3 + $0x7e8] sm:$0xff]
    %v2412 = vld [vmem:[%s3 + $0x7f0] sm:$0xff]
    %v2413 = vld [vmem:[%s3 + $0x7f8] sm:$0xff]
    %v2414 = vld [vmem:[%s4] sm:$0xff]
    %v2415 = vld [vmem:[%s4 + $0x8] sm:$0xff]
    %v2416 = vld [vmem:[%s4 + $0x10] sm:$0xff]
    %v2417 = vld [vmem:[%s4 + $0x18] sm:$0xff]
    %v2418 = vld [vmem:[%s4 + $0x20] sm:$0xff]
    %v2419 = vld [vmem:[%s4 + $0x28] sm:$0xff]
    %v2420 = vld [vmem:[%s4 + $0x30] sm:$0xff]
    %v2421 = vld [vmem:[%s4 + $0x38] sm:$0xff]
    %v2422 = vld [vmem:[%s4 + $0x40] sm:$0xff]
    %v2423 = vld [vmem:[%s4 + $0x48] sm:$0xff]
    %v2424 = vld [vmem:[%s4 + $0x50] sm:$0xff]
    %v2425 = vld [vmem:[%s4 + $0x58] sm:$0xff]
    %v2426 = vld [vmem:[%s4 + $0x60] sm:$0xff]
    %v2427 = vld [vmem:[%s4 + $0x68] sm:$0xff]
    %v2428 = vld [vmem:[%s4 + $0x70] sm:$0xff]
    %v2429 = vld [vmem:[%s4 + $0x78] sm:$0xff]
    %v2430 = vld [vmem:[%s4 + $0x80] sm:$0xff]
    %v2431 = vld [vmem:[%s4 + $0x88] sm:$0xff]
    %v2432 = vld [vmem:[%s4 + $0x90] sm:$0xff]
    %v2433 = vld [vmem:[%s4 + $0x98] sm:$0xff]
    %v2434 = vld [vmem:[%s4 + $0xa0] sm:$0xff]
    %v2435 = vld [vmem:[%s4 + $0xa8] sm:$0xff]
    %v2436 = vld [vmem:[%s4 + $0xb0] sm:$0xff]
    %v2437 = vld [vmem:[%s4 + $0xb8] sm:$0xff]
    %v2438 = vld [vmem:[%s4 + $0xc0] sm:$0xff]
    %v2439 = vld [vmem:[%s4 + $0xc8] sm:$0xff]
    %v2440 = vld [vmem:[%s4 + $0xd0] sm:$0xff]
    %v2441 = vld [vmem:[%s4 + $0xd8] sm:$0xff]
    %v2442 = vld [vmem:[%s4 + $0xe0] sm:$0xff]
    %v2443 = vld [vmem:[%s4 + $0xe8] sm:$0xff]
    %v2444 = vld [vmem:[%s4 + $0xf0] sm:$0xff]
    %v2445 = vld [vmem:[%s4 + $0xf8] sm:$0xff]
    %v2446 = vld [vmem:[%s4 + $0x100] sm:$0xff]
    %v2447 = vld [vmem:[%s4 + $0x108] sm:$0xff]
    %v2448 = vld [vmem:[%s4 + $0x110] sm:$0xff]
    %v2449 = vld [vmem:[%s4 + $0x118] sm:$0xff]
    %v2450 = vld [vmem:[%s4 + $0x120] sm:$0xff]
    %v2451 = vld [vmem:[%s4 + $0x128] sm:$0xff]
    %v2452 = vld [vmem:[%s4 + $0x130] sm:$0xff]
    %v2453 = vld [vmem:[%s4 + $0x138] sm:$0xff]
    %v2454 = vld [vmem:[%s4 + $0x140] sm:$0xff]
    %v2455 = vld [vmem:[%s4 + $0x148] sm:$0xff]
    %v2456 = vld [vmem:[%s4 + $0x150] sm:$0xff]
    %v2457 = vld [vmem:[%s4 + $0x158] sm:$0xff]
    %v2458 = vld [vmem:[%s4 + $0x160] sm:$0xff]
    %v2459 = vld [vmem:[%s4 + $0x168] sm:$0xff]
    %v2460 = vld [vmem:[%s4 + $0x170] sm:$0xff]
    %v2461 = vld [vmem:[%s4 + $0x178] sm:$0xff]
    %v2462 = vld [vmem:[%s4 + $0x180] sm:$0xff]
    %v2463 = vld [vmem:[%s4 + $0x188] sm:$0xff]
    %v2464 = vld [vmem:[%s4 + $0x190] sm:$0xff]
    %v2465 = vld [vmem:[%s4 + $0x198] sm:$0xff]
    %v2466 = vld [vmem:[%s4 + $0x1a0] sm:$0xff]
    %v2467 = vld [vmem:[%s4 + $0x1a8] sm:$0xff]
    %v2468 = vld [vmem:[%s4 + $0x1b0] sm:$0xff]
    %v2469 = vld [vmem:[%s4 + $0x1b8] sm:$0xff]
    %v2470 = vld [vmem:[%s4 + $0x1c0] sm:$0xff]
    %v2471 = vld [vmem:[%s4 + $0x1c8] sm:$0xff]
    %v2472 = vld [vmem:[%s4 + $0x1d0] sm:$0xff]
    %v2473 = vld [vmem:[%s4 + $0x1d8] sm:$0xff]
    %v2474 = vld [vmem:[%s4 + $0x1e0] sm:$0xff]
    %v2475 = vld [vmem:[%s4 + $0x1e8] sm:$0xff]
    %v2476 = vld [vmem:[%s4 + $0x1f0] sm:$0xff]
    %v2477 = vld [vmem:[%s4 + $0x1f8] sm:$0xff]
    %2479 = vset.pattern.permute.xlu0 0
    %2480 = vperm.xlu0 %2479, %v2414
    %v2481 = vpop.permute.xlu0 %2480
    %2484 = vset.pattern.permute.xlu0 0
    %2485 = vperm.xlu0 %2484, %v2415
    %v2486 = vpop.permute.xlu0 %2485
    %2489 = vset.pattern.permute.xlu0 0
    %2490 = vperm.xlu0 %2489, %v2416
    %v2491 = vpop.permute.xlu0 %2490
    %2494 = vset.pattern.permute.xlu0 0
    %2495 = vperm.xlu0 %2494, %v2417
    %v2496 = vpop.permute.xlu0 %2495
    %2499 = vset.pattern.permute.xlu0 0
    %2500 = vperm.xlu0 %2499, %v2418
    %v2501 = vpop.permute.xlu0 %2500
    %2504 = vset.pattern.permute.xlu0 0
    %2505 = vperm.xlu0 %2504, %v2419
    %v2506 = vpop.permute.xlu0 %2505
    %2509 = vset.pattern.permute.xlu0 0
    %2510 = vperm.xlu0 %2509, %v2420
    %v2511 = vpop.permute.xlu0 %2510
    %2514 = vset.pattern.permute.xlu0 0
    %2515 = vperm.xlu0 %2514, %v2421
    %v2516 = vpop.permute.xlu0 %2515
    %2519 = vset.pattern.permute.xlu0 0
    %2520 = vperm.xlu0 %2519, %v2422
    %v2521 = vpop.permute.xlu0 %2520
    %2524 = vset.pattern.permute.xlu0 0
    %2525 = vperm.xlu0 %2524, %v2423
    %v2526 = vpop.permute.xlu0 %2525
    %2529 = vset.pattern.permute.xlu0 0
    %2530 = vperm.xlu0 %2529, %v2424
    %v2531 = vpop.permute.xlu0 %2530
    %2534 = vset.pattern.permute.xlu0 0
    %2535 = vperm.xlu0 %2534, %v2425
    %v2536 = vpop.permute.xlu0 %2535
    %2539 = vset.pattern.permute.xlu0 0
    %2540 = vperm.xlu0 %2539, %v2426
    %v2541 = vpop.permute.xlu0 %2540
    %2544 = vset.pattern.permute.xlu0 0
    %2545 = vperm.xlu0 %2544, %v2427
    %v2546 = vpop.permute.xlu0 %2545
    %2549 = vset.pattern.permute.xlu0 0
    %2550 = vperm.xlu0 %2549, %v2428
    %v2551 = vpop.permute.xlu0 %2550
    %2554 = vset.pattern.permute.xlu0 0
    %2555 = vperm.xlu0 %2554, %v2429
    %v2556 = vpop.permute.xlu0 %2555
    %2559 = vset.pattern.permute.xlu0 0
    %2560 = vperm.xlu0 %2559, %v2430
    %v2561 = vpop.permute.xlu0 %2560
    %2564 = vset.pattern.permute.xlu0 0
    %2565 = vperm.xlu0 %2564, %v2431
    %v2566 = vpop.permute.xlu0 %2565
    %2569 = vset.pattern.permute.xlu0 0
    %2570 = vperm.xlu0 %2569, %v2432
    %v2571 = vpop.permute.xlu0 %2570
    %2574 = vset.pattern.permute.xlu0 0
    %2575 = vperm.xlu0 %2574, %v2433
    %v2576 = vpop.permute.xlu0 %2575
    %2579 = vset.pattern.permute.xlu0 0
    %2580 = vperm.xlu0 %2579, %v2434
    %v2581 = vpop.permute.xlu0 %2580
    %2584 = vset.pattern.permute.xlu0 0
    %2585 = vperm.xlu0 %2584, %v2435
    %v2586 = vpop.permute.xlu0 %2585
    %2589 = vset.pattern.permute.xlu0 0
    %2590 = vperm.xlu0 %2589, %v2436
    %v2591 = vpop.permute.xlu0 %2590
    %2594 = vset.pattern.permute.xlu0 0
    %2595 = vperm.xlu0 %2594, %v2437
    %v2596 = vpop.permute.xlu0 %2595
    %2599 = vset.pattern.permute.xlu0 0
    %2600 = vperm.xlu0 %2599, %v2438
    %v2601 = vpop.permute.xlu0 %2600
    %2604 = vset.pattern.permute.xlu0 0
    %2605 = vperm.xlu0 %2604, %v2439
    %v2606 = vpop.permute.xlu0 %2605
    %2609 = vset.pattern.permute.xlu0 0
    %2610 = vperm.xlu0 %2609, %v2440
    %v2611 = vpop.permute.xlu0 %2610
    %2614 = vset.pattern.permute.xlu0 0
    %2615 = vperm.xlu0 %2614, %v2441
    %v2616 = vpop.permute.xlu0 %2615
    %2619 = vset.pattern.permute.xlu0 0
    %2620 = vperm.xlu0 %2619, %v2442
    %v2621 = vpop.permute.xlu0 %2620
    %2624 = vset.pattern.permute.xlu0 0
    %2625 = vperm.xlu0 %2624, %v2443
    %v2626 = vpop.permute.xlu0 %2625
    %2629 = vset.pattern.permute.xlu0 0
    %2630 = vperm.xlu0 %2629, %v2444
    %v2631 = vpop.permute.xlu0 %2630
    %2634 = vset.pattern.permute.xlu0 0
    %2635 = vperm.xlu0 %2634, %v2445
    %v2636 = vpop.permute.xlu0 %2635
    %2639 = vset.pattern.permute.xlu0 0
    %2640 = vperm.xlu0 %2639, %v2446
    %v2641 = vpop.permute.xlu0 %2640
    %2644 = vset.pattern.permute.xlu0 0
    %2645 = vperm.xlu0 %2644, %v2447
    %v2646 = vpop.permute.xlu0 %2645
    %2649 = vset.pattern.permute.xlu0 0
    %2650 = vperm.xlu0 %2649, %v2448
    %v2651 = vpop.permute.xlu0 %2650
    %2654 = vset.pattern.permute.xlu0 0
    %2655 = vperm.xlu0 %2654, %v2449
    %v2656 = vpop.permute.xlu0 %2655
    %2659 = vset.pattern.permute.xlu0 0
    %2660 = vperm.xlu0 %2659, %v2450
    %v2661 = vpop.permute.xlu0 %2660
    %2664 = vset.pattern.permute.xlu0 0
    %2665 = vperm.xlu0 %2664, %v2451
    %v2666 = vpop.permute.xlu0 %2665
    %2669 = vset.pattern.permute.xlu0 0
    %2670 = vperm.xlu0 %2669, %v2452
    %v2671 = vpop.permute.xlu0 %2670
    %2674 = vset.pattern.permute.xlu0 0
    %2675 = vperm.xlu0 %2674, %v2453
    %v2676 = vpop.permute.xlu0 %2675
    %2679 = vset.pattern.permute.xlu0 0
    %2680 = vperm.xlu0 %2679, %v2454
    %v2681 = vpop.permute.xlu0 %2680
    %2684 = vset.pattern.permute.xlu0 0
    %2685 = vperm.xlu0 %2684, %v2455
    %v2686 = vpop.permute.xlu0 %2685
    %2689 = vset.pattern.permute.xlu0 0
    %2690 = vperm.xlu0 %2689, %v2456
    %v2691 = vpop.permute.xlu0 %2690
    %2694 = vset.pattern.permute.xlu0 0
    %2695 = vperm.xlu0 %2694, %v2457
    %v2696 = vpop.permute.xlu0 %2695
    %2699 = vset.pattern.permute.xlu0 0
    %2700 = vperm.xlu0 %2699, %v2458
    %v2701 = vpop.permute.xlu0 %2700
    %2704 = vset.pattern.permute.xlu0 0
    %2705 = vperm.xlu0 %2704, %v2459
    %v2706 = vpop.permute.xlu0 %2705
    %2709 = vset.pattern.permute.xlu0 0
    %2710 = vperm.xlu0 %2709, %v2460
    %v2711 = vpop.permute.xlu0 %2710
    %2714 = vset.pattern.permute.xlu0 0
    %2715 = vperm.xlu0 %2714, %v2461
    %v2716 = vpop.permute.xlu0 %2715
    %2719 = vset.pattern.permute.xlu0 0
    %2720 = vperm.xlu0 %2719, %v2462
    %v2721 = vpop.permute.xlu0 %2720
    %2724 = vset.pattern.permute.xlu0 0
    %2725 = vperm.xlu0 %2724, %v2463
    %v2726 = vpop.permute.xlu0 %2725
    %2729 = vset.pattern.permute.xlu0 0
    %2730 = vperm.xlu0 %2729, %v2464
    %v2731 = vpop.permute.xlu0 %2730
    %2734 = vset.pattern.permute.xlu0 0
    %2735 = vperm.xlu0 %2734, %v2465
    %v2736 = vpop.permute.xlu0 %2735
    %2739 = vset.pattern.permute.xlu0 0
    %2740 = vperm.xlu0 %2739, %v2466
    %v2741 = vpop.permute.xlu0 %2740
    %2744 = vset.pattern.permute.xlu0 0
    %2745 = vperm.xlu0 %2744, %v2467
    %v2746 = vpop.permute.xlu0 %2745
    %2749 = vset.pattern.permute.xlu0 0
    %2750 = vperm.xlu0 %2749, %v2468
    %v2751 = vpop.permute.xlu0 %2750
    %2754 = vset.pattern.permute.xlu0 0
    %2755 = vperm.xlu0 %2754, %v2469
    %v2756 = vpop.permute.xlu0 %2755
    %2759 = vset.pattern.permute.xlu0 0
    %2760 = vperm.xlu0 %2759, %v2470
    %v2761 = vpop.permute.xlu0 %2760
    %2764 = vset.pattern.permute.xlu0 0
    %2765 = vperm.xlu0 %2764, %v2471
    %v2766 = vpop.permute.xlu0 %2765
    %2769 = vset.pattern.permute.xlu0 0
    %2770 = vperm.xlu0 %2769, %v2472
    %v2771 = vpop.permute.xlu0 %2770
    %2774 = vset.pattern.permute.xlu0 0
    %2775 = vperm.xlu0 %2774, %v2473
    %v2776 = vpop.permute.xlu0 %2775
    %2779 = vset.pattern.permute.xlu0 0
    %2780 = vperm.xlu0 %2779, %v2474
    %v2781 = vpop.permute.xlu0 %2780
    %2784 = vset.pattern.permute.xlu0 0
    %2785 = vperm.xlu0 %2784, %v2475
    %v2786 = vpop.permute.xlu0 %2785
    %2789 = vset.pattern.permute.xlu0 0
    %2790 = vperm.xlu0 %2789, %v2476
    %v2791 = vpop.permute.xlu0 %2790
    %2794 = vset.pattern.permute.xlu0 0
    %2795 = vperm.xlu0 %2794, %v2477
    %v2796 = vpop.permute.xlu0 %2795
    %v3054 = vunpack.c.l.b16 %v2158
    %v3055 = vunpack.c.h.b16 %v2158
    %v3056 = vunpack.c.l.b16 %v2159
    %v3057 = vunpack.c.h.b16 %v2159
    %v3058 = vunpack.c.l.b16 %v2160
    %v3059 = vunpack.c.h.b16 %v2160
    %v3060 = vunpack.c.l.b16 %v2161
    %v3061 = vunpack.c.h.b16 %v2161
    %v3062 = vunpack.c.l.b16 %v2162
    %v3063 = vunpack.c.h.b16 %v2162
    %v3064 = vunpack.c.l.b16 %v2163
    %v3065 = vunpack.c.h.b16 %v2163
    %v3066 = vunpack.c.l.b16 %v2164
    %v3067 = vunpack.c.h.b16 %v2164
    %v3068 = vunpack.c.l.b16 %v2165
    %v3069 = vunpack.c.h.b16 %v2165
    %v3070 = vunpack.c.l.b16 %v2166
    %v3071 = vunpack.c.h.b16 %v2166
    %v3072 = vunpack.c.l.b16 %v2167
    %v3073 = vunpack.c.h.b16 %v2167
    %v3074 = vunpack.c.l.b16 %v2168
    %v3075 = vunpack.c.h.b16 %v2168
    %v3076 = vunpack.c.l.b16 %v2169
    %v3077 = vunpack.c.h.b16 %v2169
    %v3078 = vunpack.c.l.b16 %v2170
    %v3079 = vunpack.c.h.b16 %v2170
    %v3080 = vunpack.c.l.b16 %v2171
    %v3081 = vunpack.c.h.b16 %v2171
    %v3082 = vunpack.c.l.b16 %v2172
    %v3083 = vunpack.c.h.b16 %v2172
    %v3084 = vunpack.c.l.b16 %v2173
    %v3085 = vunpack.c.h.b16 %v2173
    %v3086 = vunpack.c.l.b16 %v2174
    %v3087 = vunpack.c.h.b16 %v2174
    %v3088 = vunpack.c.l.b16 %v2175
    %v3089 = vunpack.c.h.b16 %v2175
    %v3090 = vunpack.c.l.b16 %v2176
    %v3091 = vunpack.c.h.b16 %v2176
    %v3092 = vunpack.c.l.b16 %v2177
    %v3093 = vunpack.c.h.b16 %v2177
    %v3094 = vunpack.c.l.b16 %v2178
    %v3095 = vunpack.c.h.b16 %v2178
    %v3096 = vunpack.c.l.b16 %v2179
    %v3097 = vunpack.c.h.b16 %v2179
    %v3098 = vunpack.c.l.b16 %v2180
    %v3099 = vunpack.c.h.b16 %v2180
    %v3100 = vunpack.c.l.b16 %v2181
    %v3101 = vunpack.c.h.b16 %v2181
    %v3102 = vunpack.c.l.b16 %v2182
    %v3103 = vunpack.c.h.b16 %v2182
    %v3104 = vunpack.c.l.b16 %v2183
    %v3105 = vunpack.c.h.b16 %v2183
    %v3106 = vunpack.c.l.b16 %v2184
    %v3107 = vunpack.c.h.b16 %v2184
    %v3108 = vunpack.c.l.b16 %v2185
    %v3109 = vunpack.c.h.b16 %v2185
    %v3110 = vunpack.c.l.b16 %v2186
    %v3111 = vunpack.c.h.b16 %v2186
    %v3112 = vunpack.c.l.b16 %v2187
    %v3113 = vunpack.c.h.b16 %v2187
    %v3114 = vunpack.c.l.b16 %v2188
    %v3115 = vunpack.c.h.b16 %v2188
    %v3116 = vunpack.c.l.b16 %v2189
    %v3117 = vunpack.c.h.b16 %v2189
    %v3118 = vunpack.c.l.b16 %v2190
    %v3119 = vunpack.c.h.b16 %v2190
    %v3120 = vunpack.c.l.b16 %v2191
    %v3121 = vunpack.c.h.b16 %v2191
    %v3122 = vunpack.c.l.b16 %v2192
    %v3123 = vunpack.c.h.b16 %v2192
    %v3124 = vunpack.c.l.b16 %v2193
    %v3125 = vunpack.c.h.b16 %v2193
    %v3126 = vunpack.c.l.b16 %v2194
    %v3127 = vunpack.c.h.b16 %v2194
    %v3128 = vunpack.c.l.b16 %v2195
    %v3129 = vunpack.c.h.b16 %v2195
    %v3130 = vunpack.c.l.b16 %v2196
    %v3131 = vunpack.c.h.b16 %v2196
    %v3132 = vunpack.c.l.b16 %v2197
    %v3133 = vunpack.c.h.b16 %v2197
    %v3134 = vunpack.c.l.b16 %v2198
    %v3135 = vunpack.c.h.b16 %v2198
    %v3136 = vunpack.c.l.b16 %v2199
    %v3137 = vunpack.c.h.b16 %v2199
    %v3138 = vunpack.c.l.b16 %v2200
    %v3139 = vunpack.c.h.b16 %v2200
    %v3140 = vunpack.c.l.b16 %v2201
    %v3141 = vunpack.c.h.b16 %v2201
    %v3142 = vunpack.c.l.b16 %v2202
    %v3143 = vunpack.c.h.b16 %v2202
    %v3144 = vunpack.c.l.b16 %v2203
    %v3145 = vunpack.c.h.b16 %v2203
    %v3146 = vunpack.c.l.b16 %v2204
    %v3147 = vunpack.c.h.b16 %v2204
    %v3148 = vunpack.c.l.b16 %v2205
    %v3149 = vunpack.c.h.b16 %v2205
    %v3150 = vunpack.c.l.b16 %v2206
    %v3151 = vunpack.c.h.b16 %v2206
    %v3152 = vunpack.c.l.b16 %v2207
    %v3153 = vunpack.c.h.b16 %v2207
    %v3154 = vunpack.c.l.b16 %v2208
    %v3155 = vunpack.c.h.b16 %v2208
    %v3156 = vunpack.c.l.b16 %v2209
    %v3157 = vunpack.c.h.b16 %v2209
    %v3158 = vunpack.c.l.b16 %v2210
    %v3159 = vunpack.c.h.b16 %v2210
    %v3160 = vunpack.c.l.b16 %v2211
    %v3161 = vunpack.c.h.b16 %v2211
    %v3162 = vunpack.c.l.b16 %v2212
    %v3163 = vunpack.c.h.b16 %v2212
    %v3164 = vunpack.c.l.b16 %v2213
    %v3165 = vunpack.c.h.b16 %v2213
    %v3166 = vunpack.c.l.b16 %v2214
    %v3167 = vunpack.c.h.b16 %v2214
    %v3168 = vunpack.c.l.b16 %v2215
    %v3169 = vunpack.c.h.b16 %v2215
    %v3170 = vunpack.c.l.b16 %v2216
    %v3171 = vunpack.c.h.b16 %v2216
    %v3172 = vunpack.c.l.b16 %v2217
    %v3173 = vunpack.c.h.b16 %v2217
    %v3174 = vunpack.c.l.b16 %v2218
    %v3175 = vunpack.c.h.b16 %v2218
    %v3176 = vunpack.c.l.b16 %v2219
    %v3177 = vunpack.c.h.b16 %v2219
    %v3178 = vunpack.c.l.b16 %v2220
    %v3179 = vunpack.c.h.b16 %v2220
    %v3180 = vunpack.c.l.b16 %v2221
    %v3181 = vunpack.c.h.b16 %v2221
    %v3182 = vunpack.c.l.b16 %v2222
    %v3183 = vunpack.c.h.b16 %v2222
    %v3184 = vunpack.c.l.b16 %v2223
    %v3185 = vunpack.c.h.b16 %v2223
    %v3186 = vunpack.c.l.b16 %v2224
    %v3187 = vunpack.c.h.b16 %v2224
    %v3188 = vunpack.c.l.b16 %v2225
    %v3189 = vunpack.c.h.b16 %v2225
    %v3190 = vunpack.c.l.b16 %v2226
    %v3191 = vunpack.c.h.b16 %v2226
    %v3192 = vunpack.c.l.b16 %v2227
    %v3193 = vunpack.c.h.b16 %v2227
    %v3194 = vunpack.c.l.b16 %v2228
    %v3195 = vunpack.c.h.b16 %v2228
    %v3196 = vunpack.c.l.b16 %v2229
    %v3197 = vunpack.c.h.b16 %v2229
    %v3198 = vunpack.c.l.b16 %v2230
    %v3199 = vunpack.c.h.b16 %v2230
    %v3200 = vunpack.c.l.b16 %v2231
    %v3201 = vunpack.c.h.b16 %v2231
    %v3202 = vunpack.c.l.b16 %v2232
    %v3203 = vunpack.c.h.b16 %v2232
    %v3204 = vunpack.c.l.b16 %v2233
    %v3205 = vunpack.c.h.b16 %v2233
    %v3206 = vunpack.c.l.b16 %v2234
    %v3207 = vunpack.c.h.b16 %v2234
    %v3208 = vunpack.c.l.b16 %v2235
    %v3209 = vunpack.c.h.b16 %v2235
    %v3210 = vunpack.c.l.b16 %v2236
    %v3211 = vunpack.c.h.b16 %v2236
    %v3212 = vunpack.c.l.b16 %v2237
    %v3213 = vunpack.c.h.b16 %v2237
    %v3214 = vunpack.c.l.b16 %v2238
    %v3215 = vunpack.c.h.b16 %v2238
    %v3216 = vunpack.c.l.b16 %v2239
    %v3217 = vunpack.c.h.b16 %v2239
    %v3218 = vunpack.c.l.b16 %v2240
    %v3219 = vunpack.c.h.b16 %v2240
    %v3220 = vunpack.c.l.b16 %v2241
    %v3221 = vunpack.c.h.b16 %v2241
    %v3222 = vunpack.c.l.b16 %v2242
    %v3223 = vunpack.c.h.b16 %v2242
    %v3224 = vunpack.c.l.b16 %v2243
    %v3225 = vunpack.c.h.b16 %v2243
    %v3226 = vunpack.c.l.b16 %v2244
    %v3227 = vunpack.c.h.b16 %v2244
    %v3228 = vunpack.c.l.b16 %v2245
    %v3229 = vunpack.c.h.b16 %v2245
    %v3230 = vunpack.c.l.b16 %v2246
    %v3231 = vunpack.c.h.b16 %v2246
    %v3232 = vunpack.c.l.b16 %v2247
    %v3233 = vunpack.c.h.b16 %v2247
    %v3234 = vunpack.c.l.b16 %v2248
    %v3235 = vunpack.c.h.b16 %v2248
    %v3236 = vunpack.c.l.b16 %v2249
    %v3237 = vunpack.c.h.b16 %v2249
    %v3238 = vunpack.c.l.b16 %v2250
    %v3239 = vunpack.c.h.b16 %v2250
    %v3240 = vunpack.c.l.b16 %v2251
    %v3241 = vunpack.c.h.b16 %v2251
    %v3242 = vunpack.c.l.b16 %v2252
    %v3243 = vunpack.c.h.b16 %v2252
    %v3244 = vunpack.c.l.b16 %v2253
    %v3245 = vunpack.c.h.b16 %v2253
    %v3246 = vunpack.c.l.b16 %v2254
    %v3247 = vunpack.c.h.b16 %v2254
    %v3248 = vunpack.c.l.b16 %v2255
    %v3249 = vunpack.c.h.b16 %v2255
    %v3250 = vunpack.c.l.b16 %v2256
    %v3251 = vunpack.c.h.b16 %v2256
    %v3252 = vunpack.c.l.b16 %v2257
    %v3253 = vunpack.c.h.b16 %v2257
    %v3254 = vunpack.c.l.b16 %v2258
    %v3255 = vunpack.c.h.b16 %v2258
    %v3256 = vunpack.c.l.b16 %v2259
    %v3257 = vunpack.c.h.b16 %v2259
    %v3258 = vunpack.c.l.b16 %v2260
    %v3259 = vunpack.c.h.b16 %v2260
    %v3260 = vunpack.c.l.b16 %v2261
    %v3261 = vunpack.c.h.b16 %v2261
    %v3262 = vunpack.c.l.b16 %v2262
    %v3263 = vunpack.c.h.b16 %v2262
    %v3264 = vunpack.c.l.b16 %v2263
    %v3265 = vunpack.c.h.b16 %v2263
    %v3266 = vunpack.c.l.b16 %v2264
    %v3267 = vunpack.c.h.b16 %v2264
    %v3268 = vunpack.c.l.b16 %v2265
    %v3269 = vunpack.c.h.b16 %v2265
    %v3270 = vunpack.c.l.b16 %v2266
    %v3271 = vunpack.c.h.b16 %v2266
    %v3272 = vunpack.c.l.b16 %v2267
    %v3273 = vunpack.c.h.b16 %v2267
    %v3274 = vunpack.c.l.b16 %v2268
    %v3275 = vunpack.c.h.b16 %v2268
    %v3276 = vunpack.c.l.b16 %v2269
    %v3277 = vunpack.c.h.b16 %v2269
    %v3278 = vunpack.c.l.b16 %v2270
    %v3279 = vunpack.c.h.b16 %v2270
    %v3280 = vunpack.c.l.b16 %v2271
    %v3281 = vunpack.c.h.b16 %v2271
    %v3282 = vunpack.c.l.b16 %v2272
    %v3283 = vunpack.c.h.b16 %v2272
    %v3284 = vunpack.c.l.b16 %v2273
    %v3285 = vunpack.c.h.b16 %v2273
    %v3286 = vunpack.c.l.b16 %v2274
    %v3287 = vunpack.c.h.b16 %v2274
    %v3288 = vunpack.c.l.b16 %v2275
    %v3289 = vunpack.c.h.b16 %v2275
    %v3290 = vunpack.c.l.b16 %v2276
    %v3291 = vunpack.c.h.b16 %v2276
    %v3292 = vunpack.c.l.b16 %v2277
    %v3293 = vunpack.c.h.b16 %v2277
    %v3294 = vunpack.c.l.b16 %v2278
    %v3295 = vunpack.c.h.b16 %v2278
    %v3296 = vunpack.c.l.b16 %v2279
    %v3297 = vunpack.c.h.b16 %v2279
    %v3298 = vunpack.c.l.b16 %v2280
    %v3299 = vunpack.c.h.b16 %v2280
    %v3300 = vunpack.c.l.b16 %v2281
    %v3301 = vunpack.c.h.b16 %v2281
    %v3302 = vunpack.c.l.b16 %v2282
    %v3303 = vunpack.c.h.b16 %v2282
    %v3304 = vunpack.c.l.b16 %v2283
    %v3305 = vunpack.c.h.b16 %v2283
    %v3306 = vunpack.c.l.b16 %v2284
    %v3307 = vunpack.c.h.b16 %v2284
    %v3308 = vunpack.c.l.b16 %v2285
    %v3309 = vunpack.c.h.b16 %v2285
    %v3310 = vunpack.c.l.b16 %v2286
    %v3311 = vunpack.c.h.b16 %v2286
    %v3312 = vunpack.c.l.b16 %v2287
    %v3313 = vunpack.c.h.b16 %v2287
    %v3314 = vunpack.c.l.b16 %v2288
    %v3315 = vunpack.c.h.b16 %v2288
    %v3316 = vunpack.c.l.b16 %v2289
    %v3317 = vunpack.c.h.b16 %v2289
    %v3318 = vunpack.c.l.b16 %v2290
    %v3319 = vunpack.c.h.b16 %v2290
    %v3320 = vunpack.c.l.b16 %v2291
    %v3321 = vunpack.c.h.b16 %v2291
    %v3322 = vunpack.c.l.b16 %v2292
    %v3323 = vunpack.c.h.b16 %v2292
    %v3324 = vunpack.c.l.b16 %v2293
    %v3325 = vunpack.c.h.b16 %v2293
    %v3326 = vunpack.c.l.b16 %v2294
    %v3327 = vunpack.c.h.b16 %v2294
    %v3328 = vunpack.c.l.b16 %v2295
    %v3329 = vunpack.c.h.b16 %v2295
    %v3330 = vunpack.c.l.b16 %v2296
    %v3331 = vunpack.c.h.b16 %v2296
    %v3332 = vunpack.c.l.b16 %v2297
    %v3333 = vunpack.c.h.b16 %v2297
    %v3334 = vunpack.c.l.b16 %v2298
    %v3335 = vunpack.c.h.b16 %v2298
    %v3336 = vunpack.c.l.b16 %v2299
    %v3337 = vunpack.c.h.b16 %v2299
    %v3338 = vunpack.c.l.b16 %v2300
    %v3339 = vunpack.c.h.b16 %v2300
    %v3340 = vunpack.c.l.b16 %v2301
    %v3341 = vunpack.c.h.b16 %v2301
    %v3342 = vunpack.c.l.b16 %v2302
    %v3343 = vunpack.c.h.b16 %v2302
    %v3344 = vunpack.c.l.b16 %v2303
    %v3345 = vunpack.c.h.b16 %v2303
    %v3346 = vunpack.c.l.b16 %v2304
    %v3347 = vunpack.c.h.b16 %v2304
    %v3348 = vunpack.c.l.b16 %v2305
    %v3349 = vunpack.c.h.b16 %v2305
    %v3350 = vunpack.c.l.b16 %v2306
    %v3351 = vunpack.c.h.b16 %v2306
    %v3352 = vunpack.c.l.b16 %v2307
    %v3353 = vunpack.c.h.b16 %v2307
    %v3354 = vunpack.c.l.b16 %v2308
    %v3355 = vunpack.c.h.b16 %v2308
    %v3356 = vunpack.c.l.b16 %v2309
    %v3357 = vunpack.c.h.b16 %v2309
    %v3358 = vunpack.c.l.b16 %v2310
    %v3359 = vunpack.c.h.b16 %v2310
    %v3360 = vunpack.c.l.b16 %v2311
    %v3361 = vunpack.c.h.b16 %v2311
    %v3362 = vunpack.c.l.b16 %v2312
    %v3363 = vunpack.c.h.b16 %v2312
    %v3364 = vunpack.c.l.b16 %v2313
    %v3365 = vunpack.c.h.b16 %v2313
    %v3366 = vunpack.c.l.b16 %v2314
    %v3367 = vunpack.c.h.b16 %v2314
    %v3368 = vunpack.c.l.b16 %v2315
    %v3369 = vunpack.c.h.b16 %v2315
    %v3370 = vunpack.c.l.b16 %v2316
    %v3371 = vunpack.c.h.b16 %v2316
    %v3372 = vunpack.c.l.b16 %v2317
    %v3373 = vunpack.c.h.b16 %v2317
    %v3374 = vunpack.c.l.b16 %v2318
    %v3375 = vunpack.c.h.b16 %v2318
    %v3376 = vunpack.c.l.b16 %v2319
    %v3377 = vunpack.c.h.b16 %v2319
    %v3378 = vunpack.c.l.b16 %v2320
    %v3379 = vunpack.c.h.b16 %v2320
    %v3380 = vunpack.c.l.b16 %v2321
    %v3381 = vunpack.c.h.b16 %v2321
    %v3382 = vunpack.c.l.b16 %v2322
    %v3383 = vunpack.c.h.b16 %v2322
    %v3384 = vunpack.c.l.b16 %v2323
    %v3385 = vunpack.c.h.b16 %v2323
    %v3386 = vunpack.c.l.b16 %v2324
    %v3387 = vunpack.c.h.b16 %v2324
    %v3388 = vunpack.c.l.b16 %v2325
    %v3389 = vunpack.c.h.b16 %v2325
    %v3390 = vunpack.c.l.b16 %v2326
    %v3391 = vunpack.c.h.b16 %v2326
    %v3392 = vunpack.c.l.b16 %v2327
    %v3393 = vunpack.c.h.b16 %v2327
    %v3394 = vunpack.c.l.b16 %v2328
    %v3395 = vunpack.c.h.b16 %v2328
    %v3396 = vunpack.c.l.b16 %v2329
    %v3397 = vunpack.c.h.b16 %v2329
    %v3398 = vunpack.c.l.b16 %v2330
    %v3399 = vunpack.c.h.b16 %v2330
    %v3400 = vunpack.c.l.b16 %v2331
    %v3401 = vunpack.c.h.b16 %v2331
    %v3402 = vunpack.c.l.b16 %v2332
    %v3403 = vunpack.c.h.b16 %v2332
    %v3404 = vunpack.c.l.b16 %v2333
    %v3405 = vunpack.c.h.b16 %v2333
    %v3406 = vunpack.c.l.b16 %v2334
    %v3407 = vunpack.c.h.b16 %v2334
    %v3408 = vunpack.c.l.b16 %v2335
    %v3409 = vunpack.c.h.b16 %v2335
    %v3410 = vunpack.c.l.b16 %v2336
    %v3411 = vunpack.c.h.b16 %v2336
    %v3412 = vunpack.c.l.b16 %v2337
    %v3413 = vunpack.c.h.b16 %v2337
    %v3414 = vunpack.c.l.b16 %v2338
    %v3415 = vunpack.c.h.b16 %v2338
    %v3416 = vunpack.c.l.b16 %v2339
    %v3417 = vunpack.c.h.b16 %v2339
    %v3418 = vunpack.c.l.b16 %v2340
    %v3419 = vunpack.c.h.b16 %v2340
    %v3420 = vunpack.c.l.b16 %v2341
    %v3421 = vunpack.c.h.b16 %v2341
    %v3422 = vunpack.c.l.b16 %v2342
    %v3423 = vunpack.c.h.b16 %v2342
    %v3424 = vunpack.c.l.b16 %v2343
    %v3425 = vunpack.c.h.b16 %v2343
    %v3426 = vunpack.c.l.b16 %v2344
    %v3427 = vunpack.c.h.b16 %v2344
    %v3428 = vunpack.c.l.b16 %v2345
    %v3429 = vunpack.c.h.b16 %v2345
    %v3430 = vunpack.c.l.b16 %v2346
    %v3431 = vunpack.c.h.b16 %v2346
    %v3432 = vunpack.c.l.b16 %v2347
    %v3433 = vunpack.c.h.b16 %v2347
    %v3434 = vunpack.c.l.b16 %v2348
    %v3435 = vunpack.c.h.b16 %v2348
    %v3436 = vunpack.c.l.b16 %v2349
    %v3437 = vunpack.c.h.b16 %v2349
    %v3438 = vunpack.c.l.b16 %v2350
    %v3439 = vunpack.c.h.b16 %v2350
    %v3440 = vunpack.c.l.b16 %v2351
    %v3441 = vunpack.c.h.b16 %v2351
    %v3442 = vunpack.c.l.b16 %v2352
    %v3443 = vunpack.c.h.b16 %v2352
    %v3444 = vunpack.c.l.b16 %v2353
    %v3445 = vunpack.c.h.b16 %v2353
    %v3446 = vunpack.c.l.b16 %v2354
    %v3447 = vunpack.c.h.b16 %v2354
    %v3448 = vunpack.c.l.b16 %v2355
    %v3449 = vunpack.c.h.b16 %v2355
    %v3450 = vunpack.c.l.b16 %v2356
    %v3451 = vunpack.c.h.b16 %v2356
    %v3452 = vunpack.c.l.b16 %v2357
    %v3453 = vunpack.c.h.b16 %v2357
    %v3454 = vunpack.c.l.b16 %v2358
    %v3455 = vunpack.c.h.b16 %v2358
    %v3456 = vunpack.c.l.b16 %v2359
    %v3457 = vunpack.c.h.b16 %v2359
    %v3458 = vunpack.c.l.b16 %v2360
    %v3459 = vunpack.c.h.b16 %v2360
    %v3460 = vunpack.c.l.b16 %v2361
    %v3461 = vunpack.c.h.b16 %v2361
    %v3462 = vunpack.c.l.b16 %v2362
    %v3463 = vunpack.c.h.b16 %v2362
    %v3464 = vunpack.c.l.b16 %v2363
    %v3465 = vunpack.c.h.b16 %v2363
    %v3466 = vunpack.c.l.b16 %v2364
    %v3467 = vunpack.c.h.b16 %v2364
    %v3468 = vunpack.c.l.b16 %v2365
    %v3469 = vunpack.c.h.b16 %v2365
    %v3470 = vunpack.c.l.b16 %v2366
    %v3471 = vunpack.c.h.b16 %v2366
    %v3472 = vunpack.c.l.b16 %v2367
    %v3473 = vunpack.c.h.b16 %v2367
    %v3474 = vunpack.c.l.b16 %v2368
    %v3475 = vunpack.c.h.b16 %v2368
    %v3476 = vunpack.c.l.b16 %v2369
    %v3477 = vunpack.c.h.b16 %v2369
    %v3478 = vunpack.c.l.b16 %v2370
    %v3479 = vunpack.c.h.b16 %v2370
    %v3480 = vunpack.c.l.b16 %v2371
    %v3481 = vunpack.c.h.b16 %v2371
    %v3482 = vunpack.c.l.b16 %v2372
    %v3483 = vunpack.c.h.b16 %v2372
    %v3484 = vunpack.c.l.b16 %v2373
    %v3485 = vunpack.c.h.b16 %v2373
    %v3486 = vunpack.c.l.b16 %v2374
    %v3487 = vunpack.c.h.b16 %v2374
    %v3488 = vunpack.c.l.b16 %v2375
    %v3489 = vunpack.c.h.b16 %v2375
    %v3490 = vunpack.c.l.b16 %v2376
    %v3491 = vunpack.c.h.b16 %v2376
    %v3492 = vunpack.c.l.b16 %v2377
    %v3493 = vunpack.c.h.b16 %v2377
    %v3494 = vunpack.c.l.b16 %v2378
    %v3495 = vunpack.c.h.b16 %v2378
    %v3496 = vunpack.c.l.b16 %v2379
    %v3497 = vunpack.c.h.b16 %v2379
    %v3498 = vunpack.c.l.b16 %v2380
    %v3499 = vunpack.c.h.b16 %v2380
    %v3500 = vunpack.c.l.b16 %v2381
    %v3501 = vunpack.c.h.b16 %v2381
    %v3502 = vunpack.c.l.b16 %v2382
    %v3503 = vunpack.c.h.b16 %v2382
    %v3504 = vunpack.c.l.b16 %v2383
    %v3505 = vunpack.c.h.b16 %v2383
    %v3506 = vunpack.c.l.b16 %v2384
    %v3507 = vunpack.c.h.b16 %v2384
    %v3508 = vunpack.c.l.b16 %v2385
    %v3509 = vunpack.c.h.b16 %v2385
    %v3510 = vunpack.c.l.b16 %v2386
    %v3511 = vunpack.c.h.b16 %v2386
    %v3512 = vunpack.c.l.b16 %v2387
    %v3513 = vunpack.c.h.b16 %v2387
    %v3514 = vunpack.c.l.b16 %v2388
    %v3515 = vunpack.c.h.b16 %v2388
    %v3516 = vunpack.c.l.b16 %v2389
    %v3517 = vunpack.c.h.b16 %v2389
    %v3518 = vunpack.c.l.b16 %v2390
    %v3519 = vunpack.c.h.b16 %v2390
    %v3520 = vunpack.c.l.b16 %v2391
    %v3521 = vunpack.c.h.b16 %v2391
    %v3522 = vunpack.c.l.b16 %v2392
    %v3523 = vunpack.c.h.b16 %v2392
    %v3524 = vunpack.c.l.b16 %v2393
    %v3525 = vunpack.c.h.b16 %v2393
    %v3526 = vunpack.c.l.b16 %v2394
    %v3527 = vunpack.c.h.b16 %v2394
    %v3528 = vunpack.c.l.b16 %v2395
    %v3529 = vunpack.c.h.b16 %v2395
    %v3530 = vunpack.c.l.b16 %v2396
    %v3531 = vunpack.c.h.b16 %v2396
    %v3532 = vunpack.c.l.b16 %v2397
    %v3533 = vunpack.c.h.b16 %v2397
    %v3534 = vunpack.c.l.b16 %v2398
    %v3535 = vunpack.c.h.b16 %v2398
    %v3536 = vunpack.c.l.b16 %v2399
    %v3537 = vunpack.c.h.b16 %v2399
    %v3538 = vunpack.c.l.b16 %v2400
    %v3539 = vunpack.c.h.b16 %v2400
    %v3540 = vunpack.c.l.b16 %v2401
    %v3541 = vunpack.c.h.b16 %v2401
    %v3542 = vunpack.c.l.b16 %v2402
    %v3543 = vunpack.c.h.b16 %v2402
    %v3544 = vunpack.c.l.b16 %v2403
    %v3545 = vunpack.c.h.b16 %v2403
    %v3546 = vunpack.c.l.b16 %v2404
    %v3547 = vunpack.c.h.b16 %v2404
    %v3548 = vunpack.c.l.b16 %v2405
    %v3549 = vunpack.c.h.b16 %v2405
    %v3550 = vunpack.c.l.b16 %v2406
    %v3551 = vunpack.c.h.b16 %v2406
    %v3552 = vunpack.c.l.b16 %v2407
    %v3553 = vunpack.c.h.b16 %v2407
    %v3554 = vunpack.c.l.b16 %v2408
    %v3555 = vunpack.c.h.b16 %v2408
    %v3556 = vunpack.c.l.b16 %v2409
    %v3557 = vunpack.c.h.b16 %v2409
    %v3558 = vunpack.c.l.b16 %v2410
    %v3559 = vunpack.c.h.b16 %v2410
    %v3560 = vunpack.c.l.b16 %v2411
    %v3561 = vunpack.c.h.b16 %v2411
    %v3562 = vunpack.c.l.b16 %v2412
    %v3563 = vunpack.c.h.b16 %v2412
    %v3564 = vunpack.c.l.b16 %v2413
    %v3565 = vunpack.c.h.b16 %v2413
    %v3566 = vpack.c.b16 %v3062, %v3054
    %v3567 = vpack.c.b16 %v3063, %v3055
    %v3568 = vpack.c.b16 %v3064, %v3056
    %v3569 = vpack.c.b16 %v3065, %v3057
    %v3570 = vpack.c.b16 %v3066, %v3058
    %v3571 = vpack.c.b16 %v3067, %v3059
    %v3572 = vpack.c.b16 %v3068, %v3060
    %v3573 = vpack.c.b16 %v3069, %v3061
    %v3574 = vpack.c.b16 %v3078, %v3070
    %v3575 = vpack.c.b16 %v3079, %v3071
    %v3576 = vpack.c.b16 %v3080, %v3072
    %v3577 = vpack.c.b16 %v3081, %v3073
    %v3578 = vpack.c.b16 %v3082, %v3074
    %v3579 = vpack.c.b16 %v3083, %v3075
    %v3580 = vpack.c.b16 %v3084, %v3076
    %v3581 = vpack.c.b16 %v3085, %v3077
    %v3582 = vpack.c.b16 %v3094, %v3086
    %v3583 = vpack.c.b16 %v3095, %v3087
    %v3584 = vpack.c.b16 %v3096, %v3088
    %v3585 = vpack.c.b16 %v3097, %v3089
    %v3586 = vpack.c.b16 %v3098, %v3090
    %v3587 = vpack.c.b16 %v3099, %v3091
    %v3588 = vpack.c.b16 %v3100, %v3092
    %v3589 = vpack.c.b16 %v3101, %v3093
    %v3590 = vpack.c.b16 %v3110, %v3102
    %v3591 = vpack.c.b16 %v3111, %v3103
    %v3592 = vpack.c.b16 %v3112, %v3104
    %v3593 = vpack.c.b16 %v3113, %v3105
    %v3594 = vpack.c.b16 %v3114, %v3106
    %v3595 = vpack.c.b16 %v3115, %v3107
    %v3596 = vpack.c.b16 %v3116, %v3108
    %v3597 = vpack.c.b16 %v3117, %v3109
    %v3598 = vpack.c.b16 %v3126, %v3118
    %v3599 = vpack.c.b16 %v3127, %v3119
    %v3600 = vpack.c.b16 %v3128, %v3120
    %v3601 = vpack.c.b16 %v3129, %v3121
    %v3602 = vpack.c.b16 %v3130, %v3122
    %v3603 = vpack.c.b16 %v3131, %v3123
    %v3604 = vpack.c.b16 %v3132, %v3124
    %v3605 = vpack.c.b16 %v3133, %v3125
    %v3606 = vpack.c.b16 %v3142, %v3134
    %v3607 = vpack.c.b16 %v3143, %v3135
    %v3608 = vpack.c.b16 %v3144, %v3136
    %v3609 = vpack.c.b16 %v3145, %v3137
    %v3610 = vpack.c.b16 %v3146, %v3138
    %v3611 = vpack.c.b16 %v3147, %v3139
    %v3612 = vpack.c.b16 %v3148, %v3140
    %v3613 = vpack.c.b16 %v3149, %v3141
    %v3614 = vpack.c.b16 %v3158, %v3150
    %v3615 = vpack.c.b16 %v3159, %v3151
    %v3616 = vpack.c.b16 %v3160, %v3152
    %v3617 = vpack.c.b16 %v3161, %v3153
    %v3618 = vpack.c.b16 %v3162, %v3154
    %v3619 = vpack.c.b16 %v3163, %v3155
    %v3620 = vpack.c.b16 %v3164, %v3156
    %v3621 = vpack.c.b16 %v3165, %v3157
    %v3622 = vpack.c.b16 %v3174, %v3166
    %v3623 = vpack.c.b16 %v3175, %v3167
    %v3624 = vpack.c.b16 %v3176, %v3168
    %v3625 = vpack.c.b16 %v3177, %v3169
    %v3626 = vpack.c.b16 %v3178, %v3170
    %v3627 = vpack.c.b16 %v3179, %v3171
    %v3628 = vpack.c.b16 %v3180, %v3172
    %v3629 = vpack.c.b16 %v3181, %v3173
    %v3630 = vpack.c.b16 %v3190, %v3182
    %v3631 = vpack.c.b16 %v3191, %v3183
    %v3632 = vpack.c.b16 %v3192, %v3184
    %v3633 = vpack.c.b16 %v3193, %v3185
    %v3634 = vpack.c.b16 %v3194, %v3186
    %v3635 = vpack.c.b16 %v3195, %v3187
    %v3636 = vpack.c.b16 %v3196, %v3188
    %v3637 = vpack.c.b16 %v3197, %v3189
    %v3638 = vpack.c.b16 %v3206, %v3198
    %v3639 = vpack.c.b16 %v3207, %v3199
    %v3640 = vpack.c.b16 %v3208, %v3200
    %v3641 = vpack.c.b16 %v3209, %v3201
    %v3642 = vpack.c.b16 %v3210, %v3202
    %v3643 = vpack.c.b16 %v3211, %v3203
    %v3644 = vpack.c.b16 %v3212, %v3204
    %v3645 = vpack.c.b16 %v3213, %v3205
    %v3646 = vpack.c.b16 %v3222, %v3214
    %v3647 = vpack.c.b16 %v3223, %v3215
    %v3648 = vpack.c.b16 %v3224, %v3216
    %v3649 = vpack.c.b16 %v3225, %v3217
    %v3650 = vpack.c.b16 %v3226, %v3218
    %v3651 = vpack.c.b16 %v3227, %v3219
    %v3652 = vpack.c.b16 %v3228, %v3220
    %v3653 = vpack.c.b16 %v3229, %v3221
    %v3654 = vpack.c.b16 %v3238, %v3230
    %v3655 = vpack.c.b16 %v3239, %v3231
    %v3656 = vpack.c.b16 %v3240, %v3232
    %v3657 = vpack.c.b16 %v3241, %v3233
    %v3658 = vpack.c.b16 %v3242, %v3234
    %v3659 = vpack.c.b16 %v3243, %v3235
    %v3660 = vpack.c.b16 %v3244, %v3236
    %v3661 = vpack.c.b16 %v3245, %v3237
    %v3662 = vpack.c.b16 %v3254, %v3246
    %v3663 = vpack.c.b16 %v3255, %v3247
    %v3664 = vpack.c.b16 %v3256, %v3248
    %v3665 = vpack.c.b16 %v3257, %v3249
    %v3666 = vpack.c.b16 %v3258, %v3250
    %v3667 = vpack.c.b16 %v3259, %v3251
    %v3668 = vpack.c.b16 %v3260, %v3252
    %v3669 = vpack.c.b16 %v3261, %v3253
    %v3670 = vpack.c.b16 %v3270, %v3262
    %v3671 = vpack.c.b16 %v3271, %v3263
    %v3672 = vpack.c.b16 %v3272, %v3264
    %v3673 = vpack.c.b16 %v3273, %v3265
    %v3674 = vpack.c.b16 %v3274, %v3266
    %v3675 = vpack.c.b16 %v3275, %v3267
    %v3676 = vpack.c.b16 %v3276, %v3268
    %v3677 = vpack.c.b16 %v3277, %v3269
    %v3678 = vpack.c.b16 %v3286, %v3278
    %v3679 = vpack.c.b16 %v3287, %v3279
    %v3680 = vpack.c.b16 %v3288, %v3280
    %v3681 = vpack.c.b16 %v3289, %v3281
    %v3682 = vpack.c.b16 %v3290, %v3282
    %v3683 = vpack.c.b16 %v3291, %v3283
    %v3684 = vpack.c.b16 %v3292, %v3284
    %v3685 = vpack.c.b16 %v3293, %v3285
    %v3686 = vpack.c.b16 %v3302, %v3294
    %v3687 = vpack.c.b16 %v3303, %v3295
    %v3688 = vpack.c.b16 %v3304, %v3296
    %v3689 = vpack.c.b16 %v3305, %v3297
    %v3690 = vpack.c.b16 %v3306, %v3298
    %v3691 = vpack.c.b16 %v3307, %v3299
    %v3692 = vpack.c.b16 %v3308, %v3300
    %v3693 = vpack.c.b16 %v3309, %v3301
    %v3694 = vpack.c.b16 %v3318, %v3310
    %v3695 = vpack.c.b16 %v3319, %v3311
    %v3696 = vpack.c.b16 %v3320, %v3312
    %v3697 = vpack.c.b16 %v3321, %v3313
    %v3698 = vpack.c.b16 %v3322, %v3314
    %v3699 = vpack.c.b16 %v3323, %v3315
    %v3700 = vpack.c.b16 %v3324, %v3316
    %v3701 = vpack.c.b16 %v3325, %v3317
    %v3702 = vpack.c.b16 %v3334, %v3326
    %v3703 = vpack.c.b16 %v3335, %v3327
    %v3704 = vpack.c.b16 %v3336, %v3328
    %v3705 = vpack.c.b16 %v3337, %v3329
    %v3706 = vpack.c.b16 %v3338, %v3330
    %v3707 = vpack.c.b16 %v3339, %v3331
    %v3708 = vpack.c.b16 %v3340, %v3332
    %v3709 = vpack.c.b16 %v3341, %v3333
    %v3710 = vpack.c.b16 %v3350, %v3342
    %v3711 = vpack.c.b16 %v3351, %v3343
    %v3712 = vpack.c.b16 %v3352, %v3344
    %v3713 = vpack.c.b16 %v3353, %v3345
    %v3714 = vpack.c.b16 %v3354, %v3346
    %v3715 = vpack.c.b16 %v3355, %v3347
    %v3716 = vpack.c.b16 %v3356, %v3348
    %v3717 = vpack.c.b16 %v3357, %v3349
    %v3718 = vpack.c.b16 %v3366, %v3358
    %v3719 = vpack.c.b16 %v3367, %v3359
    %v3720 = vpack.c.b16 %v3368, %v3360
    %v3721 = vpack.c.b16 %v3369, %v3361
    %v3722 = vpack.c.b16 %v3370, %v3362
    %v3723 = vpack.c.b16 %v3371, %v3363
    %v3724 = vpack.c.b16 %v3372, %v3364
    %v3725 = vpack.c.b16 %v3373, %v3365
    %v3726 = vpack.c.b16 %v3382, %v3374
    %v3727 = vpack.c.b16 %v3383, %v3375
    %v3728 = vpack.c.b16 %v3384, %v3376
    %v3729 = vpack.c.b16 %v3385, %v3377
    %v3730 = vpack.c.b16 %v3386, %v3378
    %v3731 = vpack.c.b16 %v3387, %v3379
    %v3732 = vpack.c.b16 %v3388, %v3380
    %v3733 = vpack.c.b16 %v3389, %v3381
    %v3734 = vpack.c.b16 %v3398, %v3390
    %v3735 = vpack.c.b16 %v3399, %v3391
    %v3736 = vpack.c.b16 %v3400, %v3392
    %v3737 = vpack.c.b16 %v3401, %v3393
    %v3738 = vpack.c.b16 %v3402, %v3394
    %v3739 = vpack.c.b16 %v3403, %v3395
    %v3740 = vpack.c.b16 %v3404, %v3396
    %v3741 = vpack.c.b16 %v3405, %v3397
    %v3742 = vpack.c.b16 %v3414, %v3406
    %v3743 = vpack.c.b16 %v3415, %v3407
    %v3744 = vpack.c.b16 %v3416, %v3408
    %v3745 = vpack.c.b16 %v3417, %v3409
    %v3746 = vpack.c.b16 %v3418, %v3410
    %v3747 = vpack.c.b16 %v3419, %v3411
    %v3748 = vpack.c.b16 %v3420, %v3412
    %v3749 = vpack.c.b16 %v3421, %v3413
    %v3750 = vpack.c.b16 %v3430, %v3422
    %v3751 = vpack.c.b16 %v3431, %v3423
    %v3752 = vpack.c.b16 %v3432, %v3424
    %v3753 = vpack.c.b16 %v3433, %v3425
    %v3754 = vpack.c.b16 %v3434, %v3426
    %v3755 = vpack.c.b16 %v3435, %v3427
    %v3756 = vpack.c.b16 %v3436, %v3428
    %v3757 = vpack.c.b16 %v3437, %v3429
    %v3758 = vpack.c.b16 %v3446, %v3438
    %v3759 = vpack.c.b16 %v3447, %v3439
    %v3760 = vpack.c.b16 %v3448, %v3440
    %v3761 = vpack.c.b16 %v3449, %v3441
    %v3762 = vpack.c.b16 %v3450, %v3442
    %v3763 = vpack.c.b16 %v3451, %v3443
    %v3764 = vpack.c.b16 %v3452, %v3444
    %v3765 = vpack.c.b16 %v3453, %v3445
    %v3766 = vpack.c.b16 %v3462, %v3454
    %v3767 = vpack.c.b16 %v3463, %v3455
    %v3768 = vpack.c.b16 %v3464, %v3456
    %v3769 = vpack.c.b16 %v3465, %v3457
    %v3770 = vpack.c.b16 %v3466, %v3458
    %v3771 = vpack.c.b16 %v3467, %v3459
    %v3772 = vpack.c.b16 %v3468, %v3460
    %v3773 = vpack.c.b16 %v3469, %v3461
    %v3774 = vpack.c.b16 %v3478, %v3470
    %v3775 = vpack.c.b16 %v3479, %v3471
    %v3776 = vpack.c.b16 %v3480, %v3472
    %v3777 = vpack.c.b16 %v3481, %v3473
    %v3778 = vpack.c.b16 %v3482, %v3474
    %v3779 = vpack.c.b16 %v3483, %v3475
    %v3780 = vpack.c.b16 %v3484, %v3476
    %v3781 = vpack.c.b16 %v3485, %v3477
    %v3782 = vpack.c.b16 %v3494, %v3486
    %v3783 = vpack.c.b16 %v3495, %v3487
    %v3784 = vpack.c.b16 %v3496, %v3488
    %v3785 = vpack.c.b16 %v3497, %v3489
    %v3786 = vpack.c.b16 %v3498, %v3490
    %v3787 = vpack.c.b16 %v3499, %v3491
    %v3788 = vpack.c.b16 %v3500, %v3492
    %v3789 = vpack.c.b16 %v3501, %v3493
    %v3790 = vpack.c.b16 %v3510, %v3502
    %v3791 = vpack.c.b16 %v3511, %v3503
    %v3792 = vpack.c.b16 %v3512, %v3504
    %v3793 = vpack.c.b16 %v3513, %v3505
    %v3794 = vpack.c.b16 %v3514, %v3506
    %v3795 = vpack.c.b16 %v3515, %v3507
    %v3796 = vpack.c.b16 %v3516, %v3508
    %v3797 = vpack.c.b16 %v3517, %v3509
    %v3798 = vpack.c.b16 %v3526, %v3518
    %v3799 = vpack.c.b16 %v3527, %v3519
    %v3800 = vpack.c.b16 %v3528, %v3520
    %v3801 = vpack.c.b16 %v3529, %v3521
    %v3802 = vpack.c.b16 %v3530, %v3522
    %v3803 = vpack.c.b16 %v3531, %v3523
    %v3804 = vpack.c.b16 %v3532, %v3524
    %v3805 = vpack.c.b16 %v3533, %v3525
    %v3806 = vpack.c.b16 %v3542, %v3534
    %v3807 = vpack.c.b16 %v3543, %v3535
    %v3808 = vpack.c.b16 %v3544, %v3536
    %v3809 = vpack.c.b16 %v3545, %v3537
    %v3810 = vpack.c.b16 %v3546, %v3538
    %v3811 = vpack.c.b16 %v3547, %v3539
    %v3812 = vpack.c.b16 %v3548, %v3540
    %v3813 = vpack.c.b16 %v3549, %v3541
    %v3814 = vpack.c.b16 %v3558, %v3550
    %v3815 = vpack.c.b16 %v3559, %v3551
    %v3816 = vpack.c.b16 %v3560, %v3552
    %v3817 = vpack.c.b16 %v3561, %v3553
    %v3818 = vpack.c.b16 %v3562, %v3554
    %v3819 = vpack.c.b16 %v3563, %v3555
    %v3820 = vpack.c.b16 %v3564, %v3556
    %v3821 = vpack.c.b16 %v3565, %v3557
    %4078 = vmatprep.subr.bf16.mxu0 0
    %4079 = vmatpush1.bf16.msra.mxu0 %v2101
    %4080 = vmatprep.subr.bf16.mxu0 0
    %4081 = vmatpush1.bf16.msra.mxu0 %v2100
    %4082 = vmatprep.subr.bf16.mxu0 0
    %4083 = vmatpush1.bf16.msra.mxu0 %v2099
    %4084 = vmatprep.subr.bf16.mxu0 0
    %4085 = vmatpush1.bf16.msra.mxu0 %v2098
    %4086 = vmatprep.subr.bf16.mxu0 0
    %4087 = vmatpush1.bf16.msra.mxu0 %v2097
    %4088 = vmatprep.subr.bf16.mxu0 0
    %4089 = vmatpush1.bf16.msra.mxu0 %v2096
    %4090 = vmatprep.subr.bf16.mxu0 0
    %4091 = vmatpush1.bf16.msra.mxu0 %v2095
    %4092 = vmatprep.subr.bf16.mxu0 0
    %4093 = vmatpush1.bf16.msra.mxu0 %v2094
    %4094 = vmatprep.subr.bf16.mxu0 0
    %4095 = vmatpush2.bf16.msra.mxu0 %v2109
    %4096 = vmatprep.subr.bf16.mxu0 0
    %4097 = vmatpush2.bf16.msra.mxu0 %v2108
    %4098 = vmatprep.subr.bf16.mxu0 0
    %4099 = vmatpush2.bf16.msra.mxu0 %v2107
    %4100 = vmatprep.subr.bf16.mxu0 0
    %4101 = vmatpush2.bf16.msra.mxu0 %v2106
    %4102 = vmatprep.subr.bf16.mxu0 0
    %4103 = vmatpush2.bf16.msra.mxu0 %v2105
    %4104 = vmatprep.subr.bf16.mxu0 0
    %4105 = vmatpush2.bf16.msra.mxu0 %v2104
    %4106 = vmatprep.subr.bf16.mxu0 0
    %4107 = vmatpush2.bf16.msra.mxu0 %v2103
    %4108 = vmatprep.subr.bf16.mxu0 0
    %4109 = vmatpush2.bf16.msra.mxu0 %v2102
    %4110 = vmatprep.mubr.bf16.mxu0 %v3567
    %4111 = vmatmul.mubr.bf16.gmra.mxu0 %v3566
    %v4112 = vpop.f32.mrf.mxu0
    %v4113 = vadd.f32 %v2481, %v4112
    %v4114 = vpop.f32.mrf.mxu0
    %v4115 = vpop.f32.mrf.mxu0
    %v4116 = vadd.f32 %v2486, %v4115
    %v4117 = vpop.f32.mrf.mxu0
    %4118 = vmatprep.mubr.bf16.mxu0 %v3575
    %4119 = vmatmul.mubr.bf16.gmra.mxu0 %v3574
    %v4120 = vpop.f32.mrf.mxu0
    %v4121 = vadd.f32 %v2491, %v4120
    %v4122 = vpop.f32.mrf.mxu0
    %v4123 = vpop.f32.mrf.mxu0
    %v4124 = vadd.f32 %v2496, %v4123
    %v4125 = vpop.f32.mrf.mxu0
    %4126 = vmatprep.mubr.bf16.mxu0 %v3583
    %4127 = vmatmul.mubr.bf16.gmra.mxu0 %v3582
    %v4128 = vpop.f32.mrf.mxu0
    %v4129 = vadd.f32 %v2501, %v4128
    %v4130 = vpop.f32.mrf.mxu0
    %v4131 = vpop.f32.mrf.mxu0
    %v4132 = vadd.f32 %v2506, %v4131
    %v4133 = vpop.f32.mrf.mxu0
    %4134 = vmatprep.mubr.bf16.mxu0 %v3591
    %4135 = vmatmul.mubr.bf16.gmra.mxu0 %v3590
    %v4136 = vpop.f32.mrf.mxu0
    %v4137 = vadd.f32 %v2511, %v4136
    %v4138 = vpop.f32.mrf.mxu0
    %v4139 = vpop.f32.mrf.mxu0
    %v4140 = vadd.f32 %v2516, %v4139
    %v4141 = vpop.f32.mrf.mxu0
    %4142 = vmatprep.mubr.bf16.mxu0 %v3599
    %4143 = vmatmul.mubr.bf16.gmra.mxu0 %v3598
    %v4144 = vpop.f32.mrf.mxu0
    %v4145 = vadd.f32 %v2521, %v4144
    %v4146 = vpop.f32.mrf.mxu0
    %v4147 = vpop.f32.mrf.mxu0
    %v4148 = vadd.f32 %v2526, %v4147
    %v4149 = vpop.f32.mrf.mxu0
    %4150 = vmatprep.mubr.bf16.mxu0 %v3607
    %4151 = vmatmul.mubr.bf16.gmra.mxu0 %v3606
    %v4152 = vpop.f32.mrf.mxu0
    %v4153 = vadd.f32 %v2531, %v4152
    %v4154 = vpop.f32.mrf.mxu0
    %v4155 = vpop.f32.mrf.mxu0
    %v4156 = vadd.f32 %v2536, %v4155
    %v4157 = vpop.f32.mrf.mxu0
    %4158 = vmatprep.mubr.bf16.mxu0 %v3615
    %4159 = vmatmul.mubr.bf16.gmra.mxu0 %v3614
    %v4160 = vpop.f32.mrf.mxu0
    %v4161 = vadd.f32 %v2541, %v4160
    %v4162 = vpop.f32.mrf.mxu0
    %v4163 = vpop.f32.mrf.mxu0
    %v4164 = vadd.f32 %v2546, %v4163
    %v4165 = vpop.f32.mrf.mxu0
    %4166 = vmatprep.mubr.bf16.mxu0 %v3623
    %4167 = vmatmul.mubr.bf16.gmra.mxu0 %v3622
    %v4168 = vpop.f32.mrf.mxu0
    %v4169 = vadd.f32 %v2551, %v4168
    %v4170 = vpop.f32.mrf.mxu0
    %v4171 = vpop.f32.mrf.mxu0
    %v4172 = vadd.f32 %v2556, %v4171
    %v4173 = vpop.f32.mrf.mxu0
    %4174 = vmatprep.mubr.bf16.mxu0 %v3631
    %4175 = vmatmul.mubr.bf16.gmra.mxu0 %v3630
    %v4176 = vpop.f32.mrf.mxu0
    %v4177 = vadd.f32 %v2561, %v4176
    %v4178 = vpop.f32.mrf.mxu0
    %v4179 = vpop.f32.mrf.mxu0
    %v4180 = vadd.f32 %v2566, %v4179
    %v4181 = vpop.f32.mrf.mxu0
    %4182 = vmatprep.mubr.bf16.mxu0 %v3639
    %4183 = vmatmul.mubr.bf16.gmra.mxu0 %v3638
    %v4184 = vpop.f32.mrf.mxu0
    %v4185 = vadd.f32 %v2571, %v4184
    %v4186 = vpop.f32.mrf.mxu0
    %v4187 = vpop.f32.mrf.mxu0
    %v4188 = vadd.f32 %v2576, %v4187
    %v4189 = vpop.f32.mrf.mxu0
    %4190 = vmatprep.mubr.bf16.mxu0 %v3647
    %4191 = vmatmul.mubr.bf16.gmra.mxu0 %v3646
    %v4192 = vpop.f32.mrf.mxu0
    %v4193 = vadd.f32 %v2581, %v4192
    %v4194 = vpop.f32.mrf.mxu0
    %v4195 = vpop.f32.mrf.mxu0
    %v4196 = vadd.f32 %v2586, %v4195
    %v4197 = vpop.f32.mrf.mxu0
    %4198 = vmatprep.mubr.bf16.mxu0 %v3655
    %4199 = vmatmul.mubr.bf16.gmra.mxu0 %v3654
    %v4200 = vpop.f32.mrf.mxu0
    %v4201 = vadd.f32 %v2591, %v4200
    %v4202 = vpop.f32.mrf.mxu0
    %v4203 = vpop.f32.mrf.mxu0
    %v4204 = vadd.f32 %v2596, %v4203
    %v4205 = vpop.f32.mrf.mxu0
    %4206 = vmatprep.mubr.bf16.mxu0 %v3663
    %4207 = vmatmul.mubr.bf16.gmra.mxu0 %v3662
    %v4208 = vpop.f32.mrf.mxu0
    %v4209 = vadd.f32 %v2601, %v4208
    %v4210 = vpop.f32.mrf.mxu0
    %v4211 = vpop.f32.mrf.mxu0
    %v4212 = vadd.f32 %v2606, %v4211
    %v4213 = vpop.f32.mrf.mxu0
    %4214 = vmatprep.mubr.bf16.mxu0 %v3671
    %4215 = vmatmul.mubr.bf16.gmra.mxu0 %v3670
    %v4216 = vpop.f32.mrf.mxu0
    %v4217 = vadd.f32 %v2611, %v4216
    %v4218 = vpop.f32.mrf.mxu0
    %v4219 = vpop.f32.mrf.mxu0
    %v4220 = vadd.f32 %v2616, %v4219
    %v4221 = vpop.f32.mrf.mxu0
    %4222 = vmatprep.mubr.bf16.mxu0 %v3679
    %4223 = vmatmul.mubr.bf16.gmra.mxu0 %v3678
    %v4224 = vpop.f32.mrf.mxu0
    %v4225 = vadd.f32 %v2621, %v4224
    %v4226 = vpop.f32.mrf.mxu0
    %v4227 = vpop.f32.mrf.mxu0
    %v4228 = vadd.f32 %v2626, %v4227
    %v4229 = vpop.f32.mrf.mxu0
    %4230 = vmatprep.mubr.bf16.mxu0 %v3687
    %4231 = vmatmul.mubr.bf16.gmra.mxu0 %v3686
    %v4232 = vpop.f32.mrf.mxu0
    %v4233 = vadd.f32 %v2631, %v4232
    %v4234 = vpop.f32.mrf.mxu0
    %v4235 = vpop.f32.mrf.mxu0
    %v4236 = vadd.f32 %v2636, %v4235
    %v4237 = vpop.f32.mrf.mxu0
    %4238 = vmatprep.mubr.bf16.mxu0 %v3695
    %4239 = vmatmul.mubr.bf16.gmra.mxu0 %v3694
    %v4240 = vpop.f32.mrf.mxu0
    %v4241 = vadd.f32 %v2641, %v4240
    %v4242 = vpop.f32.mrf.mxu0
    %v4243 = vpop.f32.mrf.mxu0
    %v4244 = vadd.f32 %v2646, %v4243
    %v4245 = vpop.f32.mrf.mxu0
    %4246 = vmatprep.mubr.bf16.mxu0 %v3703
    %4247 = vmatmul.mubr.bf16.gmra.mxu0 %v3702
    %v4248 = vpop.f32.mrf.mxu0
    %v4249 = vadd.f32 %v2651, %v4248
    %v4250 = vpop.f32.mrf.mxu0
    %v4251 = vpop.f32.mrf.mxu0
    %v4252 = vadd.f32 %v2656, %v4251
    %v4253 = vpop.f32.mrf.mxu0
    %4254 = vmatprep.mubr.bf16.mxu0 %v3711
    %4255 = vmatmul.mubr.bf16.gmra.mxu0 %v3710
    %v4256 = vpop.f32.mrf.mxu0
    %v4257 = vadd.f32 %v2661, %v4256
    %v4258 = vpop.f32.mrf.mxu0
    %v4259 = vpop.f32.mrf.mxu0
    %v4260 = vadd.f32 %v2666, %v4259
    %v4261 = vpop.f32.mrf.mxu0
    %4262 = vmatprep.mubr.bf16.mxu0 %v3719
    %4263 = vmatmul.mubr.bf16.gmra.mxu0 %v3718
    %v4264 = vpop.f32.mrf.mxu0
    %v4265 = vadd.f32 %v2671, %v4264
    %v4266 = vpop.f32.mrf.mxu0
    %v4267 = vpop.f32.mrf.mxu0
    %v4268 = vadd.f32 %v2676, %v4267
    %v4269 = vpop.f32.mrf.mxu0
    %4270 = vmatprep.mubr.bf16.mxu0 %v3727
    %4271 = vmatmul.mubr.bf16.gmra.mxu0 %v3726
    %v4272 = vpop.f32.mrf.mxu0
    %v4273 = vadd.f32 %v2681, %v4272
    %v4274 = vpop.f32.mrf.mxu0
    %v4275 = vpop.f32.mrf.mxu0
    %v4276 = vadd.f32 %v2686, %v4275
    %v4277 = vpop.f32.mrf.mxu0
    %4278 = vmatprep.mubr.bf16.mxu0 %v3735
    %4279 = vmatmul.mubr.bf16.gmra.mxu0 %v3734
    %v4280 = vpop.f32.mrf.mxu0
    %v4281 = vadd.f32 %v2691, %v4280
    %v4282 = vpop.f32.mrf.mxu0
    %v4283 = vpop.f32.mrf.mxu0
    %v4284 = vadd.f32 %v2696, %v4283
    %v4285 = vpop.f32.mrf.mxu0
    %4286 = vmatprep.mubr.bf16.mxu0 %v3743
    %4287 = vmatmul.mubr.bf16.gmra.mxu0 %v3742
    %v4288 = vpop.f32.mrf.mxu0
    %v4289 = vadd.f32 %v2701, %v4288
    %v4290 = vpop.f32.mrf.mxu0
    %v4291 = vpop.f32.mrf.mxu0
    %v4292 = vadd.f32 %v2706, %v4291
    %v4293 = vpop.f32.mrf.mxu0
    %4294 = vmatprep.mubr.bf16.mxu0 %v3751
    %4295 = vmatmul.mubr.bf16.gmra.mxu0 %v3750
    %v4296 = vpop.f32.mrf.mxu0
    %v4297 = vadd.f32 %v2711, %v4296
    %v4298 = vpop.f32.mrf.mxu0
    %v4299 = vpop.f32.mrf.mxu0
    %v4300 = vadd.f32 %v2716, %v4299
    %v4301 = vpop.f32.mrf.mxu0
    %4302 = vmatprep.mubr.bf16.mxu0 %v3759
    %4303 = vmatmul.mubr.bf16.gmra.mxu0 %v3758
    %v4304 = vpop.f32.mrf.mxu0
    %v4305 = vadd.f32 %v2721, %v4304
    %v4306 = vpop.f32.mrf.mxu0
    %v4307 = vpop.f32.mrf.mxu0
    %v4308 = vadd.f32 %v2726, %v4307
    %v4309 = vpop.f32.mrf.mxu0
    %4310 = vmatprep.mubr.bf16.mxu0 %v3767
    %4311 = vmatmul.mubr.bf16.gmra.mxu0 %v3766
    %v4312 = vpop.f32.mrf.mxu0
    %v4313 = vadd.f32 %v2731, %v4312
    %v4314 = vpop.f32.mrf.mxu0
    %v4315 = vpop.f32.mrf.mxu0
    %v4316 = vadd.f32 %v2736, %v4315
    %v4317 = vpop.f32.mrf.mxu0
    %4318 = vmatprep.mubr.bf16.mxu0 %v3775
    %4319 = vmatmul.mubr.bf16.gmra.mxu0 %v3774
    %v4320 = vpop.f32.mrf.mxu0
    %v4321 = vadd.f32 %v2741, %v4320
    %v4322 = vpop.f32.mrf.mxu0
    %v4323 = vpop.f32.mrf.mxu0
    %v4324 = vadd.f32 %v2746, %v4323
    %v4325 = vpop.f32.mrf.mxu0
    %4326 = vmatprep.mubr.bf16.mxu0 %v3783
    %4327 = vmatmul.mubr.bf16.gmra.mxu0 %v3782
    %v4328 = vpop.f32.mrf.mxu0
    %v4329 = vadd.f32 %v2751, %v4328
    %v4330 = vpop.f32.mrf.mxu0
    %v4331 = vpop.f32.mrf.mxu0
    %v4332 = vadd.f32 %v2756, %v4331
    %v4333 = vpop.f32.mrf.mxu0
    %4334 = vmatprep.mubr.bf16.mxu0 %v3791
    %4335 = vmatmul.mubr.bf16.gmra.mxu0 %v3790
    %v4336 = vpop.f32.mrf.mxu0
    %v4337 = vadd.f32 %v2761, %v4336
    %v4338 = vpop.f32.mrf.mxu0
    %v4339 = vpop.f32.mrf.mxu0
    %v4340 = vadd.f32 %v2766, %v4339
    %v4341 = vpop.f32.mrf.mxu0
    %4342 = vmatprep.mubr.bf16.mxu0 %v3799
    %4343 = vmatmul.mubr.bf16.gmra.mxu0 %v3798
    %v4344 = vpop.f32.mrf.mxu0
    %v4345 = vadd.f32 %v2771, %v4344
    %v4346 = vpop.f32.mrf.mxu0
    %v4347 = vpop.f32.mrf.mxu0
    %v4348 = vadd.f32 %v2776, %v4347
    %v4349 = vpop.f32.mrf.mxu0
    %4350 = vmatprep.mubr.bf16.mxu0 %v3807
    %4351 = vmatmul.mubr.bf16.gmra.mxu0 %v3806
    %v4352 = vpop.f32.mrf.mxu0
    %v4353 = vadd.f32 %v2781, %v4352
    %v4354 = vpop.f32.mrf.mxu0
    %v4355 = vpop.f32.mrf.mxu0
    %v4356 = vadd.f32 %v2786, %v4355
    %v4357 = vpop.f32.mrf.mxu0
    %4358 = vmatprep.mubr.bf16.mxu0 %v3815
    %4359 = vmatmul.mubr.bf16.gmra.mxu0 %v3814
    %v4360 = vpop.f32.mrf.mxu0
    %v4361 = vadd.f32 %v2791, %v4360
    %v4362 = vpop.f32.mrf.mxu0
    %v4363 = vpop.f32.mrf.mxu0
    %v4364 = vadd.f32 %v2796, %v4363
    %v4365 = vpop.f32.mrf.mxu0
    %4366 = vdwg.mxu0
    %4367 = vmatprep.subr.bf16.mxu0 0
    %4368 = vmatpush1.bf16.msra.mxu0 %v2117
    %4369 = vmatprep.subr.bf16.mxu0 0
    %4370 = vmatpush1.bf16.msra.mxu0 %v2116
    %4371 = vmatprep.subr.bf16.mxu0 0
    %4372 = vmatpush1.bf16.msra.mxu0 %v2115
    %4373 = vmatprep.subr.bf16.mxu0 0
    %4374 = vmatpush1.bf16.msra.mxu0 %v2114
    %4375 = vmatprep.subr.bf16.mxu0 0
    %4376 = vmatpush1.bf16.msra.mxu0 %v2113
    %4377 = vmatprep.subr.bf16.mxu0 0
    %4378 = vmatpush1.bf16.msra.mxu0 %v2112
    %4379 = vmatprep.subr.bf16.mxu0 0
    %4380 = vmatpush1.bf16.msra.mxu0 %v2111
    %4381 = vmatprep.subr.bf16.mxu0 0
    %4382 = vmatpush1.bf16.msra.mxu0 %v2110
    %4383 = vmatprep.subr.bf16.mxu0 0
    %4384 = vmatpush2.bf16.msra.mxu0 %v2125
    %4385 = vmatprep.subr.bf16.mxu0 0
    %4386 = vmatpush2.bf16.msra.mxu0 %v2124
    %4387 = vmatprep.subr.bf16.mxu0 0
    %4388 = vmatpush2.bf16.msra.mxu0 %v2123
    %4389 = vmatprep.subr.bf16.mxu0 0
    %4390 = vmatpush2.bf16.msra.mxu0 %v2122
    %4391 = vmatprep.subr.bf16.mxu0 0
    %4392 = vmatpush2.bf16.msra.mxu0 %v2121
    %4393 = vmatprep.subr.bf16.mxu0 0
    %4394 = vmatpush2.bf16.msra.mxu0 %v2120
    %4395 = vmatprep.subr.bf16.mxu0 0
    %4396 = vmatpush2.bf16.msra.mxu0 %v2119
    %4397 = vmatprep.subr.bf16.mxu0 0
    %4398 = vmatpush2.bf16.msra.mxu0 %v2118
    %4399 = vmatprep.mubr.bf16.mxu0 %v3569
    %4400 = vmatmul.mubr.bf16.gmra.mxu0 %v3568
    %v4401 = vpop.f32.mrf.mxu0
    %v4402 = vadd.f32 %v4113, %v4401
    %v4403 = vpop.f32.mrf.mxu0
    %v4404 = vpop.f32.mrf.mxu0
    %v4405 = vadd.f32 %v4116, %v4404
    %v4406 = vpop.f32.mrf.mxu0
    %4407 = vmatprep.mubr.bf16.mxu0 %v3577
    %4408 = vmatmul.mubr.bf16.gmra.mxu0 %v3576
    %v4409 = vpop.f32.mrf.mxu0
    %v4410 = vadd.f32 %v4121, %v4409
    %v4411 = vpop.f32.mrf.mxu0
    %v4412 = vpop.f32.mrf.mxu0
    %v4413 = vadd.f32 %v4124, %v4412
    %v4414 = vpop.f32.mrf.mxu0
    %4415 = vmatprep.mubr.bf16.mxu0 %v3585
    %4416 = vmatmul.mubr.bf16.gmra.mxu0 %v3584
    %v4417 = vpop.f32.mrf.mxu0
    %v4418 = vadd.f32 %v4129, %v4417
    %v4419 = vpop.f32.mrf.mxu0
    %v4420 = vpop.f32.mrf.mxu0
    %v4421 = vadd.f32 %v4132, %v4420
    %v4422 = vpop.f32.mrf.mxu0
    %4423 = vmatprep.mubr.bf16.mxu0 %v3593
    %4424 = vmatmul.mubr.bf16.gmra.mxu0 %v3592
    %v4425 = vpop.f32.mrf.mxu0
    %v4426 = vadd.f32 %v4137, %v4425
    %v4427 = vpop.f32.mrf.mxu0
    %v4428 = vpop.f32.mrf.mxu0
    %v4429 = vadd.f32 %v4140, %v4428
    %v4430 = vpop.f32.mrf.mxu0
    %4431 = vmatprep.mubr.bf16.mxu0 %v3601
    %4432 = vmatmul.mubr.bf16.gmra.mxu0 %v3600
    %v4433 = vpop.f32.mrf.mxu0
    %v4434 = vadd.f32 %v4145, %v4433
    %v4435 = vpop.f32.mrf.mxu0
    %v4436 = vpop.f32.mrf.mxu0
    %v4437 = vadd.f32 %v4148, %v4436
    %v4438 = vpop.f32.mrf.mxu0
    %4439 = vmatprep.mubr.bf16.mxu0 %v3609
    %4440 = vmatmul.mubr.bf16.gmra.mxu0 %v3608
    %v4441 = vpop.f32.mrf.mxu0
    %v4442 = vadd.f32 %v4153, %v4441
    %v4443 = vpop.f32.mrf.mxu0
    %v4444 = vpop.f32.mrf.mxu0
    %v4445 = vadd.f32 %v4156, %v4444
    %v4446 = vpop.f32.mrf.mxu0
    %4447 = vmatprep.mubr.bf16.mxu0 %v3617
    %4448 = vmatmul.mubr.bf16.gmra.mxu0 %v3616
    %v4449 = vpop.f32.mrf.mxu0
    %v4450 = vadd.f32 %v4161, %v4449
    %v4451 = vpop.f32.mrf.mxu0
    %v4452 = vpop.f32.mrf.mxu0
    %v4453 = vadd.f32 %v4164, %v4452
    %v4454 = vpop.f32.mrf.mxu0
    %4455 = vmatprep.mubr.bf16.mxu0 %v3625
    %4456 = vmatmul.mubr.bf16.gmra.mxu0 %v3624
    %v4457 = vpop.f32.mrf.mxu0
    %v4458 = vadd.f32 %v4169, %v4457
    %v4459 = vpop.f32.mrf.mxu0
    %v4460 = vpop.f32.mrf.mxu0
    %v4461 = vadd.f32 %v4172, %v4460
    %v4462 = vpop.f32.mrf.mxu0
    %4463 = vmatprep.mubr.bf16.mxu0 %v3633
    %4464 = vmatmul.mubr.bf16.gmra.mxu0 %v3632
    %v4465 = vpop.f32.mrf.mxu0
    %v4466 = vadd.f32 %v4177, %v4465
    %v4467 = vpop.f32.mrf.mxu0
    %v4468 = vpop.f32.mrf.mxu0
    %v4469 = vadd.f32 %v4180, %v4468
    %v4470 = vpop.f32.mrf.mxu0
    %4471 = vmatprep.mubr.bf16.mxu0 %v3641
    %4472 = vmatmul.mubr.bf16.gmra.mxu0 %v3640
    %v4473 = vpop.f32.mrf.mxu0
    %v4474 = vadd.f32 %v4185, %v4473
    %v4475 = vpop.f32.mrf.mxu0
    %v4476 = vpop.f32.mrf.mxu0
    %v4477 = vadd.f32 %v4188, %v4476
    %v4478 = vpop.f32.mrf.mxu0
    %4479 = vmatprep.mubr.bf16.mxu0 %v3649
    %4480 = vmatmul.mubr.bf16.gmra.mxu0 %v3648
    %v4481 = vpop.f32.mrf.mxu0
    %v4482 = vadd.f32 %v4193, %v4481
    %v4483 = vpop.f32.mrf.mxu0
    %v4484 = vpop.f32.mrf.mxu0
    %v4485 = vadd.f32 %v4196, %v4484
    %v4486 = vpop.f32.mrf.mxu0
    %4487 = vmatprep.mubr.bf16.mxu0 %v3657
    %4488 = vmatmul.mubr.bf16.gmra.mxu0 %v3656
    %v4489 = vpop.f32.mrf.mxu0
    %v4490 = vadd.f32 %v4201, %v4489
    %v4491 = vpop.f32.mrf.mxu0
    %v4492 = vpop.f32.mrf.mxu0
    %v4493 = vadd.f32 %v4204, %v4492
    %v4494 = vpop.f32.mrf.mxu0
    %4495 = vmatprep.mubr.bf16.mxu0 %v3665
    %4496 = vmatmul.mubr.bf16.gmra.mxu0 %v3664
    %v4497 = vpop.f32.mrf.mxu0
    %v4498 = vadd.f32 %v4209, %v4497
    %v4499 = vpop.f32.mrf.mxu0
    %v4500 = vpop.f32.mrf.mxu0
    %v4501 = vadd.f32 %v4212, %v4500
    %v4502 = vpop.f32.mrf.mxu0
    %4503 = vmatprep.mubr.bf16.mxu0 %v3673
    %4504 = vmatmul.mubr.bf16.gmra.mxu0 %v3672
    %v4505 = vpop.f32.mrf.mxu0
    %v4506 = vadd.f32 %v4217, %v4505
    %v4507 = vpop.f32.mrf.mxu0
    %v4508 = vpop.f32.mrf.mxu0
    %v4509 = vadd.f32 %v4220, %v4508
    %v4510 = vpop.f32.mrf.mxu0
    %4511 = vmatprep.mubr.bf16.mxu0 %v3681
    %4512 = vmatmul.mubr.bf16.gmra.mxu0 %v3680
    %v4513 = vpop.f32.mrf.mxu0
    %v4514 = vadd.f32 %v4225, %v4513
    %v4515 = vpop.f32.mrf.mxu0
    %v4516 = vpop.f32.mrf.mxu0
    %v4517 = vadd.f32 %v4228, %v4516
    %v4518 = vpop.f32.mrf.mxu0
    %4519 = vmatprep.mubr.bf16.mxu0 %v3689
    %4520 = vmatmul.mubr.bf16.gmra.mxu0 %v3688
    %v4521 = vpop.f32.mrf.mxu0
    %v4522 = vadd.f32 %v4233, %v4521
    %v4523 = vpop.f32.mrf.mxu0
    %v4524 = vpop.f32.mrf.mxu0
    %v4525 = vadd.f32 %v4236, %v4524
    %v4526 = vpop.f32.mrf.mxu0
    %4527 = vmatprep.mubr.bf16.mxu0 %v3697
    %4528 = vmatmul.mubr.bf16.gmra.mxu0 %v3696
    %v4529 = vpop.f32.mrf.mxu0
    %v4530 = vadd.f32 %v4241, %v4529
    %v4531 = vpop.f32.mrf.mxu0
    %v4532 = vpop.f32.mrf.mxu0
    %v4533 = vadd.f32 %v4244, %v4532
    %v4534 = vpop.f32.mrf.mxu0
    %4535 = vmatprep.mubr.bf16.mxu0 %v3705
    %4536 = vmatmul.mubr.bf16.gmra.mxu0 %v3704
    %v4537 = vpop.f32.mrf.mxu0
    %v4538 = vadd.f32 %v4249, %v4537
    %v4539 = vpop.f32.mrf.mxu0
    %v4540 = vpop.f32.mrf.mxu0
    %v4541 = vadd.f32 %v4252, %v4540
    %v4542 = vpop.f32.mrf.mxu0
    %4543 = vmatprep.mubr.bf16.mxu0 %v3713
    %4544 = vmatmul.mubr.bf16.gmra.mxu0 %v3712
    %v4545 = vpop.f32.mrf.mxu0
    %v4546 = vadd.f32 %v4257, %v4545
    %v4547 = vpop.f32.mrf.mxu0
    %v4548 = vpop.f32.mrf.mxu0
    %v4549 = vadd.f32 %v4260, %v4548
    %v4550 = vpop.f32.mrf.mxu0
    %4551 = vmatprep.mubr.bf16.mxu0 %v3721
    %4552 = vmatmul.mubr.bf16.gmra.mxu0 %v3720
    %v4553 = vpop.f32.mrf.mxu0
    %v4554 = vadd.f32 %v4265, %v4553
    %v4555 = vpop.f32.mrf.mxu0
    %v4556 = vpop.f32.mrf.mxu0
    %v4557 = vadd.f32 %v4268, %v4556
    %v4558 = vpop.f32.mrf.mxu0
    %4559 = vmatprep.mubr.bf16.mxu0 %v3729
    %4560 = vmatmul.mubr.bf16.gmra.mxu0 %v3728
    %v4561 = vpop.f32.mrf.mxu0
    %v4562 = vadd.f32 %v4273, %v4561
    %v4563 = vpop.f32.mrf.mxu0
    %v4564 = vpop.f32.mrf.mxu0
    %v4565 = vadd.f32 %v4276, %v4564
    %v4566 = vpop.f32.mrf.mxu0
    %4567 = vmatprep.mubr.bf16.mxu0 %v3737
    %4568 = vmatmul.mubr.bf16.gmra.mxu0 %v3736
    %v4569 = vpop.f32.mrf.mxu0
    %v4570 = vadd.f32 %v4281, %v4569
    %v4571 = vpop.f32.mrf.mxu0
    %v4572 = vpop.f32.mrf.mxu0
    %v4573 = vadd.f32 %v4284, %v4572
    %v4574 = vpop.f32.mrf.mxu0
    %4575 = vmatprep.mubr.bf16.mxu0 %v3745
    %4576 = vmatmul.mubr.bf16.gmra.mxu0 %v3744
    %v4577 = vpop.f32.mrf.mxu0
    %v4578 = vadd.f32 %v4289, %v4577
    %v4579 = vpop.f32.mrf.mxu0
    %v4580 = vpop.f32.mrf.mxu0
    %v4581 = vadd.f32 %v4292, %v4580
    %v4582 = vpop.f32.mrf.mxu0
    %4583 = vmatprep.mubr.bf16.mxu0 %v3753
    %4584 = vmatmul.mubr.bf16.gmra.mxu0 %v3752
    %v4585 = vpop.f32.mrf.mxu0
    %v4586 = vadd.f32 %v4297, %v4585
    %v4587 = vpop.f32.mrf.mxu0
    %v4588 = vpop.f32.mrf.mxu0
    %v4589 = vadd.f32 %v4300, %v4588
    %v4590 = vpop.f32.mrf.mxu0
    %4591 = vmatprep.mubr.bf16.mxu0 %v3761
    %4592 = vmatmul.mubr.bf16.gmra.mxu0 %v3760
    %v4593 = vpop.f32.mrf.mxu0
    %v4594 = vadd.f32 %v4305, %v4593
    %v4595 = vpop.f32.mrf.mxu0
    %v4596 = vpop.f32.mrf.mxu0
    %v4597 = vadd.f32 %v4308, %v4596
    %v4598 = vpop.f32.mrf.mxu0
    %4599 = vmatprep.mubr.bf16.mxu0 %v3769
    %4600 = vmatmul.mubr.bf16.gmra.mxu0 %v3768
    %v4601 = vpop.f32.mrf.mxu0
    %v4602 = vadd.f32 %v4313, %v4601
    %v4603 = vpop.f32.mrf.mxu0
    %v4604 = vpop.f32.mrf.mxu0
    %v4605 = vadd.f32 %v4316, %v4604
    %v4606 = vpop.f32.mrf.mxu0
    %4607 = vmatprep.mubr.bf16.mxu0 %v3777
    %4608 = vmatmul.mubr.bf16.gmra.mxu0 %v3776
    %v4609 = vpop.f32.mrf.mxu0
    %v4610 = vadd.f32 %v4321, %v4609
    %v4611 = vpop.f32.mrf.mxu0
    %v4612 = vpop.f32.mrf.mxu0
    %v4613 = vadd.f32 %v4324, %v4612
    %v4614 = vpop.f32.mrf.mxu0
    %4615 = vmatprep.mubr.bf16.mxu0 %v3785
    %4616 = vmatmul.mubr.bf16.gmra.mxu0 %v3784
    %v4617 = vpop.f32.mrf.mxu0
    %v4618 = vadd.f32 %v4329, %v4617
    %v4619 = vpop.f32.mrf.mxu0
    %v4620 = vpop.f32.mrf.mxu0
    %v4621 = vadd.f32 %v4332, %v4620
    %v4622 = vpop.f32.mrf.mxu0
    %4623 = vmatprep.mubr.bf16.mxu0 %v3793
    %4624 = vmatmul.mubr.bf16.gmra.mxu0 %v3792
    %v4625 = vpop.f32.mrf.mxu0
    %v4626 = vadd.f32 %v4337, %v4625
    %v4627 = vpop.f32.mrf.mxu0
    %v4628 = vpop.f32.mrf.mxu0
    %v4629 = vadd.f32 %v4340, %v4628
    %v4630 = vpop.f32.mrf.mxu0
    %4631 = vmatprep.mubr.bf16.mxu0 %v3801
    %4632 = vmatmul.mubr.bf16.gmra.mxu0 %v3800
    %v4633 = vpop.f32.mrf.mxu0
    %v4634 = vadd.f32 %v4345, %v4633
    %v4635 = vpop.f32.mrf.mxu0
    %v4636 = vpop.f32.mrf.mxu0
    %v4637 = vadd.f32 %v4348, %v4636
    %v4638 = vpop.f32.mrf.mxu0
    %4639 = vmatprep.mubr.bf16.mxu0 %v3809
    %4640 = vmatmul.mubr.bf16.gmra.mxu0 %v3808
    %v4641 = vpop.f32.mrf.mxu0
    %v4642 = vadd.f32 %v4353, %v4641
    %v4643 = vpop.f32.mrf.mxu0
    %v4644 = vpop.f32.mrf.mxu0
    %v4645 = vadd.f32 %v4356, %v4644
    %v4646 = vpop.f32.mrf.mxu0
    %4647 = vmatprep.mubr.bf16.mxu0 %v3817
    %4648 = vmatmul.mubr.bf16.gmra.mxu0 %v3816
    %v4649 = vpop.f32.mrf.mxu0
    %v4650 = vadd.f32 %v4361, %v4649
    %v4651 = vpop.f32.mrf.mxu0
    %v4652 = vpop.f32.mrf.mxu0
    %v4653 = vadd.f32 %v4364, %v4652
    %v4654 = vpop.f32.mrf.mxu0
    %4655 = vdwg.mxu0
    %4656 = vmatprep.subr.bf16.mxu0 0
    %4657 = vmatpush1.bf16.msra.mxu0 %v2133
    %4658 = vmatprep.subr.bf16.mxu0 0
    %4659 = vmatpush1.bf16.msra.mxu0 %v2132
    %4660 = vmatprep.subr.bf16.mxu0 0
    %4661 = vmatpush1.bf16.msra.mxu0 %v2131
    %4662 = vmatprep.subr.bf16.mxu0 0
    %4663 = vmatpush1.bf16.msra.mxu0 %v2130
    %4664 = vmatprep.subr.bf16.mxu0 0
    %4665 = vmatpush1.bf16.msra.mxu0 %v2129
    %4666 = vmatprep.subr.bf16.mxu0 0
    %4667 = vmatpush1.bf16.msra.mxu0 %v2128
    %4668 = vmatprep.subr.bf16.mxu0 0
    %4669 = vmatpush1.bf16.msra.mxu0 %v2127
    %4670 = vmatprep.subr.bf16.mxu0 0
    %4671 = vmatpush1.bf16.msra.mxu0 %v2126
    %4672 = vmatprep.subr.bf16.mxu0 0
    %4673 = vmatpush2.bf16.msra.mxu0 %v2141
    %4674 = vmatprep.subr.bf16.mxu0 0
    %4675 = vmatpush2.bf16.msra.mxu0 %v2140
    %4676 = vmatprep.subr.bf16.mxu0 0
    %4677 = vmatpush2.bf16.msra.mxu0 %v2139
    %4678 = vmatprep.subr.bf16.mxu0 0
    %4679 = vmatpush2.bf16.msra.mxu0 %v2138
    %4680 = vmatprep.subr.bf16.mxu0 0
    %4681 = vmatpush2.bf16.msra.mxu0 %v2137
    %4682 = vmatprep.subr.bf16.mxu0 0
    %4683 = vmatpush2.bf16.msra.mxu0 %v2136
    %4684 = vmatprep.subr.bf16.mxu0 0
    %4685 = vmatpush2.bf16.msra.mxu0 %v2135
    %4686 = vmatprep.subr.bf16.mxu0 0
    %4687 = vmatpush2.bf16.msra.mxu0 %v2134
    %4688 = vmatprep.mubr.bf16.mxu0 %v3571
    %4689 = vmatmul.mubr.bf16.gmra.mxu0 %v3570
    %v4690 = vpop.f32.mrf.mxu0
    %v4691 = vadd.f32 %v4402, %v4690
    %v4692 = vpop.f32.mrf.mxu0
    %v4693 = vpop.f32.mrf.mxu0
    %v4694 = vadd.f32 %v4405, %v4693
    %v4695 = vpop.f32.mrf.mxu0
    %4696 = vmatprep.mubr.bf16.mxu0 %v3579
    %4697 = vmatmul.mubr.bf16.gmra.mxu0 %v3578
    %v4698 = vpop.f32.mrf.mxu0
    %v4699 = vadd.f32 %v4410, %v4698
    %v4700 = vpop.f32.mrf.mxu0
    %v4701 = vpop.f32.mrf.mxu0
    %v4702 = vadd.f32 %v4413, %v4701
    %v4703 = vpop.f32.mrf.mxu0
    %4704 = vmatprep.mubr.bf16.mxu0 %v3587
    %4705 = vmatmul.mubr.bf16.gmra.mxu0 %v3586
    %v4706 = vpop.f32.mrf.mxu0
    %v4707 = vadd.f32 %v4418, %v4706
    %v4708 = vpop.f32.mrf.mxu0
    %v4709 = vpop.f32.mrf.mxu0
    %v4710 = vadd.f32 %v4421, %v4709
    %v4711 = vpop.f32.mrf.mxu0
    %4712 = vmatprep.mubr.bf16.mxu0 %v3595
    %4713 = vmatmul.mubr.bf16.gmra.mxu0 %v3594
    %v4714 = vpop.f32.mrf.mxu0
    %v4715 = vadd.f32 %v4426, %v4714
    %v4716 = vpop.f32.mrf.mxu0
    %v4717 = vpop.f32.mrf.mxu0
    %v4718 = vadd.f32 %v4429, %v4717
    %v4719 = vpop.f32.mrf.mxu0
    %4720 = vmatprep.mubr.bf16.mxu0 %v3603
    %4721 = vmatmul.mubr.bf16.gmra.mxu0 %v3602
    %v4722 = vpop.f32.mrf.mxu0
    %v4723 = vadd.f32 %v4434, %v4722
    %v4724 = vpop.f32.mrf.mxu0
    %v4725 = vpop.f32.mrf.mxu0
    %v4726 = vadd.f32 %v4437, %v4725
    %v4727 = vpop.f32.mrf.mxu0
    %4728 = vmatprep.mubr.bf16.mxu0 %v3611
    %4729 = vmatmul.mubr.bf16.gmra.mxu0 %v3610
    %v4730 = vpop.f32.mrf.mxu0
    %v4731 = vadd.f32 %v4442, %v4730
    %v4732 = vpop.f32.mrf.mxu0
    %v4733 = vpop.f32.mrf.mxu0
    %v4734 = vadd.f32 %v4445, %v4733
    %v4735 = vpop.f32.mrf.mxu0
    %4736 = vmatprep.mubr.bf16.mxu0 %v3619
    %4737 = vmatmul.mubr.bf16.gmra.mxu0 %v3618
    %v4738 = vpop.f32.mrf.mxu0
    %v4739 = vadd.f32 %v4450, %v4738
    %v4740 = vpop.f32.mrf.mxu0
    %v4741 = vpop.f32.mrf.mxu0
    %v4742 = vadd.f32 %v4453, %v4741
    %v4743 = vpop.f32.mrf.mxu0
    %4744 = vmatprep.mubr.bf16.mxu0 %v3627
    %4745 = vmatmul.mubr.bf16.gmra.mxu0 %v3626
    %v4746 = vpop.f32.mrf.mxu0
    %v4747 = vadd.f32 %v4458, %v4746
    %v4748 = vpop.f32.mrf.mxu0
    %v4749 = vpop.f32.mrf.mxu0
    %v4750 = vadd.f32 %v4461, %v4749
    %v4751 = vpop.f32.mrf.mxu0
    %4752 = vmatprep.mubr.bf16.mxu0 %v3635
    %4753 = vmatmul.mubr.bf16.gmra.mxu0 %v3634
    %v4754 = vpop.f32.mrf.mxu0
    %v4755 = vadd.f32 %v4466, %v4754
    %v4756 = vpop.f32.mrf.mxu0
    %v4757 = vpop.f32.mrf.mxu0
    %v4758 = vadd.f32 %v4469, %v4757
    %v4759 = vpop.f32.mrf.mxu0
    %4760 = vmatprep.mubr.bf16.mxu0 %v3643
    %4761 = vmatmul.mubr.bf16.gmra.mxu0 %v3642
    %v4762 = vpop.f32.mrf.mxu0
    %v4763 = vadd.f32 %v4474, %v4762
    %v4764 = vpop.f32.mrf.mxu0
    %v4765 = vpop.f32.mrf.mxu0
    %v4766 = vadd.f32 %v4477, %v4765
    %v4767 = vpop.f32.mrf.mxu0
    %4768 = vmatprep.mubr.bf16.mxu0 %v3651
    %4769 = vmatmul.mubr.bf16.gmra.mxu0 %v3650
    %v4770 = vpop.f32.mrf.mxu0
    %v4771 = vadd.f32 %v4482, %v4770
    %v4772 = vpop.f32.mrf.mxu0
    %v4773 = vpop.f32.mrf.mxu0
    %v4774 = vadd.f32 %v4485, %v4773
    %v4775 = vpop.f32.mrf.mxu0
    %4776 = vmatprep.mubr.bf16.mxu0 %v3659
    %4777 = vmatmul.mubr.bf16.gmra.mxu0 %v3658
    %v4778 = vpop.f32.mrf.mxu0
    %v4779 = vadd.f32 %v4490, %v4778
    %v4780 = vpop.f32.mrf.mxu0
    %v4781 = vpop.f32.mrf.mxu0
    %v4782 = vadd.f32 %v4493, %v4781
    %v4783 = vpop.f32.mrf.mxu0
    %4784 = vmatprep.mubr.bf16.mxu0 %v3667
    %4785 = vmatmul.mubr.bf16.gmra.mxu0 %v3666
    %v4786 = vpop.f32.mrf.mxu0
    %v4787 = vadd.f32 %v4498, %v4786
    %v4788 = vpop.f32.mrf.mxu0
    %v4789 = vpop.f32.mrf.mxu0
    %v4790 = vadd.f32 %v4501, %v4789
    %v4791 = vpop.f32.mrf.mxu0
    %4792 = vmatprep.mubr.bf16.mxu0 %v3675
    %4793 = vmatmul.mubr.bf16.gmra.mxu0 %v3674
    %v4794 = vpop.f32.mrf.mxu0
    %v4795 = vadd.f32 %v4506, %v4794
    %v4796 = vpop.f32.mrf.mxu0
    %v4797 = vpop.f32.mrf.mxu0
    %v4798 = vadd.f32 %v4509, %v4797
    %v4799 = vpop.f32.mrf.mxu0
    %4800 = vmatprep.mubr.bf16.mxu0 %v3683
    %4801 = vmatmul.mubr.bf16.gmra.mxu0 %v3682
    %v4802 = vpop.f32.mrf.mxu0
    %v4803 = vadd.f32 %v4514, %v4802
    %v4804 = vpop.f32.mrf.mxu0
    %v4805 = vpop.f32.mrf.mxu0
    %v4806 = vadd.f32 %v4517, %v4805
    %v4807 = vpop.f32.mrf.mxu0
    %4808 = vmatprep.mubr.bf16.mxu0 %v3691
    %4809 = vmatmul.mubr.bf16.gmra.mxu0 %v3690
    %v4810 = vpop.f32.mrf.mxu0
    %v4811 = vadd.f32 %v4522, %v4810
    %v4812 = vpop.f32.mrf.mxu0
    %v4813 = vpop.f32.mrf.mxu0
    %v4814 = vadd.f32 %v4525, %v4813
    %v4815 = vpop.f32.mrf.mxu0
    %4816 = vmatprep.mubr.bf16.mxu0 %v3699
    %4817 = vmatmul.mubr.bf16.gmra.mxu0 %v3698
    %v4818 = vpop.f32.mrf.mxu0
    %v4819 = vadd.f32 %v4530, %v4818
    %v4820 = vpop.f32.mrf.mxu0
    %v4821 = vpop.f32.mrf.mxu0
    %v4822 = vadd.f32 %v4533, %v4821
    %v4823 = vpop.f32.mrf.mxu0
    %4824 = vmatprep.mubr.bf16.mxu0 %v3707
    %4825 = vmatmul.mubr.bf16.gmra.mxu0 %v3706
    %v4826 = vpop.f32.mrf.mxu0
    %v4827 = vadd.f32 %v4538, %v4826
    %v4828 = vpop.f32.mrf.mxu0
    %v4829 = vpop.f32.mrf.mxu0
    %v4830 = vadd.f32 %v4541, %v4829
    %v4831 = vpop.f32.mrf.mxu0
    %4832 = vmatprep.mubr.bf16.mxu0 %v3715
    %4833 = vmatmul.mubr.bf16.gmra.mxu0 %v3714
    %v4834 = vpop.f32.mrf.mxu0
    %v4835 = vadd.f32 %v4546, %v4834
    %v4836 = vpop.f32.mrf.mxu0
    %v4837 = vpop.f32.mrf.mxu0
    %v4838 = vadd.f32 %v4549, %v4837
    %v4839 = vpop.f32.mrf.mxu0
    %4840 = vmatprep.mubr.bf16.mxu0 %v3723
    %4841 = vmatmul.mubr.bf16.gmra.mxu0 %v3722
    %v4842 = vpop.f32.mrf.mxu0
    %v4843 = vadd.f32 %v4554, %v4842
    %v4844 = vpop.f32.mrf.mxu0
    %v4845 = vpop.f32.mrf.mxu0
    %v4846 = vadd.f32 %v4557, %v4845
    %v4847 = vpop.f32.mrf.mxu0
    %4848 = vmatprep.mubr.bf16.mxu0 %v3731
    %4849 = vmatmul.mubr.bf16.gmra.mxu0 %v3730
    %v4850 = vpop.f32.mrf.mxu0
    %v4851 = vadd.f32 %v4562, %v4850
    %v4852 = vpop.f32.mrf.mxu0
    %v4853 = vpop.f32.mrf.mxu0
    %v4854 = vadd.f32 %v4565, %v4853
    %v4855 = vpop.f32.mrf.mxu0
    %4856 = vmatprep.mubr.bf16.mxu0 %v3739
    %4857 = vmatmul.mubr.bf16.gmra.mxu0 %v3738
    %v4858 = vpop.f32.mrf.mxu0
    %v4859 = vadd.f32 %v4570, %v4858
    %v4860 = vpop.f32.mrf.mxu0
    %v4861 = vpop.f32.mrf.mxu0
    %v4862 = vadd.f32 %v4573, %v4861
    %v4863 = vpop.f32.mrf.mxu0
    %4864 = vmatprep.mubr.bf16.mxu0 %v3747
    %4865 = vmatmul.mubr.bf16.gmra.mxu0 %v3746
    %v4866 = vpop.f32.mrf.mxu0
    %v4867 = vadd.f32 %v4578, %v4866
    %v4868 = vpop.f32.mrf.mxu0
    %v4869 = vpop.f32.mrf.mxu0
    %v4870 = vadd.f32 %v4581, %v4869
    %v4871 = vpop.f32.mrf.mxu0
    %4872 = vmatprep.mubr.bf16.mxu0 %v3755
    %4873 = vmatmul.mubr.bf16.gmra.mxu0 %v3754
    %v4874 = vpop.f32.mrf.mxu0
    %v4875 = vadd.f32 %v4586, %v4874
    %v4876 = vpop.f32.mrf.mxu0
    %v4877 = vpop.f32.mrf.mxu0
    %v4878 = vadd.f32 %v4589, %v4877
    %v4879 = vpop.f32.mrf.mxu0
    %4880 = vmatprep.mubr.bf16.mxu0 %v3763
    %4881 = vmatmul.mubr.bf16.gmra.mxu0 %v3762
    %v4882 = vpop.f32.mrf.mxu0
    %v4883 = vadd.f32 %v4594, %v4882
    %v4884 = vpop.f32.mrf.mxu0
    %v4885 = vpop.f32.mrf.mxu0
    %v4886 = vadd.f32 %v4597, %v4885
    %v4887 = vpop.f32.mrf.mxu0
    %4888 = vmatprep.mubr.bf16.mxu0 %v3771
    %4889 = vmatmul.mubr.bf16.gmra.mxu0 %v3770
    %v4890 = vpop.f32.mrf.mxu0
    %v4891 = vadd.f32 %v4602, %v4890
    %v4892 = vpop.f32.mrf.mxu0
    %v4893 = vpop.f32.mrf.mxu0
    %v4894 = vadd.f32 %v4605, %v4893
    %v4895 = vpop.f32.mrf.mxu0
    %4896 = vmatprep.mubr.bf16.mxu0 %v3779
    %4897 = vmatmul.mubr.bf16.gmra.mxu0 %v3778
    %v4898 = vpop.f32.mrf.mxu0
    %v4899 = vadd.f32 %v4610, %v4898
    %v4900 = vpop.f32.mrf.mxu0
    %v4901 = vpop.f32.mrf.mxu0
    %v4902 = vadd.f32 %v4613, %v4901
    %v4903 = vpop.f32.mrf.mxu0
    %4904 = vmatprep.mubr.bf16.mxu0 %v3787
    %4905 = vmatmul.mubr.bf16.gmra.mxu0 %v3786
    %v4906 = vpop.f32.mrf.mxu0
    %v4907 = vadd.f32 %v4618, %v4906
    %v4908 = vpop.f32.mrf.mxu0
    %v4909 = vpop.f32.mrf.mxu0
    %v4910 = vadd.f32 %v4621, %v4909
    %v4911 = vpop.f32.mrf.mxu0
    %4912 = vmatprep.mubr.bf16.mxu0 %v3795
    %4913 = vmatmul.mubr.bf16.gmra.mxu0 %v3794
    %v4914 = vpop.f32.mrf.mxu0
    %v4915 = vadd.f32 %v4626, %v4914
    %v4916 = vpop.f32.mrf.mxu0
    %v4917 = vpop.f32.mrf.mxu0
    %v4918 = vadd.f32 %v4629, %v4917
    %v4919 = vpop.f32.mrf.mxu0
    %4920 = vmatprep.mubr.bf16.mxu0 %v3803
    %4921 = vmatmul.mubr.bf16.gmra.mxu0 %v3802
    %v4922 = vpop.f32.mrf.mxu0
    %v4923 = vadd.f32 %v4634, %v4922
    %v4924 = vpop.f32.mrf.mxu0
    %v4925 = vpop.f32.mrf.mxu0
    %v4926 = vadd.f32 %v4637, %v4925
    %v4927 = vpop.f32.mrf.mxu0
    %4928 = vmatprep.mubr.bf16.mxu0 %v3811
    %4929 = vmatmul.mubr.bf16.gmra.mxu0 %v3810
    %v4930 = vpop.f32.mrf.mxu0
    %v4931 = vadd.f32 %v4642, %v4930
    %v4932 = vpop.f32.mrf.mxu0
    %v4933 = vpop.f32.mrf.mxu0
    %v4934 = vadd.f32 %v4645, %v4933
    %v4935 = vpop.f32.mrf.mxu0
    %4936 = vmatprep.mubr.bf16.mxu0 %v3819
    %4937 = vmatmul.mubr.bf16.gmra.mxu0 %v3818
    %v4938 = vpop.f32.mrf.mxu0
    %v4939 = vadd.f32 %v4650, %v4938
    %v4940 = vpop.f32.mrf.mxu0
    %v4941 = vpop.f32.mrf.mxu0
    %v4942 = vadd.f32 %v4653, %v4941
    %v4943 = vpop.f32.mrf.mxu0
    %4944 = vdwg.mxu0
    %4945 = vmatprep.subr.bf16.mxu0 0
    %4946 = vmatpush1.bf16.msra.mxu0 %v2149
    %4947 = vmatprep.subr.bf16.mxu0 0
    %4948 = vmatpush1.bf16.msra.mxu0 %v2148
    %4949 = vmatprep.subr.bf16.mxu0 0
    %4950 = vmatpush1.bf16.msra.mxu0 %v2147
    %4951 = vmatprep.subr.bf16.mxu0 0
    %4952 = vmatpush1.bf16.msra.mxu0 %v2146
    %4953 = vmatprep.subr.bf16.mxu0 0
    %4954 = vmatpush1.bf16.msra.mxu0 %v2145
    %4955 = vmatprep.subr.bf16.mxu0 0
    %4956 = vmatpush1.bf16.msra.mxu0 %v2144
    %4957 = vmatprep.subr.bf16.mxu0 0
    %4958 = vmatpush1.bf16.msra.mxu0 %v2143
    %4959 = vmatprep.subr.bf16.mxu0 0
    %4960 = vmatpush1.bf16.msra.mxu0 %v2142
    %4961 = vmatprep.subr.bf16.mxu0 0
    %4962 = vmatpush2.bf16.msra.mxu0 %v2157
    %4963 = vmatprep.subr.bf16.mxu0 0
    %4964 = vmatpush2.bf16.msra.mxu0 %v2156
    %4965 = vmatprep.subr.bf16.mxu0 0
    %4966 = vmatpush2.bf16.msra.mxu0 %v2155
    %4967 = vmatprep.subr.bf16.mxu0 0
    %4968 = vmatpush2.bf16.msra.mxu0 %v2154
    %4969 = vmatprep.subr.bf16.mxu0 0
    %4970 = vmatpush2.bf16.msra.mxu0 %v2153
    %4971 = vmatprep.subr.bf16.mxu0 0
    %4972 = vmatpush2.bf16.msra.mxu0 %v2152
    %4973 = vmatprep.subr.bf16.mxu0 0
    %4974 = vmatpush2.bf16.msra.mxu0 %v2151
    %4975 = vmatprep.subr.bf16.mxu0 0
    %4976 = vmatpush2.bf16.msra.mxu0 %v2150
    %4977 = vmatprep.mubr.bf16.mxu0 %v3573
    %4978 = vmatmul.mubr.bf16.gmra.mxu0 %v3572
    %v4979 = vpop.f32.mrf.mxu0
    %v4980 = vadd.f32 %v4691, %v4979
    %v4981 = vpop.f32.mrf.mxu0
    %v4982 = vpop.f32.mrf.mxu0
    %v4983 = vadd.f32 %v4694, %v4982
    %v4984 = vpop.f32.mrf.mxu0
    %4985 = vmatprep.mubr.bf16.mxu0 %v3581
    %4986 = vmatmul.mubr.bf16.gmra.mxu0 %v3580
    %v4987 = vpop.f32.mrf.mxu0
    %v4988 = vadd.f32 %v4699, %v4987
    %v4989 = vpop.f32.mrf.mxu0
    %v4990 = vpop.f32.mrf.mxu0
    %v4991 = vadd.f32 %v4702, %v4990
    %v4992 = vpop.f32.mrf.mxu0
    %4993 = vmatprep.mubr.bf16.mxu0 %v3589
    %4994 = vmatmul.mubr.bf16.gmra.mxu0 %v3588
    %v4995 = vpop.f32.mrf.mxu0
    %v4996 = vadd.f32 %v4707, %v4995
    %v4997 = vpop.f32.mrf.mxu0
    %v4998 = vpop.f32.mrf.mxu0
    %v4999 = vadd.f32 %v4710, %v4998
    %v5000 = vpop.f32.mrf.mxu0
    %5001 = vmatprep.mubr.bf16.mxu0 %v3597
    %5002 = vmatmul.mubr.bf16.gmra.mxu0 %v3596
    %v5003 = vpop.f32.mrf.mxu0
    %v5004 = vadd.f32 %v4715, %v5003
    %v5005 = vpop.f32.mrf.mxu0
    %v5006 = vpop.f32.mrf.mxu0
    %v5007 = vadd.f32 %v4718, %v5006
    %v5008 = vpop.f32.mrf.mxu0
    %5009 = vmatprep.mubr.bf16.mxu0 %v3605
    %5010 = vmatmul.mubr.bf16.gmra.mxu0 %v3604
    %v5011 = vpop.f32.mrf.mxu0
    %v5012 = vadd.f32 %v4723, %v5011
    %v5013 = vpop.f32.mrf.mxu0
    %v5014 = vpop.f32.mrf.mxu0
    %v5015 = vadd.f32 %v4726, %v5014
    %v5016 = vpop.f32.mrf.mxu0
    %5017 = vmatprep.mubr.bf16.mxu0 %v3613
    %5018 = vmatmul.mubr.bf16.gmra.mxu0 %v3612
    %v5019 = vpop.f32.mrf.mxu0
    %v5020 = vadd.f32 %v4731, %v5019
    %v5021 = vpop.f32.mrf.mxu0
    %v5022 = vpop.f32.mrf.mxu0
    %v5023 = vadd.f32 %v4734, %v5022
    %v5024 = vpop.f32.mrf.mxu0
    %5025 = vmatprep.mubr.bf16.mxu0 %v3621
    %5026 = vmatmul.mubr.bf16.gmra.mxu0 %v3620
    %v5027 = vpop.f32.mrf.mxu0
    %v5028 = vadd.f32 %v4739, %v5027
    %v5029 = vpop.f32.mrf.mxu0
    %v5030 = vpop.f32.mrf.mxu0
    %v5031 = vadd.f32 %v4742, %v5030
    %v5032 = vpop.f32.mrf.mxu0
    %5033 = vmatprep.mubr.bf16.mxu0 %v3629
    %5034 = vmatmul.mubr.bf16.gmra.mxu0 %v3628
    %v5035 = vpop.f32.mrf.mxu0
    %v5036 = vadd.f32 %v4747, %v5035
    %v5037 = vpop.f32.mrf.mxu0
    %v5038 = vpop.f32.mrf.mxu0
    %v5039 = vadd.f32 %v4750, %v5038
    %v5040 = vpop.f32.mrf.mxu0
    %5041 = vmatprep.mubr.bf16.mxu0 %v3637
    %5042 = vmatmul.mubr.bf16.gmra.mxu0 %v3636
    %v5043 = vpop.f32.mrf.mxu0
    %v5044 = vadd.f32 %v4755, %v5043
    %v5045 = vpop.f32.mrf.mxu0
    %v5046 = vpop.f32.mrf.mxu0
    %v5047 = vadd.f32 %v4758, %v5046
    %v5048 = vpop.f32.mrf.mxu0
    %5049 = vmatprep.mubr.bf16.mxu0 %v3645
    %5050 = vmatmul.mubr.bf16.gmra.mxu0 %v3644
    %v5051 = vpop.f32.mrf.mxu0
    %v5052 = vadd.f32 %v4763, %v5051
    %v5053 = vpop.f32.mrf.mxu0
    %v5054 = vpop.f32.mrf.mxu0
    %v5055 = vadd.f32 %v4766, %v5054
    %v5056 = vpop.f32.mrf.mxu0
    %5057 = vmatprep.mubr.bf16.mxu0 %v3653
    %5058 = vmatmul.mubr.bf16.gmra.mxu0 %v3652
    %v5059 = vpop.f32.mrf.mxu0
    %v5060 = vadd.f32 %v4771, %v5059
    %v5061 = vpop.f32.mrf.mxu0
    %v5062 = vpop.f32.mrf.mxu0
    %v5063 = vadd.f32 %v4774, %v5062
    %v5064 = vpop.f32.mrf.mxu0
    %5065 = vmatprep.mubr.bf16.mxu0 %v3661
    %5066 = vmatmul.mubr.bf16.gmra.mxu0 %v3660
    %v5067 = vpop.f32.mrf.mxu0
    %v5068 = vadd.f32 %v4779, %v5067
    %v5069 = vpop.f32.mrf.mxu0
    %v5070 = vpop.f32.mrf.mxu0
    %v5071 = vadd.f32 %v4782, %v5070
    %v5072 = vpop.f32.mrf.mxu0
    %5073 = vmatprep.mubr.bf16.mxu0 %v3669
    %5074 = vmatmul.mubr.bf16.gmra.mxu0 %v3668
    %v5075 = vpop.f32.mrf.mxu0
    %v5076 = vadd.f32 %v4787, %v5075
    %v5077 = vpop.f32.mrf.mxu0
    %v5078 = vpop.f32.mrf.mxu0
    %v5079 = vadd.f32 %v4790, %v5078
    %v5080 = vpop.f32.mrf.mxu0
    %5081 = vmatprep.mubr.bf16.mxu0 %v3677
    %5082 = vmatmul.mubr.bf16.gmra.mxu0 %v3676
    %v5083 = vpop.f32.mrf.mxu0
    %v5084 = vadd.f32 %v4795, %v5083
    %v5085 = vpop.f32.mrf.mxu0
    %v5086 = vpop.f32.mrf.mxu0
    %v5087 = vadd.f32 %v4798, %v5086
    %v5088 = vpop.f32.mrf.mxu0
    %5089 = vmatprep.mubr.bf16.mxu0 %v3685
    %5090 = vmatmul.mubr.bf16.gmra.mxu0 %v3684
    %v5091 = vpop.f32.mrf.mxu0
    %v5092 = vadd.f32 %v4803, %v5091
    %v5093 = vpop.f32.mrf.mxu0
    %v5094 = vpop.f32.mrf.mxu0
    %v5095 = vadd.f32 %v4806, %v5094
    %v5096 = vpop.f32.mrf.mxu0
    %5097 = vmatprep.mubr.bf16.mxu0 %v3693
    %5098 = vmatmul.mubr.bf16.gmra.mxu0 %v3692
    %v5099 = vpop.f32.mrf.mxu0
    %v5100 = vadd.f32 %v4811, %v5099
    %v5101 = vpop.f32.mrf.mxu0
    %v5102 = vpop.f32.mrf.mxu0
    %v5103 = vadd.f32 %v4814, %v5102
    %v5104 = vpop.f32.mrf.mxu0
    %5105 = vmatprep.mubr.bf16.mxu0 %v3701
    %5106 = vmatmul.mubr.bf16.gmra.mxu0 %v3700
    %v5107 = vpop.f32.mrf.mxu0
    %v5108 = vadd.f32 %v4819, %v5107
    %v5109 = vpop.f32.mrf.mxu0
    %v5110 = vpop.f32.mrf.mxu0
    %v5111 = vadd.f32 %v4822, %v5110
    %v5112 = vpop.f32.mrf.mxu0
    %5113 = vmatprep.mubr.bf16.mxu0 %v3709
    %5114 = vmatmul.mubr.bf16.gmra.mxu0 %v3708
    %v5115 = vpop.f32.mrf.mxu0
    %v5116 = vadd.f32 %v4827, %v5115
    %v5117 = vpop.f32.mrf.mxu0
    %v5118 = vpop.f32.mrf.mxu0
    %v5119 = vadd.f32 %v4830, %v5118
    %v5120 = vpop.f32.mrf.mxu0
    %5121 = vmatprep.mubr.bf16.mxu0 %v3717
    %5122 = vmatmul.mubr.bf16.gmra.mxu0 %v3716
    %v5123 = vpop.f32.mrf.mxu0
    %v5124 = vadd.f32 %v4835, %v5123
    %v5125 = vpop.f32.mrf.mxu0
    %v5126 = vpop.f32.mrf.mxu0
    %v5127 = vadd.f32 %v4838, %v5126
    %v5128 = vpop.f32.mrf.mxu0
    %5129 = vmatprep.mubr.bf16.mxu0 %v3725
    %5130 = vmatmul.mubr.bf16.gmra.mxu0 %v3724
    %v5131 = vpop.f32.mrf.mxu0
    %v5132 = vadd.f32 %v4843, %v5131
    %v5133 = vpop.f32.mrf.mxu0
    %v5134 = vpop.f32.mrf.mxu0
    %v5135 = vadd.f32 %v4846, %v5134
    %v5136 = vpop.f32.mrf.mxu0
    %5137 = vmatprep.mubr.bf16.mxu0 %v3733
    %5138 = vmatmul.mubr.bf16.gmra.mxu0 %v3732
    %v5139 = vpop.f32.mrf.mxu0
    %v5140 = vadd.f32 %v4851, %v5139
    %v5141 = vpop.f32.mrf.mxu0
    %v5142 = vpop.f32.mrf.mxu0
    %v5143 = vadd.f32 %v4854, %v5142
    %v5144 = vpop.f32.mrf.mxu0
    %5145 = vmatprep.mubr.bf16.mxu0 %v3741
    %5146 = vmatmul.mubr.bf16.gmra.mxu0 %v3740
    %v5147 = vpop.f32.mrf.mxu0
    %v5148 = vadd.f32 %v4859, %v5147
    %v5149 = vpop.f32.mrf.mxu0
    %v5150 = vpop.f32.mrf.mxu0
    %v5151 = vadd.f32 %v4862, %v5150
    %v5152 = vpop.f32.mrf.mxu0
    %5153 = vmatprep.mubr.bf16.mxu0 %v3749
    %5154 = vmatmul.mubr.bf16.gmra.mxu0 %v3748
    %v5155 = vpop.f32.mrf.mxu0
    %v5156 = vadd.f32 %v4867, %v5155
    %v5157 = vpop.f32.mrf.mxu0
    %v5158 = vpop.f32.mrf.mxu0
    %v5159 = vadd.f32 %v4870, %v5158
    %v5160 = vpop.f32.mrf.mxu0
    %5161 = vmatprep.mubr.bf16.mxu0 %v3757
    %5162 = vmatmul.mubr.bf16.gmra.mxu0 %v3756
    %v5163 = vpop.f32.mrf.mxu0
    %v5164 = vadd.f32 %v4875, %v5163
    %v5165 = vpop.f32.mrf.mxu0
    %v5166 = vpop.f32.mrf.mxu0
    %v5167 = vadd.f32 %v4878, %v5166
    %v5168 = vpop.f32.mrf.mxu0
    %5169 = vmatprep.mubr.bf16.mxu0 %v3765
    %5170 = vmatmul.mubr.bf16.gmra.mxu0 %v3764
    %v5171 = vpop.f32.mrf.mxu0
    %v5172 = vadd.f32 %v4883, %v5171
    %v5173 = vpop.f32.mrf.mxu0
    %v5174 = vpop.f32.mrf.mxu0
    %v5175 = vadd.f32 %v4886, %v5174
    %v5176 = vpop.f32.mrf.mxu0
    %5177 = vmatprep.mubr.bf16.mxu0 %v3773
    %5178 = vmatmul.mubr.bf16.gmra.mxu0 %v3772
    %v5179 = vpop.f32.mrf.mxu0
    %v5180 = vadd.f32 %v4891, %v5179
    %v5181 = vpop.f32.mrf.mxu0
    %v5182 = vpop.f32.mrf.mxu0
    %v5183 = vadd.f32 %v4894, %v5182
    %v5184 = vpop.f32.mrf.mxu0
    %5185 = vmatprep.mubr.bf16.mxu0 %v3781
    %5186 = vmatmul.mubr.bf16.gmra.mxu0 %v3780
    %v5187 = vpop.f32.mrf.mxu0
    %v5188 = vadd.f32 %v4899, %v5187
    %v5189 = vpop.f32.mrf.mxu0
    %v5190 = vpop.f32.mrf.mxu0
    %v5191 = vadd.f32 %v4902, %v5190
    %v5192 = vpop.f32.mrf.mxu0
    %5193 = vmatprep.mubr.bf16.mxu0 %v3789
    %5194 = vmatmul.mubr.bf16.gmra.mxu0 %v3788
    %v5195 = vpop.f32.mrf.mxu0
    %v5196 = vadd.f32 %v4907, %v5195
    %v5197 = vpop.f32.mrf.mxu0
    %v5198 = vpop.f32.mrf.mxu0
    %v5199 = vadd.f32 %v4910, %v5198
    %v5200 = vpop.f32.mrf.mxu0
    %5201 = vmatprep.mubr.bf16.mxu0 %v3797
    %5202 = vmatmul.mubr.bf16.gmra.mxu0 %v3796
    %v5203 = vpop.f32.mrf.mxu0
    %v5204 = vadd.f32 %v4915, %v5203
    %v5205 = vpop.f32.mrf.mxu0
    %v5206 = vpop.f32.mrf.mxu0
    %v5207 = vadd.f32 %v4918, %v5206
    %v5208 = vpop.f32.mrf.mxu0
    %5209 = vmatprep.mubr.bf16.mxu0 %v3805
    %5210 = vmatmul.mubr.bf16.gmra.mxu0 %v3804
    %v5211 = vpop.f32.mrf.mxu0
    %v5212 = vadd.f32 %v4923, %v5211
    %v5213 = vpop.f32.mrf.mxu0
    %v5214 = vpop.f32.mrf.mxu0
    %v5215 = vadd.f32 %v4926, %v5214
    %v5216 = vpop.f32.mrf.mxu0
    %5217 = vmatprep.mubr.bf16.mxu0 %v3813
    %5218 = vmatmul.mubr.bf16.gmra.mxu0 %v3812
    %v5219 = vpop.f32.mrf.mxu0
    %v5220 = vadd.f32 %v4931, %v5219
    %v5221 = vpop.f32.mrf.mxu0
    %v5222 = vpop.f32.mrf.mxu0
    %v5223 = vadd.f32 %v4934, %v5222
    %v5224 = vpop.f32.mrf.mxu0
    %5225 = vmatprep.mubr.bf16.mxu0 %v3821
    %5226 = vmatmul.mubr.bf16.gmra.mxu0 %v3820
    %v5227 = vpop.f32.mrf.mxu0
    %v5228 = vadd.f32 %v4939, %v5227
    %v5229 = vpop.f32.mrf.mxu0
    %v5230 = vpop.f32.mrf.mxu0
    %v5231 = vadd.f32 %v4942, %v5230
    %v5232 = vpop.f32.mrf.mxu0
    %5233 = vdwg.mxu0
    %v5234 = vmax.f32 %v4980, 0.0
    %v5235 = vmax.f32 %v4983, 0.0
    %v5236 = vmax.f32 %v4988, 0.0
    %v5237 = vmax.f32 %v4991, 0.0
    %v5238 = vmax.f32 %v4996, 0.0
    %v5239 = vmax.f32 %v4999, 0.0
    %v5240 = vmax.f32 %v5004, 0.0
    %v5241 = vmax.f32 %v5007, 0.0
    %v5242 = vmax.f32 %v5012, 0.0
    %v5243 = vmax.f32 %v5015, 0.0
    %v5244 = vmax.f32 %v5020, 0.0
    %v5245 = vmax.f32 %v5023, 0.0
    %v5246 = vmax.f32 %v5028, 0.0
    %v5247 = vmax.f32 %v5031, 0.0
    %v5248 = vmax.f32 %v5036, 0.0
    %v5249 = vmax.f32 %v5039, 0.0
    %v5250 = vmax.f32 %v5044, 0.0
    %v5251 = vmax.f32 %v5047, 0.0
    %v5252 = vmax.f32 %v5052, 0.0
    %v5253 = vmax.f32 %v5055, 0.0
    %v5254 = vmax.f32 %v5060, 0.0
    %v5255 = vmax.f32 %v5063, 0.0
    %v5256 = vmax.f32 %v5068, 0.0
    %v5257 = vmax.f32 %v5071, 0.0
    %v5258 = vmax.f32 %v5076, 0.0
    %v5259 = vmax.f32 %v5079, 0.0
    %v5260 = vmax.f32 %v5084, 0.0
    %v5261 = vmax.f32 %v5087, 0.0
    %v5262 = vmax.f32 %v5092, 0.0
    %v5263 = vmax.f32 %v5095, 0.0
    %v5264 = vmax.f32 %v5100, 0.0
    %v5265 = vmax.f32 %v5103, 0.0
    %v5266 = vmax.f32 %v5108, 0.0
    %v5267 = vmax.f32 %v5111, 0.0
    %v5268 = vmax.f32 %v5116, 0.0
    %v5269 = vmax.f32 %v5119, 0.0
    %v5270 = vmax.f32 %v5124, 0.0
    %v5271 = vmax.f32 %v5127, 0.0
    %v5272 = vmax.f32 %v5132, 0.0
    %v5273 = vmax.f32 %v5135, 0.0
    %v5274 = vmax.f32 %v5140, 0.0
    %v5275 = vmax.f32 %v5143, 0.0
    %v5276 = vmax.f32 %v5148, 0.0
    %v5277 = vmax.f32 %v5151, 0.0
    %v5278 = vmax.f32 %v5156, 0.0
    %v5279 = vmax.f32 %v5159, 0.0
    %v5280 = vmax.f32 %v5164, 0.0
    %v5281 = vmax.f32 %v5167, 0.0
    %v5282 = vmax.f32 %v5172, 0.0
    %v5283 = vmax.f32 %v5175, 0.0
    %v5284 = vmax.f32 %v5180, 0.0
    %v5285 = vmax.f32 %v5183, 0.0
    %v5286 = vmax.f32 %v5188, 0.0
    %v5287 = vmax.f32 %v5191, 0.0
    %v5288 = vmax.f32 %v5196, 0.0
    %v5289 = vmax.f32 %v5199, 0.0
    %v5290 = vmax.f32 %v5204, 0.0
    %v5291 = vmax.f32 %v5207, 0.0
    %v5292 = vmax.f32 %v5212, 0.0
    %v5293 = vmax.f32 %v5215, 0.0
    %v5294 = vmax.f32 %v5220, 0.0
    %v5295 = vmax.f32 %v5223, 0.0
    %v5296 = vmax.f32 %v5228, 0.0
    %v5297 = vmax.f32 %v5231, 0.0
    %v5298 = vpack.c.bf16 %v5235, %v5234
    %v5299 = vpack.c.bf16 %v5237, %v5236
    %v5300 = vpack.c.bf16 %v5239, %v5238
    %v5301 = vpack.c.bf16 %v5241, %v5240
    %v5302 = vpack.c.bf16 %v5243, %v5242
    %v5303 = vpack.c.bf16 %v5245, %v5244
    %v5304 = vpack.c.bf16 %v5247, %v5246
    %v5305 = vpack.c.bf16 %v5249, %v5248
    %v5306 = vpack.c.bf16 %v5251, %v5250
    %v5307 = vpack.c.bf16 %v5253, %v5252
    %v5308 = vpack.c.bf16 %v5255, %v5254
    %v5309 = vpack.c.bf16 %v5257, %v5256
    %v5310 = vpack.c.bf16 %v5259, %v5258
    %v5311 = vpack.c.bf16 %v5261, %v5260
    %v5312 = vpack.c.bf16 %v5263, %v5262
    %v5313 = vpack.c.bf16 %v5265, %v5264
    %v5314 = vpack.c.bf16 %v5267, %v5266
    %v5315 = vpack.c.bf16 %v5269, %v5268
    %v5316 = vpack.c.bf16 %v5271, %v5270
    %v5317 = vpack.c.bf16 %v5273, %v5272
    %v5318 = vpack.c.bf16 %v5275, %v5274
    %v5319 = vpack.c.bf16 %v5277, %v5276
    %v5320 = vpack.c.bf16 %v5279, %v5278
    %v5321 = vpack.c.bf16 %v5281, %v5280
    %v5322 = vpack.c.bf16 %v5283, %v5282
    %v5323 = vpack.c.bf16 %v5285, %v5284
    %v5324 = vpack.c.bf16 %v5287, %v5286
    %v5325 = vpack.c.bf16 %v5289, %v5288
    %v5326 = vpack.c.bf16 %v5291, %v5290
    %v5327 = vpack.c.bf16 %v5293, %v5292
    %v5328 = vpack.c.bf16 %v5295, %v5294
    %v5329 = vpack.c.bf16 %v5297, %v5296
    %v5330 = vld [vmem:[#allocation8] sm:$0xff]
    %v5331 = vld [vmem:[#allocation8 + $0x8] sm:$0xff]
    %v5332 = vld [vmem:[#allocation8 + $0x10] sm:$0xff]
    %v5333 = vld [vmem:[#allocation8 + $0x18] sm:$0xff]
    %v5334 = vld [vmem:[#allocation8 + $0x20] sm:$0xff]
    %v5335 = vld [vmem:[#allocation8 + $0x28] sm:$0xff]
    %v5336 = vld [vmem:[#allocation8 + $0x30] sm:$0xff]
    %v5337 = vld [vmem:[#allocation8 + $0x38] sm:$0xff]
    %v5338 = vld [vmem:[#allocation8 + $0x40] sm:$0xff]
    %v5339 = vld [vmem:[#allocation8 + $0x48] sm:$0xff]
    %v5340 = vld [vmem:[#allocation8 + $0x50] sm:$0xff]
    %v5341 = vld [vmem:[#allocation8 + $0x58] sm:$0xff]
    %v5342 = vld [vmem:[#allocation8 + $0x60] sm:$0xff]
    %v5343 = vld [vmem:[#allocation8 + $0x68] sm:$0xff]
    %v5344 = vld [vmem:[#allocation8 + $0x70] sm:$0xff]
    %v5345 = vld [vmem:[#allocation8 + $0x78] sm:$0xff]
    %v5346 = vld [vmem:[#allocation8 + $0x80] sm:$0xff]
    %v5347 = vld [vmem:[#allocation8 + $0x88] sm:$0xff]
    %v5348 = vld [vmem:[#allocation8 + $0x90] sm:$0xff]
    %v5349 = vld [vmem:[#allocation8 + $0x98] sm:$0xff]
    %v5350 = vld [vmem:[#allocation8 + $0xa0] sm:$0xff]
    %v5351 = vld [vmem:[#allocation8 + $0xa8] sm:$0xff]
    %v5352 = vld [vmem:[#allocation8 + $0xb0] sm:$0xff]
    %v5353 = vld [vmem:[#allocation8 + $0xb8] sm:$0xff]
    %v5354 = vld [vmem:[#allocation8 + $0xc0] sm:$0xff]
    %v5355 = vld [vmem:[#allocation8 + $0xc8] sm:$0xff]
    %v5356 = vld [vmem:[#allocation8 + $0xd0] sm:$0xff]
    %v5357 = vld [vmem:[#allocation8 + $0xd8] sm:$0xff]
    %v5358 = vld [vmem:[#allocation8 + $0xe0] sm:$0xff]
    %v5359 = vld [vmem:[#allocation8 + $0xe8] sm:$0xff]
    %v5360 = vld [vmem:[#allocation8 + $0xf0] sm:$0xff]
    %v5361 = vld [vmem:[#allocation8 + $0xf8] sm:$0xff]
    %v5362 = vld [vmem:[#allocation8 + $0x100] sm:$0xff]
    %v5363 = vld [vmem:[#allocation8 + $0x108] sm:$0xff]
    %v5364 = vld [vmem:[#allocation8 + $0x110] sm:$0xff]
    %v5365 = vld [vmem:[#allocation8 + $0x118] sm:$0xff]
    %v5366 = vld [vmem:[#allocation8 + $0x120] sm:$0xff]
    %v5367 = vld [vmem:[#allocation8 + $0x128] sm:$0xff]
    %v5368 = vld [vmem:[#allocation8 + $0x130] sm:$0xff]
    %v5369 = vld [vmem:[#allocation8 + $0x138] sm:$0xff]
    %v5370 = vld [vmem:[#allocation8 + $0x140] sm:$0xff]
    %v5371 = vld [vmem:[#allocation8 + $0x148] sm:$0xff]
    %v5372 = vld [vmem:[#allocation8 + $0x150] sm:$0xff]
    %v5373 = vld [vmem:[#allocation8 + $0x158] sm:$0xff]
    %v5374 = vld [vmem:[#allocation8 + $0x160] sm:$0xff]
    %v5375 = vld [vmem:[#allocation8 + $0x168] sm:$0xff]
    %v5376 = vld [vmem:[#allocation8 + $0x170] sm:$0xff]
    %v5377 = vld [vmem:[#allocation8 + $0x178] sm:$0xff]
    %v5378 = vld [vmem:[#allocation8 + $0x180] sm:$0xff]
    %v5379 = vld [vmem:[#allocation8 + $0x188] sm:$0xff]
    %v5380 = vld [vmem:[#allocation8 + $0x190] sm:$0xff]
    %v5381 = vld [vmem:[#allocation8 + $0x198] sm:$0xff]
    %v5382 = vld [vmem:[#allocation8 + $0x1a0] sm:$0xff]
    %v5383 = vld [vmem:[#allocation8 + $0x1a8] sm:$0xff]
    %v5384 = vld [vmem:[#allocation8 + $0x1b0] sm:$0xff]
    %v5385 = vld [vmem:[#allocation8 + $0x1b8] sm:$0xff]
    %v5386 = vld [vmem:[#allocation8 + $0x1c0] sm:$0xff]
    %v5387 = vld [vmem:[#allocation8 + $0x1c8] sm:$0xff]
    %v5388 = vld [vmem:[#allocation8 + $0x1d0] sm:$0xff]
    %v5389 = vld [vmem:[#allocation8 + $0x1d8] sm:$0xff]
    %v5390 = vld [vmem:[#allocation8 + $0x1e0] sm:$0xff]
    %v5391 = vld [vmem:[#allocation8 + $0x1e8] sm:$0xff]
    %v5392 = vld [vmem:[#allocation8 + $0x1f0] sm:$0xff]
    %v5393 = vld [vmem:[#allocation8 + $0x1f8] sm:$0xff]
    %v5394 = vld [vmem:[%s6] sm:$0xff]
    %v5395 = vld [vmem:[%s6 + $0x8] sm:$0xff]
    %v5396 = vld [vmem:[%s6 + $0x10] sm:$0xff]
    %v5397 = vld [vmem:[%s6 + $0x18] sm:$0xff]
    %v5398 = vld [vmem:[%s6 + $0x20] sm:$0xff]
    %v5399 = vld [vmem:[%s6 + $0x28] sm:$0xff]
    %v5400 = vld [vmem:[%s6 + $0x30] sm:$0xff]
    %v5401 = vld [vmem:[%s6 + $0x38] sm:$0xff]
    %v5402 = vld [vmem:[%s6 + $0x40] sm:$0xff]
    %v5403 = vld [vmem:[%s6 + $0x48] sm:$0xff]
    %v5404 = vld [vmem:[%s6 + $0x50] sm:$0xff]
    %v5405 = vld [vmem:[%s6 + $0x58] sm:$0xff]
    %v5406 = vld [vmem:[%s6 + $0x60] sm:$0xff]
    %v5407 = vld [vmem:[%s6 + $0x68] sm:$0xff]
    %v5408 = vld [vmem:[%s6 + $0x70] sm:$0xff]
    %v5409 = vld [vmem:[%s6 + $0x78] sm:$0xff]
    %v5410 = vld [vmem:[%s6 + $0x80] sm:$0xff]
    %v5411 = vld [vmem:[%s6 + $0x88] sm:$0xff]
    %v5412 = vld [vmem:[%s6 + $0x90] sm:$0xff]
    %v5413 = vld [vmem:[%s6 + $0x98] sm:$0xff]
    %v5414 = vld [vmem:[%s6 + $0xa0] sm:$0xff]
    %v5415 = vld [vmem:[%s6 + $0xa8] sm:$0xff]
    %v5416 = vld [vmem:[%s6 + $0xb0] sm:$0xff]
    %v5417 = vld [vmem:[%s6 + $0xb8] sm:$0xff]
    %v5418 = vld [vmem:[%s6 + $0xc0] sm:$0xff]
    %v5419 = vld [vmem:[%s6 + $0xc8] sm:$0xff]
    %v5420 = vld [vmem:[%s6 + $0xd0] sm:$0xff]
    %v5421 = vld [vmem:[%s6 + $0xd8] sm:$0xff]
    %v5422 = vld [vmem:[%s6 + $0xe0] sm:$0xff]
    %v5423 = vld [vmem:[%s6 + $0xe8] sm:$0xff]
    %v5424 = vld [vmem:[%s6 + $0xf0] sm:$0xff]
    %v5425 = vld [vmem:[%s6 + $0xf8] sm:$0xff]
    %5427 = vset.pattern.permute.xlu0 0
    %5428 = vperm.xlu0 %5427, %v5394
    %v5429 = vpop.permute.xlu0 %5428
    %5432 = vset.pattern.permute.xlu0 0
    %5433 = vperm.xlu0 %5432, %v5395
    %v5434 = vpop.permute.xlu0 %5433
    %5437 = vset.pattern.permute.xlu0 0
    %5438 = vperm.xlu0 %5437, %v5396
    %v5439 = vpop.permute.xlu0 %5438
    %5442 = vset.pattern.permute.xlu0 0
    %5443 = vperm.xlu0 %5442, %v5397
    %v5444 = vpop.permute.xlu0 %5443
    %5447 = vset.pattern.permute.xlu0 0
    %5448 = vperm.xlu0 %5447, %v5398
    %v5449 = vpop.permute.xlu0 %5448
    %5452 = vset.pattern.permute.xlu0 0
    %5453 = vperm.xlu0 %5452, %v5399
    %v5454 = vpop.permute.xlu0 %5453
    %5457 = vset.pattern.permute.xlu0 0
    %5458 = vperm.xlu0 %5457, %v5400
    %v5459 = vpop.permute.xlu0 %5458
    %5462 = vset.pattern.permute.xlu0 0
    %5463 = vperm.xlu0 %5462, %v5401
    %v5464 = vpop.permute.xlu0 %5463
    %5467 = vset.pattern.permute.xlu0 0
    %5468 = vperm.xlu0 %5467, %v5402
    %v5469 = vpop.permute.xlu0 %5468
    %5472 = vset.pattern.permute.xlu0 0
    %5473 = vperm.xlu0 %5472, %v5403
    %v5474 = vpop.permute.xlu0 %5473
    %5477 = vset.pattern.permute.xlu0 0
    %5478 = vperm.xlu0 %5477, %v5404
    %v5479 = vpop.permute.xlu0 %5478
    %5482 = vset.pattern.permute.xlu0 0
    %5483 = vperm.xlu0 %5482, %v5405
    %v5484 = vpop.permute.xlu0 %5483
    %5487 = vset.pattern.permute.xlu0 0
    %5488 = vperm.xlu0 %5487, %v5406
    %v5489 = vpop.permute.xlu0 %5488
    %5492 = vset.pattern.permute.xlu0 0
    %5493 = vperm.xlu0 %5492, %v5407
    %v5494 = vpop.permute.xlu0 %5493
    %5497 = vset.pattern.permute.xlu0 0
    %5498 = vperm.xlu0 %5497, %v5408
    %v5499 = vpop.permute.xlu0 %5498
    %5502 = vset.pattern.permute.xlu0 0
    %5503 = vperm.xlu0 %5502, %v5409
    %v5504 = vpop.permute.xlu0 %5503
    %5507 = vset.pattern.permute.xlu0 0
    %5508 = vperm.xlu0 %5507, %v5410
    %v5509 = vpop.permute.xlu0 %5508
    %5512 = vset.pattern.permute.xlu0 0
    %5513 = vperm.xlu0 %5512, %v5411
    %v5514 = vpop.permute.xlu0 %5513
    %5517 = vset.pattern.permute.xlu0 0
    %5518 = vperm.xlu0 %5517, %v5412
    %v5519 = vpop.permute.xlu0 %5518
    %5522 = vset.pattern.permute.xlu0 0
    %5523 = vperm.xlu0 %5522, %v5413
    %v5524 = vpop.permute.xlu0 %5523
    %5527 = vset.pattern.permute.xlu0 0
    %5528 = vperm.xlu0 %5527, %v5414
    %v5529 = vpop.permute.xlu0 %5528
    %5532 = vset.pattern.permute.xlu0 0
    %5533 = vperm.xlu0 %5532, %v5415
    %v5534 = vpop.permute.xlu0 %5533
    %5537 = vset.pattern.permute.xlu0 0
    %5538 = vperm.xlu0 %5537, %v5416
    %v5539 = vpop.permute.xlu0 %5538
    %5542 = vset.pattern.permute.xlu0 0
    %5543 = vperm.xlu0 %5542, %v5417
    %v5544 = vpop.permute.xlu0 %5543
    %5547 = vset.pattern.permute.xlu0 0
    %5548 = vperm.xlu0 %5547, %v5418
    %v5549 = vpop.permute.xlu0 %5548
    %5552 = vset.pattern.permute.xlu0 0
    %5553 = vperm.xlu0 %5552, %v5419
    %v5554 = vpop.permute.xlu0 %5553
    %5557 = vset.pattern.permute.xlu0 0
    %5558 = vperm.xlu0 %5557, %v5420
    %v5559 = vpop.permute.xlu0 %5558
    %5562 = vset.pattern.permute.xlu0 0
    %5563 = vperm.xlu0 %5562, %v5421
    %v5564 = vpop.permute.xlu0 %5563
    %5567 = vset.pattern.permute.xlu0 0
    %5568 = vperm.xlu0 %5567, %v5422
    %v5569 = vpop.permute.xlu0 %5568
    %5572 = vset.pattern.permute.xlu0 0
    %5573 = vperm.xlu0 %5572, %v5423
    %v5574 = vpop.permute.xlu0 %5573
    %5577 = vset.pattern.permute.xlu0 0
    %5578 = vperm.xlu0 %5577, %v5424
    %v5579 = vpop.permute.xlu0 %5578
    %5582 = vset.pattern.permute.xlu0 0
    %5583 = vperm.xlu0 %5582, %v5425
    %v5584 = vpop.permute.xlu0 %5583
    %v5650 = vunpack.c.l.b16 %v5330
    %v5651 = vunpack.c.h.b16 %v5330
    %v5652 = vunpack.c.l.b16 %v5331
    %v5653 = vunpack.c.h.b16 %v5331
    %v5654 = vunpack.c.l.b16 %v5332
    %v5655 = vunpack.c.h.b16 %v5332
    %v5656 = vunpack.c.l.b16 %v5333
    %v5657 = vunpack.c.h.b16 %v5333
    %v5658 = vunpack.c.l.b16 %v5334
    %v5659 = vunpack.c.h.b16 %v5334
    %v5660 = vunpack.c.l.b16 %v5335
    %v5661 = vunpack.c.h.b16 %v5335
    %v5662 = vunpack.c.l.b16 %v5336
    %v5663 = vunpack.c.h.b16 %v5336
    %v5664 = vunpack.c.l.b16 %v5337
    %v5665 = vunpack.c.h.b16 %v5337
    %v5666 = vunpack.c.l.b16 %v5338
    %v5667 = vunpack.c.h.b16 %v5338
    %v5668 = vunpack.c.l.b16 %v5339
    %v5669 = vunpack.c.h.b16 %v5339
    %v5670 = vunpack.c.l.b16 %v5340
    %v5671 = vunpack.c.h.b16 %v5340
    %v5672 = vunpack.c.l.b16 %v5341
    %v5673 = vunpack.c.h.b16 %v5341
    %v5674 = vunpack.c.l.b16 %v5342
    %v5675 = vunpack.c.h.b16 %v5342
    %v5676 = vunpack.c.l.b16 %v5343
    %v5677 = vunpack.c.h.b16 %v5343
    %v5678 = vunpack.c.l.b16 %v5344
    %v5679 = vunpack.c.h.b16 %v5344
    %v5680 = vunpack.c.l.b16 %v5345
    %v5681 = vunpack.c.h.b16 %v5345
    %v5682 = vunpack.c.l.b16 %v5346
    %v5683 = vunpack.c.h.b16 %v5346
    %v5684 = vunpack.c.l.b16 %v5347
    %v5685 = vunpack.c.h.b16 %v5347
    %v5686 = vunpack.c.l.b16 %v5348
    %v5687 = vunpack.c.h.b16 %v5348
    %v5688 = vunpack.c.l.b16 %v5349
    %v5689 = vunpack.c.h.b16 %v5349
    %v5690 = vunpack.c.l.b16 %v5350
    %v5691 = vunpack.c.h.b16 %v5350
    %v5692 = vunpack.c.l.b16 %v5351
    %v5693 = vunpack.c.h.b16 %v5351
    %v5694 = vunpack.c.l.b16 %v5352
    %v5695 = vunpack.c.h.b16 %v5352
    %v5696 = vunpack.c.l.b16 %v5353
    %v5697 = vunpack.c.h.b16 %v5353
    %v5698 = vunpack.c.l.b16 %v5354
    %v5699 = vunpack.c.h.b16 %v5354
    %v5700 = vunpack.c.l.b16 %v5355
    %v5701 = vunpack.c.h.b16 %v5355
    %v5702 = vunpack.c.l.b16 %v5356
    %v5703 = vunpack.c.h.b16 %v5356
    %v5704 = vunpack.c.l.b16 %v5357
    %v5705 = vunpack.c.h.b16 %v5357
    %v5706 = vunpack.c.l.b16 %v5358
    %v5707 = vunpack.c.h.b16 %v5358
    %v5708 = vunpack.c.l.b16 %v5359
    %v5709 = vunpack.c.h.b16 %v5359
    %v5710 = vunpack.c.l.b16 %v5360
    %v5711 = vunpack.c.h.b16 %v5360
    %v5712 = vunpack.c.l.b16 %v5361
    %v5713 = vunpack.c.h.b16 %v5361
    %v5714 = vunpack.c.l.b16 %v5362
    %v5715 = vunpack.c.h.b16 %v5362
    %v5716 = vunpack.c.l.b16 %v5363
    %v5717 = vunpack.c.h.b16 %v5363
    %v5718 = vunpack.c.l.b16 %v5364
    %v5719 = vunpack.c.h.b16 %v5364
    %v5720 = vunpack.c.l.b16 %v5365
    %v5721 = vunpack.c.h.b16 %v5365
    %v5722 = vunpack.c.l.b16 %v5366
    %v5723 = vunpack.c.h.b16 %v5366
    %v5724 = vunpack.c.l.b16 %v5367
    %v5725 = vunpack.c.h.b16 %v5367
    %v5726 = vunpack.c.l.b16 %v5368
    %v5727 = vunpack.c.h.b16 %v5368
    %v5728 = vunpack.c.l.b16 %v5369
    %v5729 = vunpack.c.h.b16 %v5369
    %v5730 = vunpack.c.l.b16 %v5370
    %v5731 = vunpack.c.h.b16 %v5370
    %v5732 = vunpack.c.l.b16 %v5371
    %v5733 = vunpack.c.h.b16 %v5371
    %v5734 = vunpack.c.l.b16 %v5372
    %v5735 = vunpack.c.h.b16 %v5372
    %v5736 = vunpack.c.l.b16 %v5373
    %v5737 = vunpack.c.h.b16 %v5373
    %v5738 = vunpack.c.l.b16 %v5374
    %v5739 = vunpack.c.h.b16 %v5374
    %v5740 = vunpack.c.l.b16 %v5375
    %v5741 = vunpack.c.h.b16 %v5375
    %v5742 = vunpack.c.l.b16 %v5376
    %v5743 = vunpack.c.h.b16 %v5376
    %v5744 = vunpack.c.l.b16 %v5377
    %v5745 = vunpack.c.h.b16 %v5377
    %v5746 = vunpack.c.l.b16 %v5378
    %v5747 = vunpack.c.h.b16 %v5378
    %v5748 = vunpack.c.l.b16 %v5379
    %v5749 = vunpack.c.h.b16 %v5379
    %v5750 = vunpack.c.l.b16 %v5380
    %v5751 = vunpack.c.h.b16 %v5380
    %v5752 = vunpack.c.l.b16 %v5381
    %v5753 = vunpack.c.h.b16 %v5381
    %v5754 = vunpack.c.l.b16 %v5382
    %v5755 = vunpack.c.h.b16 %v5382
    %v5756 = vunpack.c.l.b16 %v5383
    %v5757 = vunpack.c.h.b16 %v5383
    %v5758 = vunpack.c.l.b16 %v5384
    %v5759 = vunpack.c.h.b16 %v5384
    %v5760 = vunpack.c.l.b16 %v5385
    %v5761 = vunpack.c.h.b16 %v5385
    %v5762 = vunpack.c.l.b16 %v5386
    %v5763 = vunpack.c.h.b16 %v5386
    %v5764 = vunpack.c.l.b16 %v5387
    %v5765 = vunpack.c.h.b16 %v5387
    %v5766 = vunpack.c.l.b16 %v5388
    %v5767 = vunpack.c.h.b16 %v5388
    %v5768 = vunpack.c.l.b16 %v5389
    %v5769 = vunpack.c.h.b16 %v5389
    %v5770 = vunpack.c.l.b16 %v5390
    %v5771 = vunpack.c.h.b16 %v5390
    %v5772 = vunpack.c.l.b16 %v5391
    %v5773 = vunpack.c.h.b16 %v5391
    %v5774 = vunpack.c.l.b16 %v5392
    %v5775 = vunpack.c.h.b16 %v5392
    %v5776 = vunpack.c.l.b16 %v5393
    %v5777 = vunpack.c.h.b16 %v5393
    %v5778 = vpack.c.b16 %v5654, %v5650
    %v5779 = vpack.c.b16 %v5655, %v5651
    %v5780 = vpack.c.b16 %v5656, %v5652
    %v5781 = vpack.c.b16 %v5657, %v5653
    %v5782 = vpack.c.b16 %v5662, %v5658
    %v5783 = vpack.c.b16 %v5663, %v5659
    %v5784 = vpack.c.b16 %v5664, %v5660
    %v5785 = vpack.c.b16 %v5665, %v5661
    %v5786 = vpack.c.b16 %v5670, %v5666
    %v5787 = vpack.c.b16 %v5671, %v5667
    %v5788 = vpack.c.b16 %v5672, %v5668
    %v5789 = vpack.c.b16 %v5673, %v5669
    %v5790 = vpack.c.b16 %v5678, %v5674
    %v5791 = vpack.c.b16 %v5679, %v5675
    %v5792 = vpack.c.b16 %v5680, %v5676
    %v5793 = vpack.c.b16 %v5681, %v5677
    %v5794 = vpack.c.b16 %v5686, %v5682
    %v5795 = vpack.c.b16 %v5687, %v5683
    %v5796 = vpack.c.b16 %v5688, %v5684
    %v5797 = vpack.c.b16 %v5689, %v5685
    %v5798 = vpack.c.b16 %v5694, %v5690
    %v5799 = vpack.c.b16 %v5695, %v5691
    %v5800 = vpack.c.b16 %v5696, %v5692
    %v5801 = vpack.c.b16 %v5697, %v5693
    %v5802 = vpack.c.b16 %v5702, %v5698
    %v5803 = vpack.c.b16 %v5703, %v5699
    %v5804 = vpack.c.b16 %v5704, %v5700
    %v5805 = vpack.c.b16 %v5705, %v5701
    %v5806 = vpack.c.b16 %v5710, %v5706
    %v5807 = vpack.c.b16 %v5711, %v5707
    %v5808 = vpack.c.b16 %v5712, %v5708
    %v5809 = vpack.c.b16 %v5713, %v5709
    %v5810 = vpack.c.b16 %v5718, %v5714
    %v5811 = vpack.c.b16 %v5719, %v5715
    %v5812 = vpack.c.b16 %v5720, %v5716
    %v5813 = vpack.c.b16 %v5721, %v5717
    %v5814 = vpack.c.b16 %v5726, %v5722
    %v5815 = vpack.c.b16 %v5727, %v5723
    %v5816 = vpack.c.b16 %v5728, %v5724
    %v5817 = vpack.c.b16 %v5729, %v5725
    %v5818 = vpack.c.b16 %v5734, %v5730
    %v5819 = vpack.c.b16 %v5735, %v5731
    %v5820 = vpack.c.b16 %v5736, %v5732
    %v5821 = vpack.c.b16 %v5737, %v5733
    %v5822 = vpack.c.b16 %v5742, %v5738
    %v5823 = vpack.c.b16 %v5743, %v5739
    %v5824 = vpack.c.b16 %v5744, %v5740
    %v5825 = vpack.c.b16 %v5745, %v5741
    %v5826 = vpack.c.b16 %v5750, %v5746
    %v5827 = vpack.c.b16 %v5751, %v5747
    %v5828 = vpack.c.b16 %v5752, %v5748
    %v5829 = vpack.c.b16 %v5753, %v5749
    %v5830 = vpack.c.b16 %v5758, %v5754
    %v5831 = vpack.c.b16 %v5759, %v5755
    %v5832 = vpack.c.b16 %v5760, %v5756
    %v5833 = vpack.c.b16 %v5761, %v5757
    %v5834 = vpack.c.b16 %v5766, %v5762
    %v5835 = vpack.c.b16 %v5767, %v5763
    %v5836 = vpack.c.b16 %v5768, %v5764
    %v5837 = vpack.c.b16 %v5769, %v5765
    %v5838 = vpack.c.b16 %v5774, %v5770
    %v5839 = vpack.c.b16 %v5775, %v5771
    %v5840 = vpack.c.b16 %v5776, %v5772
    %v5841 = vpack.c.b16 %v5777, %v5773
    %5906 = vmatprep.subr.bf16.mxu0 0
    %5907 = vmatpush1.bf16.msra.mxu0 %v5305
    %5908 = vmatprep.subr.bf16.mxu0 0
    %5909 = vmatpush1.bf16.msra.mxu0 %v5304
    %5910 = vmatprep.subr.bf16.mxu0 0
    %5911 = vmatpush1.bf16.msra.mxu0 %v5303
    %5912 = vmatprep.subr.bf16.mxu0 0
    %5913 = vmatpush1.bf16.msra.mxu0 %v5302
    %5914 = vmatprep.subr.bf16.mxu0 0
    %5915 = vmatpush1.bf16.msra.mxu0 %v5301
    %5916 = vmatprep.subr.bf16.mxu0 0
    %5917 = vmatpush1.bf16.msra.mxu0 %v5300
    %5918 = vmatprep.subr.bf16.mxu0 0
    %5919 = vmatpush1.bf16.msra.mxu0 %v5299
    %5920 = vmatprep.subr.bf16.mxu0 0
    %5921 = vmatpush1.bf16.msra.mxu0 %v5298
    %5922 = vmatprep.subr.bf16.mxu0 0
    %5923 = vmatpush2.bf16.msra.mxu0 %v5313
    %5924 = vmatprep.subr.bf16.mxu0 0
    %5925 = vmatpush2.bf16.msra.mxu0 %v5312
    %5926 = vmatprep.subr.bf16.mxu0 0
    %5927 = vmatpush2.bf16.msra.mxu0 %v5311
    %5928 = vmatprep.subr.bf16.mxu0 0
    %5929 = vmatpush2.bf16.msra.mxu0 %v5310
    %5930 = vmatprep.subr.bf16.mxu0 0
    %5931 = vmatpush2.bf16.msra.mxu0 %v5309
    %5932 = vmatprep.subr.bf16.mxu0 0
    %5933 = vmatpush2.bf16.msra.mxu0 %v5308
    %5934 = vmatprep.subr.bf16.mxu0 0
    %5935 = vmatpush2.bf16.msra.mxu0 %v5307
    %5936 = vmatprep.subr.bf16.mxu0 0
    %5937 = vmatpush2.bf16.msra.mxu0 %v5306
    %5938 = vmatprep.mubr.bf16.mxu0 %v5779
    %5939 = vmatmul.mubr.bf16.gmra.mxu0 %v5778
    %v5940 = vpop.f32.mrf.mxu0
    %v5941 = vadd.f32 %v5429, %v5940
    %v5942 = vpop.f32.mrf.mxu0
    %v5943 = vpop.f32.mrf.mxu0
    %v5944 = vadd.f32 %v5434, %v5943
    %v5945 = vpop.f32.mrf.mxu0
    %5946 = vmatprep.mubr.bf16.mxu0 %v5783
    %5947 = vmatmul.mubr.bf16.gmra.mxu0 %v5782
    %v5948 = vpop.f32.mrf.mxu0
    %v5949 = vadd.f32 %v5439, %v5948
    %v5950 = vpop.f32.mrf.mxu0
    %v5951 = vpop.f32.mrf.mxu0
    %v5952 = vadd.f32 %v5444, %v5951
    %v5953 = vpop.f32.mrf.mxu0
    %5954 = vmatprep.mubr.bf16.mxu0 %v5787
    %5955 = vmatmul.mubr.bf16.gmra.mxu0 %v5786
    %v5956 = vpop.f32.mrf.mxu0
    %v5957 = vadd.f32 %v5449, %v5956
    %v5958 = vpop.f32.mrf.mxu0
    %v5959 = vpop.f32.mrf.mxu0
    %v5960 = vadd.f32 %v5454, %v5959
    %v5961 = vpop.f32.mrf.mxu0
    %5962 = vmatprep.mubr.bf16.mxu0 %v5791
    %5963 = vmatmul.mubr.bf16.gmra.mxu0 %v5790
    %v5964 = vpop.f32.mrf.mxu0
    %v5965 = vadd.f32 %v5459, %v5964
    %v5966 = vpop.f32.mrf.mxu0
    %v5967 = vpop.f32.mrf.mxu0
    %v5968 = vadd.f32 %v5464, %v5967
    %v5969 = vpop.f32.mrf.mxu0
    %5970 = vmatprep.mubr.bf16.mxu0 %v5795
    %5971 = vmatmul.mubr.bf16.gmra.mxu0 %v5794
    %v5972 = vpop.f32.mrf.mxu0
    %v5973 = vadd.f32 %v5469, %v5972
    %v5974 = vpop.f32.mrf.mxu0
    %v5975 = vpop.f32.mrf.mxu0
    %v5976 = vadd.f32 %v5474, %v5975
    %v5977 = vpop.f32.mrf.mxu0
    %5978 = vmatprep.mubr.bf16.mxu0 %v5799
    %5979 = vmatmul.mubr.bf16.gmra.mxu0 %v5798
    %v5980 = vpop.f32.mrf.mxu0
    %v5981 = vadd.f32 %v5479, %v5980
    %v5982 = vpop.f32.mrf.mxu0
    %v5983 = vpop.f32.mrf.mxu0
    %v5984 = vadd.f32 %v5484, %v5983
    %v5985 = vpop.f32.mrf.mxu0
    %5986 = vmatprep.mubr.bf16.mxu0 %v5803
    %5987 = vmatmul.mubr.bf16.gmra.mxu0 %v5802
    %v5988 = vpop.f32.mrf.mxu0
    %v5989 = vadd.f32 %v5489, %v5988
    %v5990 = vpop.f32.mrf.mxu0
    %v5991 = vpop.f32.mrf.mxu0
    %v5992 = vadd.f32 %v5494, %v5991
    %v5993 = vpop.f32.mrf.mxu0
    %5994 = vmatprep.mubr.bf16.mxu0 %v5807
    %5995 = vmatmul.mubr.bf16.gmra.mxu0 %v5806
    %v5996 = vpop.f32.mrf.mxu0
    %v5997 = vadd.f32 %v5499, %v5996
    %v5998 = vpop.f32.mrf.mxu0
    %v5999 = vpop.f32.mrf.mxu0
    %v6000 = vadd.f32 %v5504, %v5999
    %v6001 = vpop.f32.mrf.mxu0
    %6002 = vmatprep.mubr.bf16.mxu0 %v5811
    %6003 = vmatmul.mubr.bf16.gmra.mxu0 %v5810
    %v6004 = vpop.f32.mrf.mxu0
    %v6005 = vadd.f32 %v5509, %v6004
    %v6006 = vpop.f32.mrf.mxu0
    %v6007 = vpop.f32.mrf.mxu0
    %v6008 = vadd.f32 %v5514, %v6007
    %v6009 = vpop.f32.mrf.mxu0
    %6010 = vmatprep.mubr.bf16.mxu0 %v5815
    %6011 = vmatmul.mubr.bf16.gmra.mxu0 %v5814
    %v6012 = vpop.f32.mrf.mxu0
    %v6013 = vadd.f32 %v5519, %v6012
    %v6014 = vpop.f32.mrf.mxu0
    %v6015 = vpop.f32.mrf.mxu0
    %v6016 = vadd.f32 %v5524, %v6015
    %v6017 = vpop.f32.mrf.mxu0
    %6018 = vmatprep.mubr.bf16.mxu0 %v5819
    %6019 = vmatmul.mubr.bf16.gmra.mxu0 %v5818
    %v6020 = vpop.f32.mrf.mxu0
    %v6021 = vadd.f32 %v5529, %v6020
    %v6022 = vpop.f32.mrf.mxu0
    %v6023 = vpop.f32.mrf.mxu0
    %v6024 = vadd.f32 %v5534, %v6023
    %v6025 = vpop.f32.mrf.mxu0
    %6026 = vmatprep.mubr.bf16.mxu0 %v5823
    %6027 = vmatmul.mubr.bf16.gmra.mxu0 %v5822
    %v6028 = vpop.f32.mrf.mxu0
    %v6029 = vadd.f32 %v5539, %v6028
    %v6030 = vpop.f32.mrf.mxu0
    %v6031 = vpop.f32.mrf.mxu0
    %v6032 = vadd.f32 %v5544, %v6031
    %v6033 = vpop.f32.mrf.mxu0
    %6034 = vmatprep.mubr.bf16.mxu0 %v5827
    %6035 = vmatmul.mubr.bf16.gmra.mxu0 %v5826
    %v6036 = vpop.f32.mrf.mxu0
    %v6037 = vadd.f32 %v5549, %v6036
    %v6038 = vpop.f32.mrf.mxu0
    %v6039 = vpop.f32.mrf.mxu0
    %v6040 = vadd.f32 %v5554, %v6039
    %v6041 = vpop.f32.mrf.mxu0
    %6042 = vmatprep.mubr.bf16.mxu0 %v5831
    %6043 = vmatmul.mubr.bf16.gmra.mxu0 %v5830
    %v6044 = vpop.f32.mrf.mxu0
    %v6045 = vadd.f32 %v5559, %v6044
    %v6046 = vpop.f32.mrf.mxu0
    %v6047 = vpop.f32.mrf.mxu0
    %v6048 = vadd.f32 %v5564, %v6047
    %v6049 = vpop.f32.mrf.mxu0
    %6050 = vmatprep.mubr.bf16.mxu0 %v5835
    %6051 = vmatmul.mubr.bf16.gmra.mxu0 %v5834
    %v6052 = vpop.f32.mrf.mxu0
    %v6053 = vadd.f32 %v5569, %v6052
    %v6054 = vpop.f32.mrf.mxu0
    %v6055 = vpop.f32.mrf.mxu0
    %v6056 = vadd.f32 %v5574, %v6055
    %v6057 = vpop.f32.mrf.mxu0
    %6058 = vmatprep.mubr.bf16.mxu0 %v5839
    %6059 = vmatmul.mubr.bf16.gmra.mxu0 %v5838
    %v6060 = vpop.f32.mrf.mxu0
    %v6061 = vadd.f32 %v5579, %v6060
    %v6062 = vpop.f32.mrf.mxu0
    %v6063 = vpop.f32.mrf.mxu0
    %v6064 = vadd.f32 %v5584, %v6063
    %v6065 = vpop.f32.mrf.mxu0
    %6066 = vdwg.mxu0
    %6067 = vmatprep.subr.bf16.mxu0 0
    %6068 = vmatpush1.bf16.msra.mxu0 %v5321
    %6069 = vmatprep.subr.bf16.mxu0 0
    %6070 = vmatpush1.bf16.msra.mxu0 %v5320
    %6071 = vmatprep.subr.bf16.mxu0 0
    %6072 = vmatpush1.bf16.msra.mxu0 %v5319
    %6073 = vmatprep.subr.bf16.mxu0 0
    %6074 = vmatpush1.bf16.msra.mxu0 %v5318
    %6075 = vmatprep.subr.bf16.mxu0 0
    %6076 = vmatpush1.bf16.msra.mxu0 %v5317
    %6077 = vmatprep.subr.bf16.mxu0 0
    %6078 = vmatpush1.bf16.msra.mxu0 %v5316
    %6079 = vmatprep.subr.bf16.mxu0 0
    %6080 = vmatpush1.bf16.msra.mxu0 %v5315
    %6081 = vmatprep.subr.bf16.mxu0 0
    %6082 = vmatpush1.bf16.msra.mxu0 %v5314
    %6083 = vmatprep.subr.bf16.mxu0 0
    %6084 = vmatpush2.bf16.msra.mxu0 %v5329
    %6085 = vmatprep.subr.bf16.mxu0 0
    %6086 = vmatpush2.bf16.msra.mxu0 %v5328
    %6087 = vmatprep.subr.bf16.mxu0 0
    %6088 = vmatpush2.bf16.msra.mxu0 %v5327
    %6089 = vmatprep.subr.bf16.mxu0 0
    %6090 = vmatpush2.bf16.msra.mxu0 %v5326
    %6091 = vmatprep.subr.bf16.mxu0 0
    %6092 = vmatpush2.bf16.msra.mxu0 %v5325
    %6093 = vmatprep.subr.bf16.mxu0 0
    %6094 = vmatpush2.bf16.msra.mxu0 %v5324
    %6095 = vmatprep.subr.bf16.mxu0 0
    %6096 = vmatpush2.bf16.msra.mxu0 %v5323
    %6097 = vmatprep.subr.bf16.mxu0 0
    %6098 = vmatpush2.bf16.msra.mxu0 %v5322
    %6099 = vmatprep.mubr.bf16.mxu0 %v5781
    %6100 = vmatmul.mubr.bf16.gmra.mxu0 %v5780
    %v6101 = vpop.f32.mrf.mxu0
    %v6102 = vadd.f32 %v5941, %v6101
    %v6103 = vpop.f32.mrf.mxu0
    %v6104 = vpop.f32.mrf.mxu0
    %v6105 = vadd.f32 %v5944, %v6104
    %v6106 = vpop.f32.mrf.mxu0
    %6107 = vmatprep.mubr.bf16.mxu0 %v5785
    %6108 = vmatmul.mubr.bf16.gmra.mxu0 %v5784
    %v6109 = vpop.f32.mrf.mxu0
    %v6110 = vadd.f32 %v5949, %v6109
    %v6111 = vpop.f32.mrf.mxu0
    %v6112 = vpop.f32.mrf.mxu0
    %v6113 = vadd.f32 %v5952, %v6112
    %v6114 = vpop.f32.mrf.mxu0
    %6115 = vmatprep.mubr.bf16.mxu0 %v5789
    %6116 = vmatmul.mubr.bf16.gmra.mxu0 %v5788
    %v6117 = vpop.f32.mrf.mxu0
    %v6118 = vadd.f32 %v5957, %v6117
    %v6119 = vpop.f32.mrf.mxu0
    %v6120 = vpop.f32.mrf.mxu0
    %v6121 = vadd.f32 %v5960, %v6120
    %v6122 = vpop.f32.mrf.mxu0
    %6123 = vmatprep.mubr.bf16.mxu0 %v5793
    %6124 = vmatmul.mubr.bf16.gmra.mxu0 %v5792
    %v6125 = vpop.f32.mrf.mxu0
    %v6126 = vadd.f32 %v5965, %v6125
    %v6127 = vpop.f32.mrf.mxu0
    %v6128 = vpop.f32.mrf.mxu0
    %v6129 = vadd.f32 %v5968, %v6128
    %v6130 = vpop.f32.mrf.mxu0
    %6131 = vmatprep.mubr.bf16.mxu0 %v5797
    %6132 = vmatmul.mubr.bf16.gmra.mxu0 %v5796
    %v6133 = vpop.f32.mrf.mxu0
    %v6134 = vadd.f32 %v5973, %v6133
    %v6135 = vpop.f32.mrf.mxu0
    %v6136 = vpop.f32.mrf.mxu0
    %v6137 = vadd.f32 %v5976, %v6136
    %v6138 = vpop.f32.mrf.mxu0
    %6139 = vmatprep.mubr.bf16.mxu0 %v5801
    %6140 = vmatmul.mubr.bf16.gmra.mxu0 %v5800
    %v6141 = vpop.f32.mrf.mxu0
    %v6142 = vadd.f32 %v5981, %v6141
    %v6143 = vpop.f32.mrf.mxu0
    %v6144 = vpop.f32.mrf.mxu0
    %v6145 = vadd.f32 %v5984, %v6144
    %v6146 = vpop.f32.mrf.mxu0
    %6147 = vmatprep.mubr.bf16.mxu0 %v5805
    %6148 = vmatmul.mubr.bf16.gmra.mxu0 %v5804
    %v6149 = vpop.f32.mrf.mxu0
    %v6150 = vadd.f32 %v5989, %v6149
    %v6151 = vpop.f32.mrf.mxu0
    %v6152 = vpop.f32.mrf.mxu0
    %v6153 = vadd.f32 %v5992, %v6152
    %v6154 = vpop.f32.mrf.mxu0
    %6155 = vmatprep.mubr.bf16.mxu0 %v5809
    %6156 = vmatmul.mubr.bf16.gmra.mxu0 %v5808
    %v6157 = vpop.f32.mrf.mxu0
    %v6158 = vadd.f32 %v5997, %v6157
    %v6159 = vpop.f32.mrf.mxu0
    %v6160 = vpop.f32.mrf.mxu0
    %v6161 = vadd.f32 %v6000, %v6160
    %v6162 = vpop.f32.mrf.mxu0
    %6163 = vmatprep.mubr.bf16.mxu0 %v5813
    %6164 = vmatmul.mubr.bf16.gmra.mxu0 %v5812
    %v6165 = vpop.f32.mrf.mxu0
    %v6166 = vadd.f32 %v6005, %v6165
    %v6167 = vpop.f32.mrf.mxu0
    %v6168 = vpop.f32.mrf.mxu0
    %v6169 = vadd.f32 %v6008, %v6168
    %v6170 = vpop.f32.mrf.mxu0
    %6171 = vmatprep.mubr.bf16.mxu0 %v5817
    %6172 = vmatmul.mubr.bf16.gmra.mxu0 %v5816
    %v6173 = vpop.f32.mrf.mxu0
    %v6174 = vadd.f32 %v6013, %v6173
    %v6175 = vpop.f32.mrf.mxu0
    %v6176 = vpop.f32.mrf.mxu0
    %v6177 = vadd.f32 %v6016, %v6176
    %v6178 = vpop.f32.mrf.mxu0
    %6179 = vmatprep.mubr.bf16.mxu0 %v5821
    %6180 = vmatmul.mubr.bf16.gmra.mxu0 %v5820
    %v6181 = vpop.f32.mrf.mxu0
    %v6182 = vadd.f32 %v6021, %v6181
    %v6183 = vpop.f32.mrf.mxu0
    %v6184 = vpop.f32.mrf.mxu0
    %v6185 = vadd.f32 %v6024, %v6184
    %v6186 = vpop.f32.mrf.mxu0
    %6187 = vmatprep.mubr.bf16.mxu0 %v5825
    %6188 = vmatmul.mubr.bf16.gmra.mxu0 %v5824
    %v6189 = vpop.f32.mrf.mxu0
    %v6190 = vadd.f32 %v6029, %v6189
    %v6191 = vpop.f32.mrf.mxu0
    %v6192 = vpop.f32.mrf.mxu0
    %v6193 = vadd.f32 %v6032, %v6192
    %v6194 = vpop.f32.mrf.mxu0
    %6195 = vmatprep.mubr.bf16.mxu0 %v5829
    %6196 = vmatmul.mubr.bf16.gmra.mxu0 %v5828
    %v6197 = vpop.f32.mrf.mxu0
    %v6198 = vadd.f32 %v6037, %v6197
    %v6199 = vpop.f32.mrf.mxu0
    %v6200 = vpop.f32.mrf.mxu0
    %v6201 = vadd.f32 %v6040, %v6200
    %v6202 = vpop.f32.mrf.mxu0
    %6203 = vmatprep.mubr.bf16.mxu0 %v5833
    %6204 = vmatmul.mubr.bf16.gmra.mxu0 %v5832
    %v6205 = vpop.f32.mrf.mxu0
    %v6206 = vadd.f32 %v6045, %v6205
    %v6207 = vpop.f32.mrf.mxu0
    %v6208 = vpop.f32.mrf.mxu0
    %v6209 = vadd.f32 %v6048, %v6208
    %v6210 = vpop.f32.mrf.mxu0
    %6211 = vmatprep.mubr.bf16.mxu0 %v5837
    %6212 = vmatmul.mubr.bf16.gmra.mxu0 %v5836
    %v6213 = vpop.f32.mrf.mxu0
    %v6214 = vadd.f32 %v6053, %v6213
    %v6215 = vpop.f32.mrf.mxu0
    %v6216 = vpop.f32.mrf.mxu0
    %v6217 = vadd.f32 %v6056, %v6216
    %v6218 = vpop.f32.mrf.mxu0
    %6219 = vmatprep.mubr.bf16.mxu0 %v5841
    %6220 = vmatmul.mubr.bf16.gmra.mxu0 %v5840
    %v6221 = vpop.f32.mrf.mxu0
    %v6222 = vadd.f32 %v6061, %v6221
    %v6223 = vpop.f32.mrf.mxu0
    %v6224 = vpop.f32.mrf.mxu0
    %v6225 = vadd.f32 %v6064, %v6224
    %v6226 = vpop.f32.mrf.mxu0
    %6227 = vdwg.mxu0
    %v6228 = vmax.f32 %v6102, 0.0
    %v6229 = vmax.f32 %v6105, 0.0
    %v6230 = vmax.f32 %v6110, 0.0
    %v6231 = vmax.f32 %v6113, 0.0
    %v6232 = vmax.f32 %v6118, 0.0
    %v6233 = vmax.f32 %v6121, 0.0
    %v6234 = vmax.f32 %v6126, 0.0
    %v6235 = vmax.f32 %v6129, 0.0
    %v6236 = vmax.f32 %v6134, 0.0
    %v6237 = vmax.f32 %v6137, 0.0
    %v6238 = vmax.f32 %v6142, 0.0
    %v6239 = vmax.f32 %v6145, 0.0
    %v6240 = vmax.f32 %v6150, 0.0
    %v6241 = vmax.f32 %v6153, 0.0
    %v6242 = vmax.f32 %v6158, 0.0
    %v6243 = vmax.f32 %v6161, 0.0
    %v6244 = vmax.f32 %v6166, 0.0
    %v6245 = vmax.f32 %v6169, 0.0
    %v6246 = vmax.f32 %v6174, 0.0
    %v6247 = vmax.f32 %v6177, 0.0
    %v6248 = vmax.f32 %v6182, 0.0
    %v6249 = vmax.f32 %v6185, 0.0
    %v6250 = vmax.f32 %v6190, 0.0
    %v6251 = vmax.f32 %v6193, 0.0
    %v6252 = vmax.f32 %v6198, 0.0
    %v6253 = vmax.f32 %v6201, 0.0
    %v6254 = vmax.f32 %v6206, 0.0
    %v6255 = vmax.f32 %v6209, 0.0
    %v6256 = vmax.f32 %v6214, 0.0
    %v6257 = vmax.f32 %v6217, 0.0
    %v6258 = vmax.f32 %v6222, 0.0
    %v6259 = vmax.f32 %v6225, 0.0
    %v6260 = vld [vmem:[%s7] sm:$0xff]
    %v6261 = vld [vmem:[%s7 + $0x8] sm:$0xff]
    %v6262 = vld [vmem:[%s7 + $0x10] sm:$0xff]
    %v6263 = vld [vmem:[%s7 + $0x18] sm:$0xff]
    %v6264 = vld [vmem:[%s7 + $0x20] sm:$0xff]
    %v6265 = vld [vmem:[%s7 + $0x28] sm:$0xff]
    %v6266 = vld [vmem:[%s7 + $0x30] sm:$0xff]
    %v6267 = vld [vmem:[%s7 + $0x38] sm:$0xff]
    %v6268 = vld [vmem:[%s7 + $0x40] sm:$0xff]
    %v6269 = vld [vmem:[%s7 + $0x48] sm:$0xff]
    %v6270 = vld [vmem:[%s7 + $0x50] sm:$0xff]
    %v6271 = vld [vmem:[%s7 + $0x58] sm:$0xff]
    %v6272 = vld [vmem:[%s7 + $0x60] sm:$0xff]
    %v6273 = vld [vmem:[%s7 + $0x68] sm:$0xff]
    %v6274 = vld [vmem:[%s7 + $0x70] sm:$0xff]
    %v6275 = vld [vmem:[%s7 + $0x78] sm:$0xff]
    %v6276 = vld [vmem:[%s7 + $0x80] sm:$0xff]
    %v6277 = vld [vmem:[%s7 + $0x88] sm:$0xff]
    %v6278 = vld [vmem:[%s7 + $0x90] sm:$0xff]
    %v6279 = vld [vmem:[%s7 + $0x98] sm:$0xff]
    %v6280 = vld [vmem:[%s7 + $0xa0] sm:$0xff]
    %v6281 = vld [vmem:[%s7 + $0xa8] sm:$0xff]
    %v6282 = vld [vmem:[%s7 + $0xb0] sm:$0xff]
    %v6283 = vld [vmem:[%s7 + $0xb8] sm:$0xff]
    %v6284 = vld [vmem:[%s7 + $0xc0] sm:$0xff]
    %v6285 = vld [vmem:[%s7 + $0xc8] sm:$0xff]
    %v6286 = vld [vmem:[%s7 + $0xd0] sm:$0xff]
    %v6287 = vld [vmem:[%s7 + $0xd8] sm:$0xff]
    %v6288 = vld [vmem:[%s7 + $0xe0] sm:$0xff]
    %v6289 = vld [vmem:[%s7 + $0xe8] sm:$0xff]
    %v6290 = vld [vmem:[%s7 + $0xf0] sm:$0xff]
    %v6291 = vld [vmem:[%s7 + $0xf8] sm:$0xff]
    %6293 = vset.pattern.permute.xlu0 0
    %6294 = vperm.xlu0 %6293, %v6260
    %v6295 = vpop.permute.xlu0 %6294
    %6298 = vset.pattern.permute.xlu0 0
    %6299 = vperm.xlu0 %6298, %v6261
    %v6300 = vpop.permute.xlu0 %6299
    %6303 = vset.pattern.permute.xlu0 0
    %6304 = vperm.xlu0 %6303, %v6262
    %v6305 = vpop.permute.xlu0 %6304
    %6308 = vset.pattern.permute.xlu0 0
    %6309 = vperm.xlu0 %6308, %v6263
    %v6310 = vpop.permute.xlu0 %6309
    %6313 = vset.pattern.permute.xlu0 0
    %6314 = vperm.xlu0 %6313, %v6264
    %v6315 = vpop.permute.xlu0 %6314
    %6318 = vset.pattern.permute.xlu0 0
    %6319 = vperm.xlu0 %6318, %v6265
    %v6320 = vpop.permute.xlu0 %6319
    %6323 = vset.pattern.permute.xlu0 0
    %6324 = vperm.xlu0 %6323, %v6266
    %v6325 = vpop.permute.xlu0 %6324
    %6328 = vset.pattern.permute.xlu0 0
    %6329 = vperm.xlu0 %6328, %v6267
    %v6330 = vpop.permute.xlu0 %6329
    %6333 = vset.pattern.permute.xlu0 0
    %6334 = vperm.xlu0 %6333, %v6268
    %v6335 = vpop.permute.xlu0 %6334
    %6338 = vset.pattern.permute.xlu0 0
    %6339 = vperm.xlu0 %6338, %v6269
    %v6340 = vpop.permute.xlu0 %6339
    %6343 = vset.pattern.permute.xlu0 0
    %6344 = vperm.xlu0 %6343, %v6270
    %v6345 = vpop.permute.xlu0 %6344
    %6348 = vset.pattern.permute.xlu0 0
    %6349 = vperm.xlu0 %6348, %v6271
    %v6350 = vpop.permute.xlu0 %6349
    %6353 = vset.pattern.permute.xlu0 0
    %6354 = vperm.xlu0 %6353, %v6272
    %v6355 = vpop.permute.xlu0 %6354
    %6358 = vset.pattern.permute.xlu0 0
    %6359 = vperm.xlu0 %6358, %v6273
    %v6360 = vpop.permute.xlu0 %6359
    %6363 = vset.pattern.permute.xlu0 0
    %6364 = vperm.xlu0 %6363, %v6274
    %v6365 = vpop.permute.xlu0 %6364
    %6368 = vset.pattern.permute.xlu0 0
    %6369 = vperm.xlu0 %6368, %v6275
    %v6370 = vpop.permute.xlu0 %6369
    %6373 = vset.pattern.permute.xlu0 0
    %6374 = vperm.xlu0 %6373, %v6276
    %v6375 = vpop.permute.xlu0 %6374
    %6378 = vset.pattern.permute.xlu0 0
    %6379 = vperm.xlu0 %6378, %v6277
    %v6380 = vpop.permute.xlu0 %6379
    %6383 = vset.pattern.permute.xlu0 0
    %6384 = vperm.xlu0 %6383, %v6278
    %v6385 = vpop.permute.xlu0 %6384
    %6388 = vset.pattern.permute.xlu0 0
    %6389 = vperm.xlu0 %6388, %v6279
    %v6390 = vpop.permute.xlu0 %6389
    %6393 = vset.pattern.permute.xlu0 0
    %6394 = vperm.xlu0 %6393, %v6280
    %v6395 = vpop.permute.xlu0 %6394
    %6398 = vset.pattern.permute.xlu0 0
    %6399 = vperm.xlu0 %6398, %v6281
    %v6400 = vpop.permute.xlu0 %6399
    %6403 = vset.pattern.permute.xlu0 0
    %6404 = vperm.xlu0 %6403, %v6282
    %v6405 = vpop.permute.xlu0 %6404
    %6408 = vset.pattern.permute.xlu0 0
    %6409 = vperm.xlu0 %6408, %v6283
    %v6410 = vpop.permute.xlu0 %6409
    %6413 = vset.pattern.permute.xlu0 0
    %6414 = vperm.xlu0 %6413, %v6284
    %v6415 = vpop.permute.xlu0 %6414
    %6418 = vset.pattern.permute.xlu0 0
    %6419 = vperm.xlu0 %6418, %v6285
    %v6420 = vpop.permute.xlu0 %6419
    %6423 = vset.pattern.permute.xlu0 0
    %6424 = vperm.xlu0 %6423, %v6286
    %v6425 = vpop.permute.xlu0 %6424
    %6428 = vset.pattern.permute.xlu0 0
    %6429 = vperm.xlu0 %6428, %v6287
    %v6430 = vpop.permute.xlu0 %6429
    %6433 = vset.pattern.permute.xlu0 0
    %6434 = vperm.xlu0 %6433, %v6288
    %v6435 = vpop.permute.xlu0 %6434
    %6438 = vset.pattern.permute.xlu0 0
    %6439 = vperm.xlu0 %6438, %v6289
    %v6440 = vpop.permute.xlu0 %6439
    %6443 = vset.pattern.permute.xlu0 0
    %6444 = vperm.xlu0 %6443, %v6290
    %v6445 = vpop.permute.xlu0 %6444
    %6448 = vset.pattern.permute.xlu0 0
    %6449 = vperm.xlu0 %6448, %v6291
    %v6450 = vpop.permute.xlu0 %6449
    %v6452 = vmul.f32 %v6228, %v6295
    %v6453 = vmul.f32 %v6229, %v6300
    %v6454 = vmul.f32 %v6230, %v6305
    %v6455 = vmul.f32 %v6231, %v6310
    %v6456 = vmul.f32 %v6232, %v6315
    %v6457 = vmul.f32 %v6233, %v6320
    %v6458 = vmul.f32 %v6234, %v6325
    %v6459 = vmul.f32 %v6235, %v6330
    %v6460 = vmul.f32 %v6236, %v6335
    %v6461 = vmul.f32 %v6237, %v6340
    %v6462 = vmul.f32 %v6238, %v6345
    %v6463 = vmul.f32 %v6239, %v6350
    %v6464 = vmul.f32 %v6240, %v6355
    %v6465 = vmul.f32 %v6241, %v6360
    %v6466 = vmul.f32 %v6242, %v6365
    %v6467 = vmul.f32 %v6243, %v6370
    %v6468 = vmul.f32 %v6244, %v6375
    %v6469 = vmul.f32 %v6245, %v6380
    %v6470 = vmul.f32 %v6246, %v6385
    %v6471 = vmul.f32 %v6247, %v6390
    %v6472 = vmul.f32 %v6248, %v6395
    %v6473 = vmul.f32 %v6249, %v6400
    %v6474 = vmul.f32 %v6250, %v6405
    %v6475 = vmul.f32 %v6251, %v6410
    %v6476 = vmul.f32 %v6252, %v6415
    %v6477 = vmul.f32 %v6253, %v6420
    %v6478 = vmul.f32 %v6254, %v6425
    %v6479 = vmul.f32 %v6255, %v6430
    %v6480 = vmul.f32 %v6256, %v6435
    %v6481 = vmul.f32 %v6257, %v6440
    %v6482 = vmul.f32 %v6258, %v6445
    %v6483 = vmul.f32 %v6259, %v6450
    %v6484 = vadd.f32 %v6452, %v6453
    %v6485 = vadd.f32 %v6484, %v6454
    %v6486 = vadd.f32 %v6485, %v6455
    %v6487 = vadd.f32 %v6486, %v6456
    %v6488 = vadd.f32 %v6487, %v6457
    %v6489 = vadd.f32 %v6488, %v6458
    %v6490 = vadd.f32 %v6489, %v6459
    %v6491 = vadd.f32 %v6490, %v6460
    %v6492 = vadd.f32 %v6491, %v6461
    %v6493 = vadd.f32 %v6492, %v6462
    %v6494 = vadd.f32 %v6493, %v6463
    %v6495 = vadd.f32 %v6494, %v6464
    %v6496 = vadd.f32 %v6495, %v6465
    %v6497 = vadd.f32 %v6496, %v6466
    %v6498 = vadd.f32 %v6497, %v6467
    %v6499 = vadd.f32 %v6498, %v6468
    %v6500 = vadd.f32 %v6499, %v6469
    %v6501 = vadd.f32 %v6500, %v6470
    %v6502 = vadd.f32 %v6501, %v6471
    %v6503 = vadd.f32 %v6502, %v6472
    %v6504 = vadd.f32 %v6503, %v6473
    %v6505 = vadd.f32 %v6504, %v6474
    %v6506 = vadd.f32 %v6505, %v6475
    %v6507 = vadd.f32 %v6506, %v6476
    %v6508 = vadd.f32 %v6507, %v6477
    %v6509 = vadd.f32 %v6508, %v6478
    %v6510 = vadd.f32 %v6509, %v6479
    %v6511 = vadd.f32 %v6510, %v6480
    %v6512 = vadd.f32 %v6511, %v6481
    %v6513 = vadd.f32 %v6512, %v6482
    %v6514 = vadd.f32 %v6513, %v6483
    %v6515 = vrot.slane %v6514, 4
    %v6516 = vadd.f32 %v6514, %v6515
    %v6517 = vrot.slane %v6516, 2
    %v6518 = vadd.f32 %v6516, %v6517
    %v6519 = vrot.slane %v6518, 1
    %v6520 = vadd.f32 %v6518, %v6519
    %v6521 = vld [vmem:[#allocation2] sm:$0x1]
    %6523 = vset.pattern.permute.xlu0 0
    %6524 = vperm.xlu0 %6523, %v6521
    %v6525 = vpop.permute.xlu0 %6524
    %v6527 = vlaneseq
    %v6528 = vshrl.u32 %v6527, 7
    %v6529 = vsub.s32 0, %v6528
    %v6530 = vrot.slane %v6525, %v6529
    %v6531 = vadd.f32 %v6520, %v6530
    %v6532 = vtanh.pop %v6531
    %6533 = vst [vmem:[#allocation9] sm:$0x1] %v6532
    // Predicated region
    $region50: #{tpu_custom_call.1} parent=1 // pred_check
      _
    $region51: #{tpu_custom_call.1} parent=1 // pred_check_branch
      %6535 = sbr.rel (0) target = $region53
    $region52: #{tpu_custom_call.1} parent=1 // pred_region
      %s6537 = ssub.s32 16, 16
      %6538 = vsyncadd [#allocation5], %s6537
      %s6540 = sshll.u32 [#allocation9], 4
      %s6541 = int_to_ptr.vmem [resolvable:$true] %s6540
      %6543 = dma.vmem_to_hbm [thread:$0]  %s6541, 16, %s9, [#allocation5]
    $region53: #{tpu_custom_call.1} parent=1 // pred_fallthru
      _
    // Predicated region
    $region54: #{tpu_custom_call.1} parent=1 // pred_check
      _
    $region55: #{tpu_custom_call.1} parent=1 // pred_check_branch
      %6545 = sbr.rel (0) target = $region57
    $region56: #{tpu_custom_call.1} parent=1 // pred_region
      %6546 = dma.done [#allocation5], 16
    $region57: #{tpu_custom_call.1} parent=1 // pred_fallthru
      _
    %6547 = vsyncpa [#allocation4], 1
    %6548 = vsyncpa [#allocation7], 1
    %6549 = vsyncpa [#allocation5], 1

</llo_original>
